<compile_context>
chip_gen: v5e
topology: v5e:2x2
jax: 0.10.0
libtpu: 0.0.40
codegen_flags: <defaults>
</compile_context>

<pallas_src>
import functools

import jax
import jax.numpy as jnp
import numpy as np
from jax.experimental import pallas as pl
from jax.experimental.pallas import tpu as pltpu


# ----------------------------------------------------------------------------
# Kernel A: Conv3x3(padding='same') + BN(eval) + MaxPool2x2 + ReLU, fused.
#   One grid step per image; conv done as 9 accumulating dots (no im2col).
# ----------------------------------------------------------------------------
def _conv_bn_pool_relu_kernel(x_ref, w_ref, sel_ref, shift_ref, o_ref, *,
                              Hc, Wc, HP, WP, Cin, Cout, use_mxu):
    M = Hc * Wc          # conv output positions
    Q = HP * WP          # pooled output positions
    acc = jnp.zeros((M, Cout), jnp.float32)
    for t in range(9):
        kh, kw = divmod(t, 3)
        # shifted window of the padded input, flattened to (M, Cin)
        a = x_ref[0, kh:kh + Hc, kw:kw + Wc, :].reshape(M, Cin)
        if use_mxu:
            acc = acc + jnp.dot(a, w_ref[t], preferred_element_type=jnp.float32)
        else:
            # tiny Cin (e.g. 1): VPU broadcast multiply-accumulate, skip the MXU
            for ci in range(Cin):
                acc = acc + a[:, ci:ci + 1] * w_ref[t, ci:ci + 1, :]
    # 2x2 max-pool: one 0/1 corner-gather matmul (4 stacked selection matrices)
    # then a 4-way elementwise max; BN shift and ReLU commute with the max.
    corners = jnp.dot(sel_ref[...], acc, preferred_element_type=jnp.float32)
    pooled = jnp.maximum(
        jnp.maximum(corners[0:Q], corners[Q:2 * Q]),
        jnp.maximum(corners[2 * Q:3 * Q], corners[3 * Q:4 * Q]))
    y = jnp.maximum(pooled + shift_ref[...], 0.0)
    o_ref[0] = y                                   # (Q, Cout); wrapper reshapes


def _pool_selection_matrix(Hc, Wc):
    """0/1 matrix gathering the 4 corners of every 2x2 pooling window."""
    HP, WP = Hc // 2, Wc // 2
    S = np.zeros((4 * HP * WP, Hc * Wc), np.float32)
    for corner, (dh, dw) in enumerate([(0, 0), (0, 1), (1, 0), (1, 1)]):
        for hp in range(HP):
            for wp in range(WP):
                S[corner * HP * WP + hp * WP + wp,
                  (2 * hp + dh) * Wc + (2 * wp + dw)] = 1.0
    return jnp.asarray(S)


def conv_bn_pool_relu(x_nhwc, w, b, gamma, beta, mean, var, eps=1e-5):
    N, H, W, Cin = x_nhwc.shape
    Cout = w.shape[0]
    HP, WP = H // 2, W // 2
    xp = jnp.pad(x_nhwc, ((0, 0), (1, 1), (1, 1), (0, 0)))     # 'same', k=3
    # Fold BN scale into the conv weights; only the shift stays in the kernel.
    scale = gamma / jnp.sqrt(var + eps)
    w9 = jnp.transpose(w, (2, 3, 1, 0)).reshape(9, Cin, Cout) * scale[None, None, :]
    shift = ((b - mean) * scale + beta).reshape(1, Cout)
    sel = _pool_selection_matrix(H, W)

    kern = functools.partial(_conv_bn_pool_relu_kernel, Hc=H, Wc=W, HP=HP, WP=WP,
                             Cin=Cin, Cout=Cout, use_mxu=Cin >= 8)
    out = pl.pallas_call(
        kern,
        out_shape=jax.ShapeDtypeStruct((N, HP * WP, Cout), jnp.float32),
        grid=(N,),
        in_specs=[
            pl.BlockSpec((1, H + 2, W + 2, Cin), lambda n: (n, 0, 0, 0)),
            pl.BlockSpec((9, Cin, Cout), lambda n: (0, 0, 0)),
            pl.BlockSpec(sel.shape, lambda n: (0, 0)),
            pl.BlockSpec((1, Cout), lambda n: (0, 0)),
        ],
        out_specs=pl.BlockSpec((1, HP * WP, Cout), lambda n: (n, 0, 0)),
        compiler_params=pltpu.CompilerParams(
            dimension_semantics=("parallel",),
            vmem_limit_bytes=32 * 1024 * 1024),
    )(xp, w9, sel, shift)
    return out.reshape(N, HP, WP, Cout)


# ----------------------------------------------------------------------------
# Kernel B: Conv3x3(padding='valid') + BN(eval) + ReLU + GAP + Linear, fused.
# ----------------------------------------------------------------------------
def _conv_bn_relu_gap_fc_kernel(x_ref, w_ref, shift_ref, wfc_ref, bfc_ref,
                                o_ref, *, Hc, Wc, Cout):
    pooled = jnp.zeros((1, Cout), jnp.float32)
    for h in range(Hc):                      # conv output rows (tiny: 2)
        acc = jnp.zeros((Wc, Cout), jnp.float32)
        for t in range(9):
            kh, kw = divmod(t, 3)
            a = x_ref[0, h + kh, kw:kw + Wc, :]              # (Wc, Cin)
            acc = acc + jnp.dot(a, w_ref[t], preferred_element_type=jnp.float32)
        y = jnp.maximum(acc + shift_ref[...], 0.0)           # BN shift + ReLU
        pooled = pooled + jnp.sum(y, axis=0, keepdims=True)
    pooled = pooled * (1.0 / (Hc * Wc))                      # global avg pool
    o_ref[0] = (jnp.dot(pooled, wfc_ref[...], preferred_element_type=jnp.float32)
                + bfc_ref[...])


def conv_bn_relu_gap_fc(x_nhwc, w, b, gamma, beta, mean, var, w_fc, b_fc,
                        num_classes, eps=1e-5):
    N, H, W, Cin = x_nhwc.shape
    Cout = w.shape[0]
    Hc, Wc = H - 2, W - 2                                    # 'valid' output
    scale = gamma / jnp.sqrt(var + eps)
    w9 = jnp.transpose(w, (2, 3, 1, 0)).reshape(9, Cin, Cout) * scale[None, None, :]
    shift = ((b - mean) * scale + beta).reshape(1, Cout)
    # Lane-dense FC output: pad classes to a multiple of 128, slice afterwards.
    cpad = ((num_classes + 127) // 128) * 128
    wfc_p = jnp.zeros((Cout, cpad), jnp.float32).at[:, :num_classes].set(w_fc.T)
    bfc_p = jnp.zeros((1, cpad), jnp.float32).at[:, :num_classes].set(b_fc)

    kern = functools.partial(_conv_bn_relu_gap_fc_kernel, Hc=Hc, Wc=Wc, Cout=Cout)
    out = pl.pallas_call(
        kern,
        out_shape=jax.ShapeDtypeStruct((N, 1, cpad), jnp.float32),
        grid=(N,),
        in_specs=[
            pl.BlockSpec((1, H, W, Cin), lambda n: (n, 0, 0, 0)),
            pl.BlockSpec((9, Cin, Cout), lambda n: (0, 0, 0)),
            pl.BlockSpec((1, Cout), lambda n: (0, 0)),
            pl.BlockSpec((Cout, cpad), lambda n: (0, 0)),
            pl.BlockSpec((1, cpad), lambda n: (0, 0)),
        ],
        out_specs=pl.BlockSpec((1, 1, cpad), lambda n: (n, 0, 0)),
        compiler_params=pltpu.CompilerParams(
            dimension_semantics=("parallel",),
            vmem_limit_bytes=32 * 1024 * 1024),
    )(x_nhwc, w9, shift, wfc_p, bfc_p)
    return out[:, 0, :num_classes]


# ----------------------------------------------------------------------------
# Full forward (eval mode: dropout layers are identity)
# ----------------------------------------------------------------------------
@jax.jit
def asl_forward(x_nchw, p):
    x = jnp.transpose(x_nchw, (0, 2, 3, 1))                  # NCHW -> NHWC
    x = conv_bn_pool_relu(x, p["w1"], p["b1"], p["g1"], p["be1"], p["m1"], p["v1"])
    x = conv_bn_pool_relu(x, p["w2"], p["b2"], p["g2"], p["be2"], p["m2"], p["v2"])
    return conv_bn_relu_gap_fc(x, p["w3"], p["b3"], p["g3"], p["be3"], p["m3"],
                               p["v3"], p["wfc"], p["bfc"], p["bfc"].shape[0])


# ----------------------------------------------------------------------------
# Deterministic parameter construction (synthetic; matches module shapes)
# ----------------------------------------------------------------------------
def init_params(key, in_channels, num_classes):
    keys = jax.random.split(key, 20)

    def conv_layer(i, cout, cin):
        w = 0.05 * jax.random.normal(keys[i], (cout, cin, 3, 3), jnp.float32)
        b = 0.05 * jax.random.normal(keys[i + 1], (cout,), jnp.float32)
        g = 1.0 + 0.1 * jax.random.normal(keys[i + 2], (cout,), jnp.float32)
        be = 0.1 * jax.random.normal(keys[i + 3], (cout,), jnp.float32)
        m = 0.1 * jax.random.normal(keys[i + 4], (cout,), jnp.float32)
        v = 1.0 + 0.1 * jax.random.uniform(keys[i + 5], (cout,), jnp.float32)
        return w, b, g, be, m, v

    p = {}
    p["w1"], p["b1"], p["g1"], p["be1"], p["m1"], p["v1"] = conv_layer(0, 128, in_channels)
    p["w2"], p["b2"], p["g2"], p["be2"], p["m2"], p["v2"] = conv_layer(6, 64, 128)
    p["w3"], p["b3"], p["g3"], p["be3"], p["m3"], p["v3"] = conv_layer(12, 32, 64)
    p["wfc"] = 0.05 * jax.random.normal(keys[18], (num_classes, 32), jnp.float32)
    p["bfc"] = 0.05 * jax.random.normal(keys[19], (num_classes,), jnp.float32)
    return p


# ----------------------------------------------------------------------------
# Pure-JAX reference (mirrors the PyTorch forward in eval mode)
# ----------------------------------------------------------------------------
def reference_forward(x_nchw, p, eps=1e-5):
    def conv(x, w, b, pad):
        y = jax.lax.conv_general_dilated(
            x, jnp.transpose(w, (2, 3, 1, 0)), window_strides=(1, 1),
            padding=pad, dimension_numbers=("NHWC", "HWIO", "NHWC"))
        return y + b.reshape(1, 1, 1, -1)

    def bn(x, g, be, m, v):
        return (x - m) * (g / jnp.sqrt(v + eps)) + be

    def pool(x):
        N, H, W, C = x.shape
        return x.reshape(N, H // 2, 2, W // 2, 2, C).max(axis=(2, 4))

    x = jnp.transpose(x_nchw, (0, 2, 3, 1))
    x = jax.nn.relu(pool(bn(conv(x, p["w1"], p["b1"], "SAME"),
                            p["g1"], p["be1"], p["m1"], p["v1"])))
    x = jax.nn.relu(pool(bn(conv(x, p["w2"], p["b2"], "SAME"),
                            p["g2"], p["be2"], p["m2"], p["v2"])))
    x = jax.nn.relu(bn(conv(x, p["w3"], p["b3"], "VALID"),
                       p["g3"], p["be3"], p["m3"], p["v3"]))
    pooled = x.mean(axis=(1, 2))
    return pooled @ p["wfc"].T + p["bfc"]


# ----------------------------------------------------------------------------
if __name__ == "__main__":
    key = jax.random.PRNGKey(0)
    kx, kp = jax.random.split(key)

    in_channels, num_classes = 1, 24      # ASL sign-MNIST style setup
    x = jax.random.normal(kx, (2, in_channels, 16, 16), jnp.float32)  # NCHW
    params = init_params(kp, in_channels, num_classes)

    out = jax.block_until_ready(asl_forward(x, params))
    ref = jax.block_until_ready(reference_forward(x, params))

    assert out.shape == (2, num_classes) and out.dtype == jnp.float32
    np.testing.assert_allclose(np.asarray(out), np.asarray(ref),
                               rtol=2e-2, atol=2e-2)
    print("KERNEL_OK")
</pallas_src>

<mosaic_0001>
module attributes {stable_mosaic.version = 11 : i64} {
  func.func @_conv_bn_pool_relu_kernel(%arg0: i32, %arg1: memref<1x10x10x128xf32, #tpu.memory_space<vmem>>, %arg2: memref<9x128x64xf32, #tpu.memory_space<vmem>>, %arg3: memref<64x64xf32, #tpu.memory_space<vmem>>, %arg4: memref<1x64xf32, #tpu.memory_space<vmem>>, %arg5: memref<1x16x64xf32, #tpu.memory_space<vmem>>) attributes {dimension_semantics = [#tpu.dimension_semantics<parallel>], iteration_bounds = array<i64: 2>, scalar_prefetch = 0 : i64, scratch_operands = 0 : i64, tpu.core_type = #tpu.core_type<tc>, window_params = [{transform_indices = @transform_0, window_bounds = array<i64: 1, 10, 10, 128>}, {pipeline_mode = #tpu.pipeline_mode<synchronous>, transform_indices = @transform_1, window_bounds = array<i64: 9, 128, 64>}, {pipeline_mode = #tpu.pipeline_mode<synchronous>, transform_indices = @transform_2, window_bounds = array<i64: 64, 64>}, {pipeline_mode = #tpu.pipeline_mode<synchronous>, transform_indices = @transform_3, window_bounds = array<i64: 1, 64>}, {transform_indices = @transform_4, window_bounds = array<i64: 1, 16, 64>}]} {
    %cst = arith.constant 0.000000e+00 : f32
    %0 = vector.broadcast %cst : f32 to vector<64x64xf32>
    %c0 = arith.constant 0 : index
    %c0_0 = arith.constant 0 : index
    %c0_1 = arith.constant 0 : index
    %c0_2 = arith.constant 0 : index
    %1 = vector.load %arg1[%c0, %c0_0, %c0_1, %c0_2] : memref<1x10x10x128xf32, #tpu.memory_space<vmem>>, vector<1x8x8x128xf32>
    %2 = vector.shape_cast %1 : vector<1x8x8x128xf32> to vector<8x8x128xf32>
    %3 = vector.shape_cast %2 : vector<8x8x128xf32> to vector<64x128xf32>
    %c0_3 = arith.constant 0 : index
    %c0_4 = arith.constant 0 : index
    %c0_5 = arith.constant 0 : index
    %4 = vector.load %arg2[%c0_3, %c0_4, %c0_5] : memref<9x128x64xf32, #tpu.memory_space<vmem>>, vector<1x128x64xf32>
    %5 = vector.shape_cast %4 : vector<1x128x64xf32> to vector<128x64xf32>
    %cst_6 = arith.constant dense<0.000000e+00> : vector<64x64xf32>
    %6 = tpu.matmul %3, %5, %cst_6 {dimension_numbers = #tpu.dot_dimension_numbers<[1], [0], [0], [1], [0, 0, 1, 1], [], []>} : vector<64x128xf32>, vector<128x64xf32>, vector<64x64xf32> -> vector<64x64xf32>
    %7 = arith.addf %0, %6 : vector<64x64xf32>
    %c0_7 = arith.constant 0 : index
    %c0_8 = arith.constant 0 : index
    %c1 = arith.constant 1 : index
    %c0_9 = arith.constant 0 : index
    %8 = vector.load %arg1[%c0_7, %c0_8, %c1, %c0_9] : memref<1x10x10x128xf32, #tpu.memory_space<vmem>>, vector<1x8x8x128xf32>
    %9 = vector.shape_cast %8 : vector<1x8x8x128xf32> to vector<8x8x128xf32>
    %10 = vector.shape_cast %9 : vector<8x8x128xf32> to vector<64x128xf32>
    %c1_10 = arith.constant 1 : index
    %c0_11 = arith.constant 0 : index
    %c0_12 = arith.constant 0 : index
    %11 = vector.load %arg2[%c1_10, %c0_11, %c0_12] : memref<9x128x64xf32, #tpu.memory_space<vmem>>, vector<1x128x64xf32>
    %12 = vector.shape_cast %11 : vector<1x128x64xf32> to vector<128x64xf32>
    %cst_13 = arith.constant dense<0.000000e+00> : vector<64x64xf32>
    %13 = tpu.matmul %10, %12, %cst_13 {dimension_numbers = #tpu.dot_dimension_numbers<[1], [0], [0], [1], [0, 0, 1, 1], [], []>} : vector<64x128xf32>, vector<128x64xf32>, vector<64x64xf32> -> vector<64x64xf32>
    %14 = arith.addf %7, %13 : vector<64x64xf32>
    %c0_14 = arith.constant 0 : index
    %c0_15 = arith.constant 0 : index
    %c2 = arith.constant 2 : index
    %c0_16 = arith.constant 0 : index
    %15 = vector.load %arg1[%c0_14, %c0_15, %c2, %c0_16] : memref<1x10x10x128xf32, #tpu.memory_space<vmem>>, vector<1x8x8x128xf32>
    %16 = vector.shape_cast %15 : vector<1x8x8x128xf32> to vector<8x8x128xf32>
    %17 = vector.shape_cast %16 : vector<8x8x128xf32> to vector<64x128xf32>
    %c2_17 = arith.constant 2 : index
    %c0_18 = arith.constant 0 : index
    %c0_19 = arith.constant 0 : index
    %18 = vector.load %arg2[%c2_17, %c0_18, %c0_19] : memref<9x128x64xf32, #tpu.memory_space<vmem>>, vector<1x128x64xf32>
    %19 = vector.shape_cast %18 : vector<1x128x64xf32> to vector<128x64xf32>
    %cst_20 = arith.constant dense<0.000000e+00> : vector<64x64xf32>
    %20 = tpu.matmul %17, %19, %cst_20 {dimension_numbers = #tpu.dot_dimension_numbers<[1], [0], [0], [1], [0, 0, 1, 1], [], []>} : vector<64x128xf32>, vector<128x64xf32>, vector<64x64xf32> -> vector<64x64xf32>
    %21 = arith.addf %14, %20 : vector<64x64xf32>
    %c0_21 = arith.constant 0 : index
    %c1_22 = arith.constant 1 : index
    %c0_23 = arith.constant 0 : index
    %c0_24 = arith.constant 0 : index
    %22 = vector.load %arg1[%c0_21, %c1_22, %c0_23, %c0_24] : memref<1x10x10x128xf32, #tpu.memory_space<vmem>>, vector<1x8x8x128xf32>
    %23 = vector.shape_cast %22 : vector<1x8x8x128xf32> to vector<8x8x128xf32>
    %24 = vector.shape_cast %23 : vector<8x8x128xf32> to vector<64x128xf32>
    %c3 = arith.constant 3 : index
    %c0_25 = arith.constant 0 : index
    %c0_26 = arith.constant 0 : index
    %25 = vector.load %arg2[%c3, %c0_25, %c0_26] : memref<9x128x64xf32, #tpu.memory_space<vmem>>, vector<1x128x64xf32>
    %26 = vector.shape_cast %25 : vector<1x128x64xf32> to vector<128x64xf32>
    %cst_27 = arith.constant dense<0.000000e+00> : vector<64x64xf32>
    %27 = tpu.matmul %24, %26, %cst_27 {dimension_numbers = #tpu.dot_dimension_numbers<[1], [0], [0], [1], [0, 0, 1, 1], [], []>} : vector<64x128xf32>, vector<128x64xf32>, vector<64x64xf32> -> vector<64x64xf32>
    %28 = arith.addf %21, %27 : vector<64x64xf32>
    %c0_28 = arith.constant 0 : index
    %c1_29 = arith.constant 1 : index
    %c1_30 = arith.constant 1 : index
    %c0_31 = arith.constant 0 : index
    %29 = vector.load %arg1[%c0_28, %c1_29, %c1_30, %c0_31] : memref<1x10x10x128xf32, #tpu.memory_space<vmem>>, vector<1x8x8x128xf32>
    %30 = vector.shape_cast %29 : vector<1x8x8x128xf32> to vector<8x8x128xf32>
    %31 = vector.shape_cast %30 : vector<8x8x128xf32> to vector<64x128xf32>
    %c4 = arith.constant 4 : index
    %c0_32 = arith.constant 0 : index
    %c0_33 = arith.constant 0 : index
    %32 = vector.load %arg2[%c4, %c0_32, %c0_33] : memref<9x128x64xf32, #tpu.memory_space<vmem>>, vector<1x128x64xf32>
    %33 = vector.shape_cast %32 : vector<1x128x64xf32> to vector<128x64xf32>
    %cst_34 = arith.constant dense<0.000000e+00> : vector<64x64xf32>
    %34 = tpu.matmul %31, %33, %cst_34 {dimension_numbers = #tpu.dot_dimension_numbers<[1], [0], [0], [1], [0, 0, 1, 1], [], []>} : vector<64x128xf32>, vector<128x64xf32>, vector<64x64xf32> -> vector<64x64xf32>
    %35 = arith.addf %28, %34 : vector<64x64xf32>
    %c0_35 = arith.constant 0 : index
    %c1_36 = arith.constant 1 : index
    %c2_37 = arith.constant 2 : index
    %c0_38 = arith.constant 0 : index
    %36 = vector.load %arg1[%c0_35, %c1_36, %c2_37, %c0_38] : memref<1x10x10x128xf32, #tpu.memory_space<vmem>>, vector<1x8x8x128xf32>
    %37 = vector.shape_cast %36 : vector<1x8x8x128xf32> to vector<8x8x128xf32>
    %38 = vector.shape_cast %37 : vector<8x8x128xf32> to vector<64x128xf32>
    %c5 = arith.constant 5 : index
    %c0_39 = arith.constant 0 : index
    %c0_40 = arith.constant 0 : index
    %39 = vector.load %arg2[%c5, %c0_39, %c0_40] : memref<9x128x64xf32, #tpu.memory_space<vmem>>, vector<1x128x64xf32>
    %40 = vector.shape_cast %39 : vector<1x128x64xf32> to vector<128x64xf32>
    %cst_41 = arith.constant dense<0.000000e+00> : vector<64x64xf32>
    %41 = tpu.matmul %38, %40, %cst_41 {dimension_numbers = #tpu.dot_dimension_numbers<[1], [0], [0], [1], [0, 0, 1, 1], [], []>} : vector<64x128xf32>, vector<128x64xf32>, vector<64x64xf32> -> vector<64x64xf32>
    %42 = arith.addf %35, %41 : vector<64x64xf32>
    %c0_42 = arith.constant 0 : index
    %c2_43 = arith.constant 2 : index
    %c0_44 = arith.constant 0 : index
    %c0_45 = arith.constant 0 : index
    %43 = vector.load %arg1[%c0_42, %c2_43, %c0_44, %c0_45] : memref<1x10x10x128xf32, #tpu.memory_space<vmem>>, vector<1x8x8x128xf32>
    %44 = vector.shape_cast %43 : vector<1x8x8x128xf32> to vector<8x8x128xf32>
    %45 = vector.shape_cast %44 : vector<8x8x128xf32> to vector<64x128xf32>
    %c6 = arith.constant 6 : index
    %c0_46 = arith.constant 0 : index
    %c0_47 = arith.constant 0 : index
    %46 = vector.load %arg2[%c6, %c0_46, %c0_47] : memref<9x128x64xf32, #tpu.memory_space<vmem>>, vector<1x128x64xf32>
    %47 = vector.shape_cast %46 : vector<1x128x64xf32> to vector<128x64xf32>
    %cst_48 = arith.constant dense<0.000000e+00> : vector<64x64xf32>
    %48 = tpu.matmul %45, %47, %cst_48 {dimension_numbers = #tpu.dot_dimension_numbers<[1], [0], [0], [1], [0, 0, 1, 1], [], []>} : vector<64x128xf32>, vector<128x64xf32>, vector<64x64xf32> -> vector<64x64xf32>
    %49 = arith.addf %42, %48 : vector<64x64xf32>
    %c0_49 = arith.constant 0 : index
    %c2_50 = arith.constant 2 : index
    %c1_51 = arith.constant 1 : index
    %c0_52 = arith.constant 0 : index
    %50 = vector.load %arg1[%c0_49, %c2_50, %c1_51, %c0_52] : memref<1x10x10x128xf32, #tpu.memory_space<vmem>>, vector<1x8x8x128xf32>
    %51 = vector.shape_cast %50 : vector<1x8x8x128xf32> to vector<8x8x128xf32>
    %52 = vector.shape_cast %51 : vector<8x8x128xf32> to vector<64x128xf32>
    %c7 = arith.constant 7 : index
    %c0_53 = arith.constant 0 : index
    %c0_54 = arith.constant 0 : index
    %53 = vector.load %arg2[%c7, %c0_53, %c0_54] : memref<9x128x64xf32, #tpu.memory_space<vmem>>, vector<1x128x64xf32>
    %54 = vector.shape_cast %53 : vector<1x128x64xf32> to vector<128x64xf32>
    %cst_55 = arith.constant dense<0.000000e+00> : vector<64x64xf32>
    %55 = tpu.matmul %52, %54, %cst_55 {dimension_numbers = #tpu.dot_dimension_numbers<[1], [0], [0], [1], [0, 0, 1, 1], [], []>} : vector<64x128xf32>, vector<128x64xf32>, vector<64x64xf32> -> vector<64x64xf32>
    %56 = arith.addf %49, %55 : vector<64x64xf32>
    %c0_56 = arith.constant 0 : index
    %c2_57 = arith.constant 2 : index
    %c2_58 = arith.constant 2 : index
    %c0_59 = arith.constant 0 : index
    %57 = vector.load %arg1[%c0_56, %c2_57, %c2_58, %c0_59] : memref<1x10x10x128xf32, #tpu.memory_space<vmem>>, vector<1x8x8x128xf32>
    %58 = vector.shape_cast %57 : vector<1x8x8x128xf32> to vector<8x8x128xf32>
    %59 = vector.shape_cast %58 : vector<8x8x128xf32> to vector<64x128xf32>
    %c8 = arith.constant 8 : index
    %c0_60 = arith.constant 0 : index
    %c0_61 = arith.constant 0 : index
    %60 = vector.load %arg2[%c8, %c0_60, %c0_61] : memref<9x128x64xf32, #tpu.memory_space<vmem>>, vector<1x128x64xf32>
    %61 = vector.shape_cast %60 : vector<1x128x64xf32> to vector<128x64xf32>
    %cst_62 = arith.constant dense<0.000000e+00> : vector<64x64xf32>
    %62 = tpu.matmul %59, %61, %cst_62 {dimension_numbers = #tpu.dot_dimension_numbers<[1], [0], [0], [1], [0, 0, 1, 1], [], []>} : vector<64x128xf32>, vector<128x64xf32>, vector<64x64xf32> -> vector<64x64xf32>
    %63 = arith.addf %56, %62 : vector<64x64xf32>
    %c0_63 = arith.constant 0 : index
    %c0_64 = arith.constant 0 : index
    %64 = vector.load %arg3[%c0_63, %c0_64] : memref<64x64xf32, #tpu.memory_space<vmem>>, vector<64x64xf32>
    %cst_65 = arith.constant dense<0.000000e+00> : vector<64x64xf32>
    %65 = tpu.matmul %64, %63, %cst_65 {dimension_numbers = #tpu.dot_dimension_numbers<[1], [0], [0], [1], [0, 0, 1, 1], [], []>} : vector<64x64xf32>, vector<64x64xf32>, vector<64x64xf32> -> vector<64x64xf32>
    %66 = vector.extract_strided_slice %65 {offsets = [0, 0], sizes = [16, 64], strides = [1, 1]} : vector<64x64xf32> to vector<16x64xf32>
    %67 = vector.extract_strided_slice %65 {offsets = [16, 0], sizes = [16, 64], strides = [1, 1]} : vector<64x64xf32> to vector<16x64xf32>
    %68 = arith.maximumf %66, %67 : vector<16x64xf32>
    %69 = vector.extract_strided_slice %65 {offsets = [32, 0], sizes = [16, 64], strides = [1, 1]} : vector<64x64xf32> to vector<16x64xf32>
    %70 = vector.extract_strided_slice %65 {offsets = [48, 0], sizes = [16, 64], strides = [1, 1]} : vector<64x64xf32> to vector<16x64xf32>
    %71 = arith.maximumf %69, %70 : vector<16x64xf32>
    %72 = arith.maximumf %68, %71 : vector<16x64xf32>
    %c0_66 = arith.constant 0 : index
    %c0_67 = arith.constant 0 : index
    %73 = vector.load %arg4[%c0_66, %c0_67] : memref<1x64xf32, #tpu.memory_space<vmem>>, vector<1x64xf32>
    %74 = vector.broadcast %73 : vector<1x64xf32> to vector<16x64xf32>
    %75 = arith.addf %72, %74 : vector<16x64xf32>
    %cst_68 = arith.constant 0.000000e+00 : f32
    %76 = vector.broadcast %cst_68 : f32 to vector<16x64xf32>
    %77 = arith.maximumf %75, %76 : vector<16x64xf32>
    %c0_69 = arith.constant 0 : index
    %c0_70 = arith.constant 0 : index
    %c0_71 = arith.constant 0 : index
    %78 = vector.load %arg5[%c0_69, %c0_70, %c0_71] : memref<1x16x64xf32, #tpu.memory_space<vmem>>, vector<1x16x64xf32>
    %79 = vector.shape_cast %78 : vector<1x16x64xf32> to vector<16x64xf32>
    %80 = vector.shape_cast %77 : vector<16x64xf32> to vector<1x16x64xf32>
    tpu.vector_store %arg5[%c0_69, %c0_70, %c0_71], %80 {strides = array<i32>} : memref<1x16x64xf32, #tpu.memory_space<vmem>>, vector<1x16x64xf32>,
    return
  }
  func.func @transform_0(%arg0: i32) -> (i32, i32, i32, i32) {
    %c0_i32 = arith.constant 0 : i32
    %c0_i32_0 = arith.constant 0 : i32
    %c0_i32_1 = arith.constant 0 : i32
    %c0_i32_2 = arith.constant 0 : i32
    return %arg0, %c0_i32, %c0_i32_0, %c0_i32_1 : i32, i32, i32, i32
  }
  func.func @transform_1(%arg0: i32) -> (i32, i32, i32) {
    %c0_i32 = arith.constant 0 : i32
    %c0_i32_0 = arith.constant 0 : i32
    %c0_i32_1 = arith.constant 0 : i32
    %c0_i32_2 = arith.constant 0 : i32
    return %c0_i32, %c0_i32_0, %c0_i32_1 : i32, i32, i32
  }
  func.func @transform_2(%arg0: i32) -> (i32, i32) {
    %c0_i32 = arith.constant 0 : i32
    %c0_i32_0 = arith.constant 0 : i32
    %c0_i32_1 = arith.constant 0 : i32
    return %c0_i32, %c0_i32_0 : i32, i32
  }
  func.func @transform_3(%arg0: i32) -> (i32, i32) {
    %c0_i32 = arith.constant 0 : i32
    %c0_i32_0 = arith.constant 0 : i32
    %c0_i32_1 = arith.constant 0 : i32
    return %c0_i32, %c0_i32_0 : i32, i32
  }
  func.func @transform_4(%arg0: i32) -> (i32, i32, i32) {
    %c0_i32 = arith.constant 0 : i32
    %c0_i32_0 = arith.constant 0 : i32
    %c0_i32_1 = arith.constant 0 : i32
    return %arg0, %c0_i32, %c0_i32_0 : i32, i32, i32
  }
}

module attributes {stable_mosaic.version = 11 : i64} {
  func.func @_conv_bn_pool_relu_kernel(%arg0: i32, %arg1: memref<1x18x18x1xf32, #tpu.memory_space<vmem>>, %arg2: memref<9x1x128xf32, #tpu.memory_space<vmem>>, %arg3: memref<256x256xf32, #tpu.memory_space<vmem>>, %arg4: memref<1x128xf32, #tpu.memory_space<vmem>>, %arg5: memref<1x64x128xf32, #tpu.memory_space<vmem>>) attributes {dimension_semantics = [#tpu.dimension_semantics<parallel>], iteration_bounds = array<i64: 2>, scalar_prefetch = 0 : i64, scratch_operands = 0 : i64, tpu.core_type = #tpu.core_type<tc>, window_params = [{transform_indices = @transform_0, window_bounds = array<i64: 1, 18, 18, 1>}, {pipeline_mode = #tpu.pipeline_mode<synchronous>, transform_indices = @transform_1, window_bounds = array<i64: 9, 1, 128>}, {pipeline_mode = #tpu.pipeline_mode<synchronous>, transform_indices = @transform_2, window_bounds = array<i64: 256, 256>}, {pipeline_mode = #tpu.pipeline_mode<synchronous>, transform_indices = @transform_3, window_bounds = array<i64: 1, 128>}, {transform_indices = @transform_4, window_bounds = array<i64: 1, 64, 128>}]} {
    %cst = arith.constant 0.000000e+00 : f32
    %0 = vector.broadcast %cst : f32 to vector<256x128xf32>
    %c0 = arith.constant 0 : index
    %c0_0 = arith.constant 0 : index
    %c0_1 = arith.constant 0 : index
    %c0_2 = arith.constant 0 : index
    %1 = vector.load %arg1[%c0, %c0_0, %c0_1, %c0_2] : memref<1x18x18x1xf32, #tpu.memory_space<vmem>>, vector<1x16x16x1xf32>
    %2 = vector.shape_cast %1 : vector<1x16x16x1xf32> to vector<16x16x1xf32>
    %3 = vector.shape_cast %2 : vector<16x16x1xf32> to vector<256x1xf32>
    %c0_3 = arith.constant 0 : index
    %c0_4 = arith.constant 0 : index
    %c0_5 = arith.constant 0 : index
    %4 = vector.load %arg2[%c0_3, %c0_4, %c0_5] : memref<9x1x128xf32, #tpu.memory_space<vmem>>, vector<1x1x128xf32>
    %5 = vector.shape_cast %4 : vector<1x1x128xf32> to vector<1x128xf32>
    %6 = vector.broadcast %3 : vector<256x1xf32> to vector<256x128xf32>
    %7 = vector.broadcast %5 : vector<1x128xf32> to vector<256x128xf32>
    %8 = arith.mulf %6, %7 : vector<256x128xf32>
    %9 = arith.addf %0, %8 : vector<256x128xf32>
    %c0_6 = arith.constant 0 : index
    %c0_7 = arith.constant 0 : index
    %c1 = arith.constant 1 : index
    %c0_8 = arith.constant 0 : index
    %10 = vector.load %arg1[%c0_6, %c0_7, %c1, %c0_8] : memref<1x18x18x1xf32, #tpu.memory_space<vmem>>, vector<1x16x16x1xf32>
    %11 = vector.shape_cast %10 : vector<1x16x16x1xf32> to vector<16x16x1xf32>
    %12 = vector.shape_cast %11 : vector<16x16x1xf32> to vector<256x1xf32>
    %c1_9 = arith.constant 1 : index
    %c0_10 = arith.constant 0 : index
    %c0_11 = arith.constant 0 : index
    %13 = vector.load %arg2[%c1_9, %c0_10, %c0_11] : memref<9x1x128xf32, #tpu.memory_space<vmem>>, vector<1x1x128xf32>
    %14 = vector.shape_cast %13 : vector<1x1x128xf32> to vector<1x128xf32>
    %15 = vector.broadcast %12 : vector<256x1xf32> to vector<256x128xf32>
    %16 = vector.broadcast %14 : vector<1x128xf32> to vector<256x128xf32>
    %17 = arith.mulf %15, %16 : vector<256x128xf32>
    %18 = arith.addf %9, %17 : vector<256x128xf32>
    %c0_12 = arith.constant 0 : index
    %c0_13 = arith.constant 0 : index
    %c2 = arith.constant 2 : index
    %c0_14 = arith.constant 0 : index
    %19 = vector.load %arg1[%c0_12, %c0_13, %c2, %c0_14] : memref<1x18x18x1xf32, #tpu.memory_space<vmem>>, vector<1x16x16x1xf32>
    %20 = vector.shape_cast %19 : vector<1x16x16x1xf32> to vector<16x16x1xf32>
    %21 = vector.shape_cast %20 : vector<16x16x1xf32> to vector<256x1xf32>
    %c2_15 = arith.constant 2 : index
    %c0_16 = arith.constant 0 : index
    %c0_17 = arith.constant 0 : index
    %22 = vector.load %arg2[%c2_15, %c0_16, %c0_17] : memref<9x1x128xf32, #tpu.memory_space<vmem>>, vector<1x1x128xf32>
    %23 = vector.shape_cast %22 : vector<1x1x128xf32> to vector<1x128xf32>
    %24 = vector.broadcast %21 : vector<256x1xf32> to vector<256x128xf32>
    %25 = vector.broadcast %23 : vector<1x128xf32> to vector<256x128xf32>
    %26 = arith.mulf %24, %25 : vector<256x128xf32>
    %27 = arith.addf %18, %26 : vector<256x128xf32>
    %c0_18 = arith.constant 0 : index
    %c1_19 = arith.constant 1 : index
    %c0_20 = arith.constant 0 : index
    %c0_21 = arith.constant 0 : index
    %28 = vector.load %arg1[%c0_18, %c1_19, %c0_20, %c0_21] : memref<1x18x18x1xf32, #tpu.memory_space<vmem>>, vector<1x16x16x1xf32>
    %29 = vector.shape_cast %28 : vector<1x16x16x1xf32> to vector<16x16x1xf32>
    %30 = vector.shape_cast %29 : vector<16x16x1xf32> to vector<256x1xf32>
    %c3 = arith.constant 3 : index
    %c0_22 = arith.constant 0 : index
    %c0_23 = arith.constant 0 : index
    %31 = vector.load %arg2[%c3, %c0_22, %c0_23] : memref<9x1x128xf32, #tpu.memory_space<vmem>>, vector<1x1x128xf32>
    %32 = vector.shape_cast %31 : vector<1x1x128xf32> to vector<1x128xf32>
    %33 = vector.broadcast %30 : vector<256x1xf32> to vector<256x128xf32>
    %34 = vector.broadcast %32 : vector<1x128xf32> to vector<256x128xf32>
    %35 = arith.mulf %33, %34 : vector<256x128xf32>
    %36 = arith.addf %27, %35 : vector<256x128xf32>
    %c0_24 = arith.constant 0 : index
    %c1_25 = arith.constant 1 : index
    %c1_26 = arith.constant 1 : index
    %c0_27 = arith.constant 0 : index
    %37 = vector.load %arg1[%c0_24, %c1_25, %c1_26, %c0_27] : memref<1x18x18x1xf32, #tpu.memory_space<vmem>>, vector<1x16x16x1xf32>
    %38 = vector.shape_cast %37 : vector<1x16x16x1xf32> to vector<16x16x1xf32>
    %39 = vector.shape_cast %38 : vector<16x16x1xf32> to vector<256x1xf32>
    %c4 = arith.constant 4 : index
    %c0_28 = arith.constant 0 : index
    %c0_29 = arith.constant 0 : index
    %40 = vector.load %arg2[%c4, %c0_28, %c0_29] : memref<9x1x128xf32, #tpu.memory_space<vmem>>, vector<1x1x128xf32>
    %41 = vector.shape_cast %40 : vector<1x1x128xf32> to vector<1x128xf32>
    %42 = vector.broadcast %39 : vector<256x1xf32> to vector<256x128xf32>
    %43 = vector.broadcast %41 : vector<1x128xf32> to vector<256x128xf32>
    %44 = arith.mulf %42, %43 : vector<256x128xf32>
    %45 = arith.addf %36, %44 : vector<256x128xf32>
    %c0_30 = arith.constant 0 : index
    %c1_31 = arith.constant 1 : index
    %c2_32 = arith.constant 2 : index
    %c0_33 = arith.constant 0 : index
    %46 = vector.load %arg1[%c0_30, %c1_31, %c2_32, %c0_33] : memref<1x18x18x1xf32, #tpu.memory_space<vmem>>, vector<1x16x16x1xf32>
    %47 = vector.shape_cast %46 : vector<1x16x16x1xf32> to vector<16x16x1xf32>
    %48 = vector.shape_cast %47 : vector<16x16x1xf32> to vector<256x1xf32>
    %c5 = arith.constant 5 : index
    %c0_34 = arith.constant 0 : index
    %c0_35 = arith.constant 0 : index
    %49 = vector.load %arg2[%c5, %c0_34, %c0_35] : memref<9x1x128xf32, #tpu.memory_space<vmem>>, vector<1x1x128xf32>
    %50 = vector.shape_cast %49 : vector<1x1x128xf32> to vector<1x128xf32>
    %51 = vector.broadcast %48 : vector<256x1xf32> to vector<256x128xf32>
    %52 = vector.broadcast %50 : vector<1x128xf32> to vector<256x128xf32>
    %53 = arith.mulf %51, %52 : vector<256x128xf32>
    %54 = arith.addf %45, %53 : vector<256x128xf32>
    %c0_36 = arith.constant 0 : index
    %c2_37 = arith.constant 2 : index
    %c0_38 = arith.constant 0 : index
    %c0_39 = arith.constant 0 : index
    %55 = vector.load %arg1[%c0_36, %c2_37, %c0_38, %c0_39] : memref<1x18x18x1xf32, #tpu.memory_space<vmem>>, vector<1x16x16x1xf32>
    %56 = vector.shape_cast %55 : vector<1x16x16x1xf32> to vector<16x16x1xf32>
    %57 = vector.shape_cast %56 : vector<16x16x1xf32> to vector<256x1xf32>
    %c6 = arith.constant 6 : index
    %c0_40 = arith.constant 0 : index
    %c0_41 = arith.constant 0 : index
    %58 = vector.load %arg2[%c6, %c0_40, %c0_41] : memref<9x1x128xf32, #tpu.memory_space<vmem>>, vector<1x1x128xf32>
    %59 = vector.shape_cast %58 : vector<1x1x128xf32> to vector<1x128xf32>
    %60 = vector.broadcast %57 : vector<256x1xf32> to vector<256x128xf32>
    %61 = vector.broadcast %59 : vector<1x128xf32> to vector<256x128xf32>
    %62 = arith.mulf %60, %61 : vector<256x128xf32>
    %63 = arith.addf %54, %62 : vector<256x128xf32>
    %c0_42 = arith.constant 0 : index
    %c2_43 = arith.constant 2 : index
    %c1_44 = arith.constant 1 : index
    %c0_45 = arith.constant 0 : index
    %64 = vector.load %arg1[%c0_42, %c2_43, %c1_44, %c0_45] : memref<1x18x18x1xf32, #tpu.memory_space<vmem>>, vector<1x16x16x1xf32>
    %65 = vector.shape_cast %64 : vector<1x16x16x1xf32> to vector<16x16x1xf32>
    %66 = vector.shape_cast %65 : vector<16x16x1xf32> to vector<256x1xf32>
    %c7 = arith.constant 7 : index
    %c0_46 = arith.constant 0 : index
    %c0_47 = arith.constant 0 : index
    %67 = vector.load %arg2[%c7, %c0_46, %c0_47] : memref<9x1x128xf32, #tpu.memory_space<vmem>>, vector<1x1x128xf32>
    %68 = vector.shape_cast %67 : vector<1x1x128xf32> to vector<1x128xf32>
    %69 = vector.broadcast %66 : vector<256x1xf32> to vector<256x128xf32>
    %70 = vector.broadcast %68 : vector<1x128xf32> to vector<256x128xf32>
    %71 = arith.mulf %69, %70 : vector<256x128xf32>
    %72 = arith.addf %63, %71 : vector<256x128xf32>
    %c0_48 = arith.constant 0 : index
    %c2_49 = arith.constant 2 : index
    %c2_50 = arith.constant 2 : index
    %c0_51 = arith.constant 0 : index
    %73 = vector.load %arg1[%c0_48, %c2_49, %c2_50, %c0_51] : memref<1x18x18x1xf32, #tpu.memory_space<vmem>>, vector<1x16x16x1xf32>
    %74 = vector.shape_cast %73 : vector<1x16x16x1xf32> to vector<16x16x1xf32>
    %75 = vector.shape_cast %74 : vector<16x16x1xf32> to vector<256x1xf32>
    %c8 = arith.constant 8 : index
    %c0_52 = arith.constant 0 : index
    %c0_53 = arith.constant 0 : index
    %76 = vector.load %arg2[%c8, %c0_52, %c0_53] : memref<9x1x128xf32, #tpu.memory_space<vmem>>, vector<1x1x128xf32>
    %77 = vector.shape_cast %76 : vector<1x1x128xf32> to vector<1x128xf32>
    %78 = vector.broadcast %75 : vector<256x1xf32> to vector<256x128xf32>
    %79 = vector.broadcast %77 : vector<1x128xf32> to vector<256x128xf32>
    %80 = arith.mulf %78, %79 : vector<256x128xf32>
    %81 = arith.addf %72, %80 : vector<256x128xf32>
    %c0_54 = arith.constant 0 : index
    %c0_55 = arith.constant 0 : index
    %82 = vector.load %arg3[%c0_54, %c0_55] : memref<256x256xf32, #tpu.memory_space<vmem>>, vector<256x256xf32>
    %cst_56 = arith.constant dense<0.000000e+00> : vector<256x128xf32>
    %83 = tpu.matmul %82, %81, %cst_56 {dimension_numbers = #tpu.dot_dimension_numbers<[1], [0], [0], [1], [0, 0, 1, 1], [], []>} : vector<256x256xf32>, vector<256x128xf32>, vector<256x128xf32> -> vector<256x128xf32>
    %84 = vector.extract_strided_slice %83 {offsets = [0, 0], sizes = [64, 128], strides = [1, 1]} : vector<256x128xf32> to vector<64x128xf32>
    %85 = vector.extract_strided_slice %83 {offsets = [64, 0], sizes = [64, 128], strides = [1, 1]} : vector<256x128xf32> to vector<64x128xf32>
    %86 = arith.maximumf %84, %85 : vector<64x128xf32>
    %87 = vector.extract_strided_slice %83 {offsets = [128, 0], sizes = [64, 128], strides = [1, 1]} : vector<256x128xf32> to vector<64x128xf32>
    %88 = vector.extract_strided_slice %83 {offsets = [192, 0], sizes = [64, 128], strides = [1, 1]} : vector<256x128xf32> to vector<64x128xf32>
    %89 = arith.maximumf %87, %88 : vector<64x128xf32>
    %90 = arith.maximumf %86, %89 : vector<64x128xf32>
    %c0_57 = arith.constant 0 : index
    %c0_58 = arith.constant 0 : index
    %91 = vector.load %arg4[%c0_57, %c0_58] : memref<1x128xf32, #tpu.memory_space<vmem>>, vector<1x128xf32>
    %92 = vector.broadcast %91 : vector<1x128xf32> to vector<64x128xf32>
    %93 = arith.addf %90, %92 : vector<64x128xf32>
    %cst_59 = arith.constant 0.000000e+00 : f32
    %94 = vector.broadcast %cst_59 : f32 to vector<64x128xf32>
    %95 = arith.maximumf %93, %94 : vector<64x128xf32>
    %c0_60 = arith.constant 0 : index
    %c0_61 = arith.constant 0 : index
    %c0_62 = arith.constant 0 : index
    %96 = vector.load %arg5[%c0_60, %c0_61, %c0_62] : memref<1x64x128xf32, #tpu.memory_space<vmem>>, vector<1x64x128xf32>
    %97 = vector.shape_cast %96 : vector<1x64x128xf32> to vector<64x128xf32>
    %98 = vector.shape_cast %95 : vector<64x128xf32> to vector<1x64x128xf32>
    tpu.vector_store %arg5[%c0_60, %c0_61, %c0_62], %98 {strides = array<i32>} : memref<1x64x128xf32, #tpu.memory_space<vmem>>, vector<1x64x128xf32>,
    return
  }
  func.func @transform_0(%arg0: i32) -> (i32, i32, i32, i32) {
    %c0_i32 = arith.constant 0 : i32
    %c0_i32_0 = arith.constant 0 : i32
    %c0_i32_1 = arith.constant 0 : i32
    %c0_i32_2 = arith.constant 0 : i32
    return %arg0, %c0_i32, %c0_i32_0, %c0_i32_1 : i32, i32, i32, i32
  }
  func.func @transform_1(%arg0: i32) -> (i32, i32, i32) {
    %c0_i32 = arith.constant 0 : i32
    %c0_i32_0 = arith.constant 0 : i32
    %c0_i32_1 = arith.constant 0 : i32
    %c0_i32_2 = arith.constant 0 : i32
    return %c0_i32, %c0_i32_0, %c0_i32_1 : i32, i32, i32
  }
  func.func @transform_2(%arg0: i32) -> (i32, i32) {
    %c0_i32 = arith.constant 0 : i32
    %c0_i32_0 = arith.constant 0 : i32
    %c0_i32_1 = arith.constant 0 : i32
    return %c0_i32, %c0_i32_0 : i32, i32
  }
  func.func @transform_3(%arg0: i32) -> (i32, i32) {
    %c0_i32 = arith.constant 0 : i32
    %c0_i32_0 = arith.constant 0 : i32
    %c0_i32_1 = arith.constant 0 : i32
    return %c0_i32, %c0_i32_0 : i32, i32
  }
  func.func @transform_4(%arg0: i32) -> (i32, i32, i32) {
    %c0_i32 = arith.constant 0 : i32
    %c0_i32_0 = arith.constant 0 : i32
    %c0_i32_1 = arith.constant 0 : i32
    return %arg0, %c0_i32, %c0_i32_0 : i32, i32, i32
  }
}

module attributes {stable_mosaic.version = 11 : i64} {
  func.func @_conv_bn_relu_gap_fc_kernel(%arg0: i32, %arg1: memref<1x4x4x64xf32, #tpu.memory_space<vmem>>, %arg2: memref<9x64x32xf32, #tpu.memory_space<vmem>>, %arg3: memref<1x32xf32, #tpu.memory_space<vmem>>, %arg4: memref<32x128xf32, #tpu.memory_space<vmem>>, %arg5: memref<1x128xf32, #tpu.memory_space<vmem>>, %arg6: memref<1x1x128xf32, #tpu.memory_space<vmem>>) attributes {dimension_semantics = [#tpu.dimension_semantics<parallel>], iteration_bounds = array<i64: 2>, scalar_prefetch = 0 : i64, scratch_operands = 0 : i64, tpu.core_type = #tpu.core_type<tc>, window_params = [{transform_indices = @transform_0, window_bounds = array<i64: 1, 4, 4, 64>}, {pipeline_mode = #tpu.pipeline_mode<synchronous>, transform_indices = @transform_1, window_bounds = array<i64: 9, 64, 32>}, {pipeline_mode = #tpu.pipeline_mode<synchronous>, transform_indices = @transform_2, window_bounds = array<i64: 1, 32>}, {pipeline_mode = #tpu.pipeline_mode<synchronous>, transform_indices = @transform_3, window_bounds = array<i64: 32, 128>}, {pipeline_mode = #tpu.pipeline_mode<synchronous>, transform_indices = @transform_4, window_bounds = array<i64: 1, 128>}, {transform_indices = @transform_5, window_bounds = array<i64: 1, 1, 128>}]} {
    %cst = arith.constant 0.000000e+00 : f32
    %0 = vector.broadcast %cst : f32 to vector<1x32xf32>
    %cst_0 = arith.constant 0.000000e+00 : f32
    %1 = vector.broadcast %cst_0 : f32 to vector<2x32xf32>
    %c0 = arith.constant 0 : index
    %c0_1 = arith.constant 0 : index
    %c0_2 = arith.constant 0 : index
    %c0_3 = arith.constant 0 : index
    %2 = vector.load %arg1[%c0, %c0_1, %c0_2, %c0_3] : memref<1x4x4x64xf32, #tpu.memory_space<vmem>>, vector<1x1x2x64xf32>
    %3 = vector.shape_cast %2 : vector<1x1x2x64xf32> to vector<2x64xf32>
    %c0_4 = arith.constant 0 : index
    %c0_5 = arith.constant 0 : index
    %c0_6 = arith.constant 0 : index
    %4 = vector.load %arg2[%c0_4, %c0_5, %c0_6] : memref<9x64x32xf32, #tpu.memory_space<vmem>>, vector<1x64x32xf32>
    %5 = vector.shape_cast %4 : vector<1x64x32xf32> to vector<64x32xf32>
    %cst_7 = arith.constant dense<0.000000e+00> : vector<2x32xf32>
    %6 = tpu.matmul %3, %5, %cst_7 {dimension_numbers = #tpu.dot_dimension_numbers<[1], [0], [0], [1], [0, 0, 1, 1], [], []>} : vector<2x64xf32>, vector<64x32xf32>, vector<2x32xf32> -> vector<2x32xf32>
    %7 = arith.addf %1, %6 : vector<2x32xf32>
    %c0_8 = arith.constant 0 : index
    %c0_9 = arith.constant 0 : index
    %c1 = arith.constant 1 : index
    %c0_10 = arith.constant 0 : index
    %8 = vector.load %arg1[%c0_8, %c0_9, %c1, %c0_10] : memref<1x4x4x64xf32, #tpu.memory_space<vmem>>, vector<1x1x2x64xf32>
    %9 = vector.shape_cast %8 : vector<1x1x2x64xf32> to vector<2x64xf32>
    %c1_11 = arith.constant 1 : index
    %c0_12 = arith.constant 0 : index
    %c0_13 = arith.constant 0 : index
    %10 = vector.load %arg2[%c1_11, %c0_12, %c0_13] : memref<9x64x32xf32, #tpu.memory_space<vmem>>, vector<1x64x32xf32>
    %11 = vector.shape_cast %10 : vector<1x64x32xf32> to vector<64x32xf32>
    %cst_14 = arith.constant dense<0.000000e+00> : vector<2x32xf32>
    %12 = tpu.matmul %9, %11, %cst_14 {dimension_numbers = #tpu.dot_dimension_numbers<[1], [0], [0], [1], [0, 0, 1, 1], [], []>} : vector<2x64xf32>, vector<64x32xf32>, vector<2x32xf32> -> vector<2x32xf32>
    %13 = arith.addf %7, %12 : vector<2x32xf32>
    %c0_15 = arith.constant 0 : index
    %c0_16 = arith.constant 0 : index
    %c2 = arith.constant 2 : index
    %c0_17 = arith.constant 0 : index
    %14 = vector.load %arg1[%c0_15, %c0_16, %c2, %c0_17] : memref<1x4x4x64xf32, #tpu.memory_space<vmem>>, vector<1x1x2x64xf32>
    %15 = vector.shape_cast %14 : vector<1x1x2x64xf32> to vector<2x64xf32>
    %c2_18 = arith.constant 2 : index
    %c0_19 = arith.constant 0 : index
    %c0_20 = arith.constant 0 : index
    %16 = vector.load %arg2[%c2_18, %c0_19, %c0_20] : memref<9x64x32xf32, #tpu.memory_space<vmem>>, vector<1x64x32xf32>
    %17 = vector.shape_cast %16 : vector<1x64x32xf32> to vector<64x32xf32>
    %cst_21 = arith.constant dense<0.000000e+00> : vector<2x32xf32>
    %18 = tpu.matmul %15, %17, %cst_21 {dimension_numbers = #tpu.dot_dimension_numbers<[1], [0], [0], [1], [0, 0, 1, 1], [], []>} : vector<2x64xf32>, vector<64x32xf32>, vector<2x32xf32> -> vector<2x32xf32>
    %19 = arith.addf %13, %18 : vector<2x32xf32>
    %c0_22 = arith.constant 0 : index
    %c1_23 = arith.constant 1 : index
    %c0_24 = arith.constant 0 : index
    %c0_25 = arith.constant 0 : index
    %20 = vector.load %arg1[%c0_22, %c1_23, %c0_24, %c0_25] : memref<1x4x4x64xf32, #tpu.memory_space<vmem>>, vector<1x1x2x64xf32>
    %21 = vector.shape_cast %20 : vector<1x1x2x64xf32> to vector<2x64xf32>
    %c3 = arith.constant 3 : index
    %c0_26 = arith.constant 0 : index
    %c0_27 = arith.constant 0 : index
    %22 = vector.load %arg2[%c3, %c0_26, %c0_27] : memref<9x64x32xf32, #tpu.memory_space<vmem>>, vector<1x64x32xf32>
    %23 = vector.shape_cast %22 : vector<1x64x32xf32> to vector<64x32xf32>
    %cst_28 = arith.constant dense<0.000000e+00> : vector<2x32xf32>
    %24 = tpu.matmul %21, %23, %cst_28 {dimension_numbers = #tpu.dot_dimension_numbers<[1], [0], [0], [1], [0, 0, 1, 1], [], []>} : vector<2x64xf32>, vector<64x32xf32>, vector<2x32xf32> -> vector<2x32xf32>
    %25 = arith.addf %19, %24 : vector<2x32xf32>
    %c0_29 = arith.constant 0 : index
    %c1_30 = arith.constant 1 : index
    %c1_31 = arith.constant 1 : index
    %c0_32 = arith.constant 0 : index
    %26 = vector.load %arg1[%c0_29, %c1_30, %c1_31, %c0_32] : memref<1x4x4x64xf32, #tpu.memory_space<vmem>>, vector<1x1x2x64xf32>
    %27 = vector.shape_cast %26 : vector<1x1x2x64xf32> to vector<2x64xf32>
    %c4 = arith.constant 4 : index
    %c0_33 = arith.constant 0 : index
    %c0_34 = arith.constant 0 : index
    %28 = vector.load %arg2[%c4, %c0_33, %c0_34] : memref<9x64x32xf32, #tpu.memory_space<vmem>>, vector<1x64x32xf32>
    %29 = vector.shape_cast %28 : vector<1x64x32xf32> to vector<64x32xf32>
    %cst_35 = arith.constant dense<0.000000e+00> : vector<2x32xf32>
    %30 = tpu.matmul %27, %29, %cst_35 {dimension_numbers = #tpu.dot_dimension_numbers<[1], [0], [0], [1], [0, 0, 1, 1], [], []>} : vector<2x64xf32>, vector<64x32xf32>, vector<2x32xf32> -> vector<2x32xf32>
    %31 = arith.addf %25, %30 : vector<2x32xf32>
    %c0_36 = arith.constant 0 : index
    %c1_37 = arith.constant 1 : index
    %c2_38 = arith.constant 2 : index
    %c0_39 = arith.constant 0 : index
    %32 = vector.load %arg1[%c0_36, %c1_37, %c2_38, %c0_39] : memref<1x4x4x64xf32, #tpu.memory_space<vmem>>, vector<1x1x2x64xf32>
    %33 = vector.shape_cast %32 : vector<1x1x2x64xf32> to vector<2x64xf32>
    %c5 = arith.constant 5 : index
    %c0_40 = arith.constant 0 : index
    %c0_41 = arith.constant 0 : index
    %34 = vector.load %arg2[%c5, %c0_40, %c0_41] : memref<9x64x32xf32, #tpu.memory_space<vmem>>, vector<1x64x32xf32>
    %35 = vector.shape_cast %34 : vector<1x64x32xf32> to vector<64x32xf32>
    %cst_42 = arith.constant dense<0.000000e+00> : vector<2x32xf32>
    %36 = tpu.matmul %33, %35, %cst_42 {dimension_numbers = #tpu.dot_dimension_numbers<[1], [0], [0], [1], [0, 0, 1, 1], [], []>} : vector<2x64xf32>, vector<64x32xf32>, vector<2x32xf32> -> vector<2x32xf32>
    %37 = arith.addf %31, %36 : vector<2x32xf32>
    %c0_43 = arith.constant 0 : index
    %c2_44 = arith.constant 2 : index
    %c0_45 = arith.constant 0 : index
    %c0_46 = arith.constant 0 : index
    %38 = vector.load %arg1[%c0_43, %c2_44, %c0_45, %c0_46] : memref<1x4x4x64xf32, #tpu.memory_space<vmem>>, vector<1x1x2x64xf32>
    %39 = vector.shape_cast %38 : vector<1x1x2x64xf32> to vector<2x64xf32>
    %c6 = arith.constant 6 : index
    %c0_47 = arith.constant 0 : index
    %c0_48 = arith.constant 0 : index
    %40 = vector.load %arg2[%c6, %c0_47, %c0_48] : memref<9x64x32xf32, #tpu.memory_space<vmem>>, vector<1x64x32xf32>
    %41 = vector.shape_cast %40 : vector<1x64x32xf32> to vector<64x32xf32>
    %cst_49 = arith.constant dense<0.000000e+00> : vector<2x32xf32>
    %42 = tpu.matmul %39, %41, %cst_49 {dimension_numbers = #tpu.dot_dimension_numbers<[1], [0], [0], [1], [0, 0, 1, 1], [], []>} : vector<2x64xf32>, vector<64x32xf32>, vector<2x32xf32> -> vector<2x32xf32>
    %43 = arith.addf %37, %42 : vector<2x32xf32>
    %c0_50 = arith.constant 0 : index
    %c2_51 = arith.constant 2 : index
    %c1_52 = arith.constant 1 : index
    %c0_53 = arith.constant 0 : index
    %44 = vector.load %arg1[%c0_50, %c2_51, %c1_52, %c0_53] : memref<1x4x4x64xf32, #tpu.memory_space<vmem>>, vector<1x1x2x64xf32>
    %45 = vector.shape_cast %44 : vector<1x1x2x64xf32> to vector<2x64xf32>
    %c7 = arith.constant 7 : index
    %c0_54 = arith.constant 0 : index
    %c0_55 = arith.constant 0 : index
    %46 = vector.load %arg2[%c7, %c0_54, %c0_55] : memref<9x64x32xf32, #tpu.memory_space<vmem>>, vector<1x64x32xf32>
    %47 = vector.shape_cast %46 : vector<1x64x32xf32> to vector<64x32xf32>
    %cst_56 = arith.constant dense<0.000000e+00> : vector<2x32xf32>
    %48 = tpu.matmul %45, %47, %cst_56 {dimension_numbers = #tpu.dot_dimension_numbers<[1], [0], [0], [1], [0, 0, 1, 1], [], []>} : vector<2x64xf32>, vector<64x32xf32>, vector<2x32xf32> -> vector<2x32xf32>
    %49 = arith.addf %43, %48 : vector<2x32xf32>
    %c0_57 = arith.constant 0 : index
    %c2_58 = arith.constant 2 : index
    %c2_59 = arith.constant 2 : index
    %c0_60 = arith.constant 0 : index
    %50 = vector.load %arg1[%c0_57, %c2_58, %c2_59, %c0_60] : memref<1x4x4x64xf32, #tpu.memory_space<vmem>>, vector<1x1x2x64xf32>
    %51 = vector.shape_cast %50 : vector<1x1x2x64xf32> to vector<2x64xf32>
    %c8 = arith.constant 8 : index
    %c0_61 = arith.constant 0 : index
    %c0_62 = arith.constant 0 : index
    %52 = vector.load %arg2[%c8, %c0_61, %c0_62] : memref<9x64x32xf32, #tpu.memory_space<vmem>>, vector<1x64x32xf32>
    %53 = vector.shape_cast %52 : vector<1x64x32xf32> to vector<64x32xf32>
    %cst_63 = arith.constant dense<0.000000e+00> : vector<2x32xf32>
    %54 = tpu.matmul %51, %53, %cst_63 {dimension_numbers = #tpu.dot_dimension_numbers<[1], [0], [0], [1], [0, 0, 1, 1], [], []>} : vector<2x64xf32>, vector<64x32xf32>, vector<2x32xf32> -> vector<2x32xf32>
    %55 = arith.addf %49, %54 : vector<2x32xf32>
    %c0_64 = arith.constant 0 : index
    %c0_65 = arith.constant 0 : index
    %56 = vector.load %arg3[%c0_64, %c0_65] : memref<1x32xf32, #tpu.memory_space<vmem>>, vector<1x32xf32>
    %57 = vector.broadcast %56 : vector<1x32xf32> to vector<2x32xf32>
    %58 = arith.addf %55, %57 : vector<2x32xf32>
    %cst_66 = arith.constant 0.000000e+00 : f32
    %59 = vector.broadcast %cst_66 : f32 to vector<2x32xf32>
    %60 = arith.maximumf %58, %59 : vector<2x32xf32>
    %cst_67 = arith.constant dense<0.000000e+00> : vector<32xf32>
    %61 = vector.multi_reduction <add>, %60, %cst_67 [0] : vector<2x32xf32> to vector<32xf32>
    %62 = vector.shape_cast %61 : vector<32xf32> to vector<1x32xf32>
    %63 = arith.addf %0, %62 : vector<1x32xf32>
    %cst_68 = arith.constant 0.000000e+00 : f32
    %64 = vector.broadcast %cst_68 : f32 to vector<2x32xf32>
    %c0_69 = arith.constant 0 : index
    %c1_70 = arith.constant 1 : index
    %c0_71 = arith.constant 0 : index
    %c0_72 = arith.constant 0 : index
    %65 = vector.load %arg1[%c0_69, %c1_70, %c0_71, %c0_72] : memref<1x4x4x64xf32, #tpu.memory_space<vmem>>, vector<1x1x2x64xf32>
    %66 = vector.shape_cast %65 : vector<1x1x2x64xf32> to vector<2x64xf32>
    %c0_73 = arith.constant 0 : index
    %c0_74 = arith.constant 0 : index
    %c0_75 = arith.constant 0 : index
    %67 = vector.load %arg2[%c0_73, %c0_74, %c0_75] : memref<9x64x32xf32, #tpu.memory_space<vmem>>, vector<1x64x32xf32>
    %68 = vector.shape_cast %67 : vector<1x64x32xf32> to vector<64x32xf32>
    %cst_76 = arith.constant dense<0.000000e+00> : vector<2x32xf32>
    %69 = tpu.matmul %66, %68, %cst_76 {dimension_numbers = #tpu.dot_dimension_numbers<[1], [0], [0], [1], [0, 0, 1, 1], [], []>} : vector<2x64xf32>, vector<64x32xf32>, vector<2x32xf32> -> vector<2x32xf32>
    %70 = arith.addf %64, %69 : vector<2x32xf32>
    %c0_77 = arith.constant 0 : index
    %c1_78 = arith.constant 1 : index
    %c1_79 = arith.constant 1 : index
    %c0_80 = arith.constant 0 : index
    %71 = vector.load %arg1[%c0_77, %c1_78, %c1_79, %c0_80] : memref<1x4x4x64xf32, #tpu.memory_space<vmem>>, vector<1x1x2x64xf32>
    %72 = vector.shape_cast %71 : vector<1x1x2x64xf32> to vector<2x64xf32>
    %c1_81 = arith.constant 1 : index
    %c0_82 = arith.constant 0 : index
    %c0_83 = arith.constant 0 : index
    %73 = vector.load %arg2[%c1_81, %c0_82, %c0_83] : memref<9x64x32xf32, #tpu.memory_space<vmem>>, vector<1x64x32xf32>
    %74 = vector.shape_cast %73 : vector<1x64x32xf32> to vector<64x32xf32>
    %cst_84 = arith.constant dense<0.000000e+00> : vector<2x32xf32>
    %75 = tpu.matmul %72, %74, %cst_84 {dimension_numbers = #tpu.dot_dimension_numbers<[1], [0], [0], [1], [0, 0, 1, 1], [], []>} : vector<2x64xf32>, vector<64x32xf32>, vector<2x32xf32> -> vector<2x32xf32>
    %76 = arith.addf %70, %75 : vector<2x32xf32>
    %c0_85 = arith.constant 0 : index
    %c1_86 = arith.constant 1 : index
    %c2_87 = arith.constant 2 : index
    %c0_88 = arith.constant 0 : index
    %77 = vector.load %arg1[%c0_85, %c1_86, %c2_87, %c0_88] : memref<1x4x4x64xf32, #tpu.memory_space<vmem>>, vector<1x1x2x64xf32>
    %78 = vector.shape_cast %77 : vector<1x1x2x64xf32> to vector<2x64xf32>
    %c2_89 = arith.constant 2 : index
    %c0_90 = arith.constant 0 : index
    %c0_91 = arith.constant 0 : index
    %79 = vector.load %arg2[%c2_89, %c0_90, %c0_91] : memref<9x64x32xf32, #tpu.memory_space<vmem>>, vector<1x64x32xf32>
    %80 = vector.shape_cast %79 : vector<1x64x32xf32> to vector<64x32xf32>
    %cst_92 = arith.constant dense<0.000000e+00> : vector<2x32xf32>
    %81 = tpu.matmul %78, %80, %cst_92 {dimension_numbers = #tpu.dot_dimension_numbers<[1], [0], [0], [1], [0, 0, 1, 1], [], []>} : vector<2x64xf32>, vector<64x32xf32>, vector<2x32xf32> -> vector<2x32xf32>
    %82 = arith.addf %76, %81 : vector<2x32xf32>
    %c0_93 = arith.constant 0 : index
    %c2_94 = arith.constant 2 : index
    %c0_95 = arith.constant 0 : index
    %c0_96 = arith.constant 0 : index
    %83 = vector.load %arg1[%c0_93, %c2_94, %c0_95, %c0_96] : memref<1x4x4x64xf32, #tpu.memory_space<vmem>>, vector<1x1x2x64xf32>
    %84 = vector.shape_cast %83 : vector<1x1x2x64xf32> to vector<2x64xf32>
    %c3_97 = arith.constant 3 : index
    %c0_98 = arith.constant 0 : index
    %c0_99 = arith.constant 0 : index
    %85 = vector.load %arg2[%c3_97, %c0_98, %c0_99] : memref<9x64x32xf32, #tpu.memory_space<vmem>>, vector<1x64x32xf32>
    %86 = vector.shape_cast %85 : vector<1x64x32xf32> to vector<64x32xf32>
    %cst_100 = arith.constant dense<0.000000e+00> : vector<2x32xf32>
    %87 = tpu.matmul %84, %86, %cst_100 {dimension_numbers = #tpu.dot_dimension_numbers<[1], [0], [0], [1], [0, 0, 1, 1], [], []>} : vector<2x64xf32>, vector<64x32xf32>, vector<2x32xf32> -> vector<2x32xf32>
    %88 = arith.addf %82, %87 : vector<2x32xf32>
    %c0_101 = arith.constant 0 : index
    %c2_102 = arith.constant 2 : index
    %c1_103 = arith.constant 1 : index
    %c0_104 = arith.constant 0 : index
    %89 = vector.load %arg1[%c0_101, %c2_102, %c1_103, %c0_104] : memref<1x4x4x64xf32, #tpu.memory_space<vmem>>, vector<1x1x2x64xf32>
    %90 = vector.shape_cast %89 : vector<1x1x2x64xf32> to vector<2x64xf32>
    %c4_105 = arith.constant 4 : index
    %c0_106 = arith.constant 0 : index
    %c0_107 = arith.constant 0 : index
    %91 = vector.load %arg2[%c4_105, %c0_106, %c0_107] : memref<9x64x32xf32, #tpu.memory_space<vmem>>, vector<1x64x32xf32>
    %92 = vector.shape_cast %91 : vector<1x64x32xf32> to vector<64x32xf32>
    %cst_108 = arith.constant dense<0.000000e+00> : vector<2x32xf32>
    %93 = tpu.matmul %90, %92, %cst_108 {dimension_numbers = #tpu.dot_dimension_numbers<[1], [0], [0], [1], [0, 0, 1, 1], [], []>} : vector<2x64xf32>, vector<64x32xf32>, vector<2x32xf32> -> vector<2x32xf32>
    %94 = arith.addf %88, %93 : vector<2x32xf32>
    %c0_109 = arith.constant 0 : index
    %c2_110 = arith.constant 2 : index
    %c2_111 = arith.constant 2 : index
    %c0_112 = arith.constant 0 : index
    %95 = vector.load %arg1[%c0_109, %c2_110, %c2_111, %c0_112] : memref<1x4x4x64xf32, #tpu.memory_space<vmem>>, vector<1x1x2x64xf32>
    %96 = vector.shape_cast %95 : vector<1x1x2x64xf32> to vector<2x64xf32>
    %c5_113 = arith.constant 5 : index
    %c0_114 = arith.constant 0 : index
    %c0_115 = arith.constant 0 : index
    %97 = vector.load %arg2[%c5_113, %c0_114, %c0_115] : memref<9x64x32xf32, #tpu.memory_space<vmem>>, vector<1x64x32xf32>
    %98 = vector.shape_cast %97 : vector<1x64x32xf32> to vector<64x32xf32>
    %cst_116 = arith.constant dense<0.000000e+00> : vector<2x32xf32>
    %99 = tpu.matmul %96, %98, %cst_116 {dimension_numbers = #tpu.dot_dimension_numbers<[1], [0], [0], [1], [0, 0, 1, 1], [], []>} : vector<2x64xf32>, vector<64x32xf32>, vector<2x32xf32> -> vector<2x32xf32>
    %100 = arith.addf %94, %99 : vector<2x32xf32>
    %c0_117 = arith.constant 0 : index
    %c3_118 = arith.constant 3 : index
    %c0_119 = arith.constant 0 : index
    %c0_120 = arith.constant 0 : index
    %101 = vector.load %arg1[%c0_117, %c3_118, %c0_119, %c0_120] : memref<1x4x4x64xf32, #tpu.memory_space<vmem>>, vector<1x1x2x64xf32>
    %102 = vector.shape_cast %101 : vector<1x1x2x64xf32> to vector<2x64xf32>
    %c6_121 = arith.constant 6 : index
    %c0_122 = arith.constant 0 : index
    %c0_123 = arith.constant 0 : index
    %103 = vector.load %arg2[%c6_121, %c0_122, %c0_123] : memref<9x64x32xf32, #tpu.memory_space<vmem>>, vector<1x64x32xf32>
    %104 = vector.shape_cast %103 : vector<1x64x32xf32> to vector<64x32xf32>
    %cst_124 = arith.constant dense<0.000000e+00> : vector<2x32xf32>
    %105 = tpu.matmul %102, %104, %cst_124 {dimension_numbers = #tpu.dot_dimension_numbers<[1], [0], [0], [1], [0, 0, 1, 1], [], []>} : vector<2x64xf32>, vector<64x32xf32>, vector<2x32xf32> -> vector<2x32xf32>
    %106 = arith.addf %100, %105 : vector<2x32xf32>
    %c0_125 = arith.constant 0 : index
    %c3_126 = arith.constant 3 : index
    %c1_127 = arith.constant 1 : index
    %c0_128 = arith.constant 0 : index
    %107 = vector.load %arg1[%c0_125, %c3_126, %c1_127, %c0_128] : memref<1x4x4x64xf32, #tpu.memory_space<vmem>>, vector<1x1x2x64xf32>
    %108 = vector.shape_cast %107 : vector<1x1x2x64xf32> to vector<2x64xf32>
    %c7_129 = arith.constant 7 : index
    %c0_130 = arith.constant 0 : index
    %c0_131 = arith.constant 0 : index
    %109 = vector.load %arg2[%c7_129, %c0_130, %c0_131] : memref<9x64x32xf32, #tpu.memory_space<vmem>>, vector<1x64x32xf32>
    %110 = vector.shape_cast %109 : vector<1x64x32xf32> to vector<64x32xf32>
    %cst_132 = arith.constant dense<0.000000e+00> : vector<2x32xf32>
    %111 = tpu.matmul %108, %110, %cst_132 {dimension_numbers = #tpu.dot_dimension_numbers<[1], [0], [0], [1], [0, 0, 1, 1], [], []>} : vector<2x64xf32>, vector<64x32xf32>, vector<2x32xf32> -> vector<2x32xf32>
    %112 = arith.addf %106, %111 : vector<2x32xf32>
    %c0_133 = arith.constant 0 : index
    %c3_134 = arith.constant 3 : index
    %c2_135 = arith.constant 2 : index
    %c0_136 = arith.constant 0 : index
    %113 = vector.load %arg1[%c0_133, %c3_134, %c2_135, %c0_136] : memref<1x4x4x64xf32, #tpu.memory_space<vmem>>, vector<1x1x2x64xf32>
    %114 = vector.shape_cast %113 : vector<1x1x2x64xf32> to vector<2x64xf32>
    %c8_137 = arith.constant 8 : index
    %c0_138 = arith.constant 0 : index
    %c0_139 = arith.constant 0 : index
    %115 = vector.load %arg2[%c8_137, %c0_138, %c0_139] : memref<9x64x32xf32, #tpu.memory_space<vmem>>, vector<1x64x32xf32>
    %116 = vector.shape_cast %115 : vector<1x64x32xf32> to vector<64x32xf32>
    %cst_140 = arith.constant dense<0.000000e+00> : vector<2x32xf32>
    %117 = tpu.matmul %114, %116, %cst_140 {dimension_numbers = #tpu.dot_dimension_numbers<[1], [0], [0], [1], [0, 0, 1, 1], [], []>} : vector<2x64xf32>, vector<64x32xf32>, vector<2x32xf32> -> vector<2x32xf32>
    %118 = arith.addf %112, %117 : vector<2x32xf32>
    %c0_141 = arith.constant 0 : index
    %c0_142 = arith.constant 0 : index
    %119 = vector.load %arg3[%c0_141, %c0_142] : memref<1x32xf32, #tpu.memory_space<vmem>>, vector<1x32xf32>
    %120 = vector.broadcast %119 : vector<1x32xf32> to vector<2x32xf32>
    %121 = arith.addf %118, %120 : vector<2x32xf32>
    %cst_143 = arith.constant 0.000000e+00 : f32
    %122 = vector.broadcast %cst_143 : f32 to vector<2x32xf32>
    %123 = arith.maximumf %121, %122 : vector<2x32xf32>
    %cst_144 = arith.constant dense<0.000000e+00> : vector<32xf32>
    %124 = vector.multi_reduction <add>, %123, %cst_144 [0] : vector<2x32xf32> to vector<32xf32>
    %125 = vector.shape_cast %124 : vector<32xf32> to vector<1x32xf32>
    %126 = arith.addf %63, %125 : vector<1x32xf32>
    %cst_145 = arith.constant 2.500000e-01 : f32
    %127 = vector.broadcast %cst_145 : f32 to vector<1x32xf32>
    %128 = arith.mulf %126, %127 : vector<1x32xf32>
    %c0_146 = arith.constant 0 : index
    %c0_147 = arith.constant 0 : index
    %129 = vector.load %arg4[%c0_146, %c0_147] : memref<32x128xf32, #tpu.memory_space<vmem>>, vector<32x128xf32>
    %cst_148 = arith.constant dense<0.000000e+00> : vector<1x128xf32>
    %130 = tpu.matmul %128, %129, %cst_148 {dimension_numbers = #tpu.dot_dimension_numbers<[1], [0], [0], [1], [0, 0, 1, 1], [], []>} : vector<1x32xf32>, vector<32x128xf32>, vector<1x128xf32> -> vector<1x128xf32>
    %c0_149 = arith.constant 0 : index
    %c0_150 = arith.constant 0 : index
    %131 = vector.load %arg5[%c0_149, %c0_150] : memref<1x128xf32, #tpu.memory_space<vmem>>, vector<1x128xf32>
    %132 = arith.addf %130, %131 : vector<1x128xf32>
    %c0_151 = arith.constant 0 : index
    %c0_152 = arith.constant 0 : index
    %c0_153 = arith.constant 0 : index
    %133 = vector.load %arg6[%c0_151, %c0_152, %c0_153] : memref<1x1x128xf32, #tpu.memory_space<vmem>>, vector<1x1x128xf32>
    %134 = vector.shape_cast %133 : vector<1x1x128xf32> to vector<1x128xf32>
    %135 = vector.shape_cast %132 : vector<1x128xf32> to vector<1x1x128xf32>
    tpu.vector_store %arg6[%c0_151, %c0_152, %c0_153], %135 {strides = array<i32>} : memref<1x1x128xf32, #tpu.memory_space<vmem>>, vector<1x1x128xf32>,
    return
  }
  func.func @transform_0(%arg0: i32) -> (i32, i32, i32, i32) {
    %c0_i32 = arith.constant 0 : i32
    %c0_i32_0 = arith.constant 0 : i32
    %c0_i32_1 = arith.constant 0 : i32
    %c0_i32_2 = arith.constant 0 : i32
    return %arg0, %c0_i32, %c0_i32_0, %c0_i32_1 : i32, i32, i32, i32
  }
  func.func @transform_1(%arg0: i32) -> (i32, i32, i32) {
    %c0_i32 = arith.constant 0 : i32
    %c0_i32_0 = arith.constant 0 : i32
    %c0_i32_1 = arith.constant 0 : i32
    %c0_i32_2 = arith.constant 0 : i32
    return %c0_i32, %c0_i32_0, %c0_i32_1 : i32, i32, i32
  }
  func.func @transform_2(%arg0: i32) -> (i32, i32) {
    %c0_i32 = arith.constant 0 : i32
    %c0_i32_0 = arith.constant 0 : i32
    %c0_i32_1 = arith.constant 0 : i32
    return %c0_i32, %c0_i32_0 : i32, i32
  }
  func.func @transform_3(%arg0: i32) -> (i32, i32) {
    %c0_i32 = arith.constant 0 : i32
    %c0_i32_0 = arith.constant 0 : i32
    %c0_i32_1 = arith.constant 0 : i32
    return %c0_i32, %c0_i32_0 : i32, i32
  }
  func.func @transform_4(%arg0: i32) -> (i32, i32) {
    %c0_i32 = arith.constant 0 : i32
    %c0_i32_0 = arith.constant 0 : i32
    %c0_i32_1 = arith.constant 0 : i32
    return %c0_i32, %c0_i32_0 : i32, i32
  }
  func.func @transform_5(%arg0: i32) -> (i32, i32, i32) {
    %c0_i32 = arith.constant 0 : i32
    %c0_i32_0 = arith.constant 0 : i32
    %c0_i32_1 = arith.constant 0 : i32
    return %arg0, %c0_i32, %c0_i32_0 : i32, i32, i32
  }
}

</mosaic_0001>

<llo_original>
// kernel: asl_forward.4
$region0: #{asl_forward.4}
  #allocation0 [shape = 'u32[]', space=smem, size = 0x4, offset = 0x4, fixed_abs, tag = 'smem constant byte address 0x4 - core index']
  #allocation1 [shape = 'u32[72,128]{1,0:T(1,128)}', space=vmem, size = 0x9000, scoped, tag = 'internal scratch']
  %s0 = inlined_call_operand.vmem [shape: f32[2,10,10,128], index: 0, kind: input, shape index: {}]
  %s1 = inlined_call_operand.vmem [shape: f32[9,128,64], index: 1, kind: input, shape index: {}]
  %s2 = inlined_call_operand.vmem [shape: f32[64,64], index: 2, kind: input, shape index: {}]
  %s3 = inlined_call_operand.vmem [shape: f32[1,64], index: 3, kind: input, shape index: {}]
  %s4 = inlined_call_operand.vmem [shape: f32[2,16,64], index: 4, kind: output, shape index: {}]
  %s5 = sld [smem:[#allocation0]]
  $region49: #{asl_forward.4} parent=0
    _
  %s7 = ssub.s32 1, %s5
  %s8 = scalar_select 0, %s7, %s5
  loop: start=0, step=1, limit=4
  $region2: #{asl_forward.4} parent=0 // loop_pre_header
    _
  $region3: #{asl_forward.4} parent=0 // loop_header
    %s10 = sphi 0, %s14
    %p11 = scmp.ge.s32.totalorder %s10, 4
    %s20 = sphi 0, %s22
    %s23 = sphi 0, %s20
    %s24 = sphi 0, %s23
    %s40 = sphi 0, %s24
    %s44 = sphi 0, %s44
    %s46 = sphi 0, %s44
    %s47 = sphi 0, %s46
    %s61 = sphi 0, %s47
    %s65 = sphi 0, %s65
    %s67 = sphi 0, %s65
    %s68 = sphi 0, %s67
    %s82 = sphi 0, %s68
    %s86 = sphi 0, %s86
    %s88 = sphi 0, %s86
    %s89 = sphi 0, %s88
    %s103 = sphi 0, %s89
    %s109 = sphi 0, %s111
    %s112 = sphi 0, %s109
    %s113 = sphi 0, %s112
    %s129 = sphi 0, %s113
  $region4: #{asl_forward.4} parent=0 // loop_header_branch
    %13 = sbr.rel (%p11) target = $region8
  $region5: #{asl_forward.4} parent=0 // loop_body
    %s15 = ssub.s32 %s10, 1
    %s16 = ssub.s32 %s10, 2
    %s17 = sadd.s32 %s10, 1
    %s18 = ssub.s32 %s10, %s17
    %p19 = scmp.eq.s32.totalorder %s18, 0
    %s21 = sadd.s32 %s20, 1
    %s22 = scalar_select %p19, %s20, %s21
    %p25 = pneg %p19
    %p26 = scmp.eq.s32.totalorder %s10, 1
    %p27 = por %p25, %p26
    %p28 = scmp.ne.s32.totalorder %s20, %s23
    %p29 = scmp.eq.s32.totalorder %s10, 0
    %p30 = por %p28, %p29
    %p31 = scmp.ne.s32.totalorder %s20, %s23
    %p32 = scmp.eq.s32.totalorder %s15, 1
    %p33 = por %p31, %p32
    %p34 = scmp.ne.s32.totalorder %s23, %s24
    %p35 = scmp.eq.s32.totalorder %s15, 0
    %p36 = por %p34, %p35
    %p37 = scmp.ne.s32.totalorder %s23, %s24
    %p38 = scmp.eq.s32.totalorder %s16, 1
    %p39 = por %p37, %p38
    %p41 = scmp.ne.s32.totalorder %s24, %s40
    %p42 = scmp.eq.s32.totalorder %s16, 0
    %p43 = por %p41, %p42
    %s45 = sadd.s32 %s44, 1
    %p48 = scmp.eq.s32.totalorder %s10, 1
    %p49 = scmp.ne.s32.totalorder %s44, %s46
    %p50 = scmp.eq.s32.totalorder %s10, 0
    %p51 = por %p49, %p50
    %p52 = scmp.ne.s32.totalorder %s44, %s46
    %p53 = scmp.eq.s32.totalorder %s15, 1
    %p54 = por %p52, %p53
    %p55 = scmp.ne.s32.totalorder %s46, %s47
    %p56 = scmp.eq.s32.totalorder %s15, 0
    %p57 = por %p55, %p56
    %p58 = scmp.ne.s32.totalorder %s46, %s47
    %p59 = scmp.eq.s32.totalorder %s16, 1
    %p60 = por %p58, %p59
    %p62 = scmp.ne.s32.totalorder %s47, %s61
    %p63 = scmp.eq.s32.totalorder %s16, 0
    %p64 = por %p62, %p63
    %s66 = sadd.s32 %s65, 1
    %p69 = scmp.eq.s32.totalorder %s10, 1
    %p70 = scmp.ne.s32.totalorder %s65, %s67
    %p71 = scmp.eq.s32.totalorder %s10, 0
    %p72 = por %p70, %p71
    %p73 = scmp.ne.s32.totalorder %s65, %s67
    %p74 = scmp.eq.s32.totalorder %s15, 1
    %p75 = por %p73, %p74
    %p76 = scmp.ne.s32.totalorder %s67, %s68
    %p77 = scmp.eq.s32.totalorder %s15, 0
    %p78 = por %p76, %p77
    %p79 = scmp.ne.s32.totalorder %s67, %s68
    %p80 = scmp.eq.s32.totalorder %s16, 1
    %p81 = por %p79, %p80
    %p83 = scmp.ne.s32.totalorder %s68, %s82
    %p84 = scmp.eq.s32.totalorder %s16, 0
    %p85 = por %p83, %p84
    %s87 = sadd.s32 %s86, 1
    %p90 = scmp.eq.s32.totalorder %s10, 1
    %p91 = scmp.ne.s32.totalorder %s86, %s88
    %p92 = scmp.eq.s32.totalorder %s10, 0
    %p93 = por %p91, %p92
    %p94 = scmp.ne.s32.totalorder %s86, %s88
    %p95 = scmp.eq.s32.totalorder %s15, 1
    %p96 = por %p94, %p95
    %p97 = scmp.ne.s32.totalorder %s88, %s89
    %p98 = scmp.eq.s32.totalorder %s15, 0
    %p99 = por %p97, %p98
    %p100 = scmp.ne.s32.totalorder %s88, %s89
    %p101 = scmp.eq.s32.totalorder %s16, 1
    %p102 = por %p100, %p101
    %p104 = scmp.ne.s32.totalorder %s89, %s103
    %p105 = scmp.eq.s32.totalorder %s16, 0
    %p106 = por %p104, %p105
    %s107 = ssub.s32 %s10, %s17
    %p108 = scmp.eq.s32.totalorder %s107, 0
    %s110 = sadd.s32 %s109, 1
    %s111 = scalar_select %p108, %s109, %s110
    %p114 = pneg %p108
    %p115 = scmp.eq.s32.totalorder %s10, 1
    %p116 = por %p114, %p115
    %p117 = scmp.ne.s32.totalorder %s109, %s112
    %p118 = scmp.eq.s32.totalorder %s10, 0
    %p119 = por %p117, %p118
    %p120 = scmp.ne.s32.totalorder %s109, %s112
    %p121 = scmp.eq.s32.totalorder %s15, 1
    %p122 = por %p120, %p121
    %p123 = scmp.ne.s32.totalorder %s112, %s113
    %p124 = scmp.eq.s32.totalorder %s15, 0
    %p125 = por %p123, %p124
    %p126 = scmp.ne.s32.totalorder %s112, %s113
    %p127 = scmp.eq.s32.totalorder %s16, 1
    %p128 = por %p126, %p127
    %p130 = scmp.ne.s32.totalorder %s113, %s129
    %p131 = scmp.eq.s32.totalorder %s16, 0
    %p132 = por %p130, %p131
    %p133 = scmp.le.s32.totalorder 1, %s10
    %p134 = scmp.lt.s32.totalorder %s10, 3
    %p135 = pnand %p133, %p134
    %p136 = pneg %p135
    // Predicated region
    $region9: #{asl_forward.4} parent=5 // pred_check
      _
    $region10: #{asl_forward.4} parent=5 // pred_check_branch
      %138 = sbr.rel (%p135) target = $region12
    $region11: #{asl_forward.4} parent=5 // pred_region
      %s139 = ssub.s32 %s10, 1
      // Predicated region
      $region13: #{asl_forward.4} parent=11 // pred_check
        %p140 = pneg %p57
      $region14: #{asl_forward.4} parent=11 // pred_check_branch
        %142 = sbr.rel (%p140) target = $region16
      $region15: #{asl_forward.4} parent=11 // pred_region
        _
      $region16: #{asl_forward.4} parent=11 // pred_fallthru
        _
      // Predicated region
      $region17: #{asl_forward.4} parent=11 // pred_check
        %p143 = pneg %p78
      $region18: #{asl_forward.4} parent=11 // pred_check_branch
        %145 = sbr.rel (%p143) target = $region20
      $region19: #{asl_forward.4} parent=11 // pred_region
        _
      $region20: #{asl_forward.4} parent=11 // pred_fallthru
        _
      // Predicated region
      $region21: #{asl_forward.4} parent=11 // pred_check
        %p146 = pneg %p99
      $region22: #{asl_forward.4} parent=11 // pred_check_branch
        %148 = sbr.rel (%p146) target = $region24
      $region23: #{asl_forward.4} parent=11 // pred_region
        _
      $region24: #{asl_forward.4} parent=11 // pred_fallthru
        _
    $region12: #{asl_forward.4} parent=5 // pred_fallthru
      _
    %p149 = scmp.lt.s32.totalorder %s10, 2
    // Predicated region
    $region25: #{asl_forward.4} parent=5 // pred_check
      %p150 = pneg %p149
    $region26: #{asl_forward.4} parent=5 // pred_check_branch
      %152 = sbr.rel (%p150) target = $region28
    $region27: #{asl_forward.4} parent=5 // pred_region
      // Predicated region
      $region29: #{asl_forward.4} parent=27 // pred_check
        %p153 = pneg %p30
      $region30: #{asl_forward.4} parent=27 // pred_check_branch
        %155 = sbr.rel (%p153) target = $region32
      $region31: #{asl_forward.4} parent=27 // pred_region
        %p156 = scmp.lt.s32.totalorder %s10, 1
        %s157 = scalar_select %p156, %s10, 1
        %s158 = smul.addr %s157, 20
        %s159 = smul.addr %s158, 8
        %s160 = scalar_lea.vmem %s0, %s159
      $region32: #{asl_forward.4} parent=27 // pred_fallthru
        _
    $region28: #{asl_forward.4} parent=5 // pred_fallthru
      _
    %p161 = scmp.le.s32.totalorder 1, %s10
    %p162 = scmp.lt.s32.totalorder %s10, 3
    %p163 = pnand %p161, %p162
    %p164 = pneg %p163
    // Predicated region
    $region33: #{asl_forward.4} parent=5 // pred_check
      _
    $region34: #{asl_forward.4} parent=5 // pred_check_branch
      %166 = sbr.rel (%p163) target = $region36
    $region35: #{asl_forward.4} parent=5 // pred_region
      %s167 = ssub.s32 %s10, 1
      %p168 = scmp.lt.s32.totalorder %s15, 1
      %s169 = scalar_select %p168, %s15, 1
      %s170 = smul.addr %s169, 20
      %s171 = smul.addr %s170, 8
      %s172 = scalar_lea.vmem %s0, %s171
      %p173 = pneg %p36
      %p174 = pneg %p33
      %p175 = pneg %p57
      %p176 = pneg %p54
      %p177 = pneg %p78
      %p178 = pneg %p75
      %p179 = pneg %p99
      %p180 = pneg %p96
      %p181 = pneg %p125
      %p182 = pneg %p122
      %p183 = scmp.lt.s32.totalorder %s15, 1
      %s184 = scalar_select %p183, %s15, 1
      %s185 = smul.addr %s184, 2
      %s186 = smul.addr %s185, 8
      %s187 = scalar_lea.vmem %s4, %s186
      %p188 = scmp.lt.s32.totalorder %s15, 1
      %s189 = scalar_select %p188, %s15, 1
      %s190 = smul.addr %s189, 20
      %s191 = smul.addr %s190, 8
      %s192 = scalar_lea.vmem %s0, %s191
      %p193 = scmp.lt.s32.totalorder %s15, 1
      %s194 = scalar_select %p193, %s15, 1
      %s195 = smul.addr %s194, 2
      %s196 = smul.addr %s195, 8
      %s197 = scalar_lea.vmem %s4, %s196
      %v198 = vld [vmem:[%s192] sm:$0xff]
      %v199 = vld [vmem:[%s192 + $0x10] sm:$0xff]
      %v200 = vld [vmem:[%s192 + $0x20] sm:$0xff]
      %v201 = vld [vmem:[%s192 + $0x30] sm:$0xff]
      %v202 = vld [vmem:[%s192 + $0x40] sm:$0xff]
      %v203 = vld [vmem:[%s192 + $0x50] sm:$0xff]
      %v204 = vld [vmem:[%s192 + $0x60] sm:$0xff]
      %v205 = vld [vmem:[%s192 + $0x70] sm:$0xff]
      %v206 = vld [vmem:[%s1] sm:$0xff]
      %v207 = vld [vmem:[%s1 + $0x8] sm:$0xff]
      %v208 = vld [vmem:[%s1 + $0x10] sm:$0xff]
      %v209 = vld [vmem:[%s1 + $0x18] sm:$0xff]
      %v210 = vld [vmem:[%s1 + $0x20] sm:$0xff]
      %v211 = vld [vmem:[%s1 + $0x28] sm:$0xff]
      %v212 = vld [vmem:[%s1 + $0x30] sm:$0xff]
      %v213 = vld [vmem:[%s1 + $0x38] sm:$0xff]
      %v214 = vld [vmem:[%s1 + $0x40] sm:$0xff]
      %v215 = vld [vmem:[%s1 + $0x48] sm:$0xff]
      %v216 = vld [vmem:[%s1 + $0x50] sm:$0xff]
      %v217 = vld [vmem:[%s1 + $0x58] sm:$0xff]
      %v218 = vld [vmem:[%s1 + $0x60] sm:$0xff]
      %v219 = vld [vmem:[%s1 + $0x68] sm:$0xff]
      %v220 = vld [vmem:[%s1 + $0x70] sm:$0xff]
      %v221 = vld [vmem:[%s1 + $0x78] sm:$0xff]
      %v222 = vld [vmem:[%s192 + $0x1] sm:$0xff]
      %v223 = vld [vmem:[%s192 + $0x11] sm:$0xff]
      %v224 = vld [vmem:[%s192 + $0x21] sm:$0xff]
      %v225 = vld [vmem:[%s192 + $0x31] sm:$0xff]
      %v226 = vld [vmem:[%s192 + $0x41] sm:$0xff]
      %v227 = vld [vmem:[%s192 + $0x51] sm:$0xff]
      %v228 = vld [vmem:[%s192 + $0x61] sm:$0xff]
      %v229 = vld [vmem:[%s192 + $0x71] sm:$0xff]
      %s230 = scalar_lea.vmem %s1, 128
      %v231 = vld [vmem:[%s230] sm:$0xff]
      %v232 = vld [vmem:[%s230 + $0x8] sm:$0xff]
      %v233 = vld [vmem:[%s230 + $0x10] sm:$0xff]
      %v234 = vld [vmem:[%s230 + $0x18] sm:$0xff]
      %v235 = vld [vmem:[%s230 + $0x20] sm:$0xff]
      %v236 = vld [vmem:[%s230 + $0x28] sm:$0xff]
      %v237 = vld [vmem:[%s230 + $0x30] sm:$0xff]
      %v238 = vld [vmem:[%s230 + $0x38] sm:$0xff]
      %v239 = vld [vmem:[%s230 + $0x40] sm:$0xff]
      %v240 = vld [vmem:[%s230 + $0x48] sm:$0xff]
      %v241 = vld [vmem:[%s230 + $0x50] sm:$0xff]
      %v242 = vld [vmem:[%s230 + $0x58] sm:$0xff]
      %v243 = vld [vmem:[%s230 + $0x60] sm:$0xff]
      %v244 = vld [vmem:[%s230 + $0x68] sm:$0xff]
      %v245 = vld [vmem:[%s230 + $0x70] sm:$0xff]
      %v246 = vld [vmem:[%s230 + $0x78] sm:$0xff]
      %247 = vmatpush.msra.mxu0 %v246
      %248 = vmatpush.msra.mxu0 %v245
      %249 = vmatpush.msra.mxu0 %v244
      %250 = vmatpush.msra.mxu0 %v243
      %251 = vmatpush.msra.mxu0 %v242
      %252 = vmatpush.msra.mxu0 %v241
      %253 = vmatpush.msra.mxu0 %v240
      %254 = vmatpush.msra.mxu0 %v239
      %255 = vmatpush.msra.mxu0 %v238
      %256 = vmatpush.msra.mxu0 %v237
      %257 = vmatpush.msra.mxu0 %v236
      %258 = vmatpush.msra.mxu0 %v235
      %259 = vmatpush.msra.mxu0 %v234
      %260 = vmatpush.msra.mxu0 %v233
      %261 = vmatpush.msra.mxu0 %v232
      %262 = vmatpush.msra.mxu0 %v231
      %263 = vmatmul.f32.gmra.mxu0 %v222
      %v264 = vpop.f32.mrf.mxu0
      %v265 = vadd.f32 0.0, %v264
      %266 = vmatmul.f32.gmra.mxu0 %v223
      %v267 = vpop.f32.mrf.mxu0
      %v268 = vadd.f32 0.0, %v267
      %269 = vmatmul.f32.gmra.mxu0 %v224
      %v270 = vpop.f32.mrf.mxu0
      %v271 = vadd.f32 0.0, %v270
      %272 = vmatmul.f32.gmra.mxu0 %v225
      %v273 = vpop.f32.mrf.mxu0
      %v274 = vadd.f32 0.0, %v273
      %275 = vmatmul.f32.gmra.mxu0 %v226
      %v276 = vpop.f32.mrf.mxu0
      %v277 = vadd.f32 0.0, %v276
      %278 = vmatmul.f32.gmra.mxu0 %v227
      %v279 = vpop.f32.mrf.mxu0
      %v280 = vadd.f32 0.0, %v279
      %281 = vmatmul.f32.gmra.mxu0 %v228
      %v282 = vpop.f32.mrf.mxu0
      %v283 = vadd.f32 0.0, %v282
      %284 = vmatmul.f32.gmra.mxu0 %v229
      %v285 = vpop.f32.mrf.mxu0
      %v286 = vadd.f32 0.0, %v285
      %287 = vdwg.mxu0
      %288 = vmatpush.msra.mxu0 %v221
      %289 = vmatpush.msra.mxu0 %v220
      %290 = vmatpush.msra.mxu0 %v219
      %291 = vmatpush.msra.mxu0 %v218
      %292 = vmatpush.msra.mxu0 %v217
      %293 = vmatpush.msra.mxu0 %v216
      %294 = vmatpush.msra.mxu0 %v215
      %295 = vmatpush.msra.mxu0 %v214
      %296 = vmatpush.msra.mxu0 %v213
      %297 = vmatpush.msra.mxu0 %v212
      %298 = vmatpush.msra.mxu0 %v211
      %299 = vmatpush.msra.mxu0 %v210
      %300 = vmatpush.msra.mxu0 %v209
      %301 = vmatpush.msra.mxu0 %v208
      %302 = vmatpush.msra.mxu0 %v207
      %303 = vmatpush.msra.mxu0 %v206
      %304 = vmatmul.f32.gmra.mxu0 %v198
      %v305 = vpop.f32.mrf.mxu0
      %v306 = vadd.f32 %v265, %v305
      %307 = vmatmul.f32.gmra.mxu0 %v199
      %v308 = vpop.f32.mrf.mxu0
      %v309 = vadd.f32 %v268, %v308
      %310 = vmatmul.f32.gmra.mxu0 %v200
      %v311 = vpop.f32.mrf.mxu0
      %v312 = vadd.f32 %v271, %v311
      %313 = vmatmul.f32.gmra.mxu0 %v201
      %v314 = vpop.f32.mrf.mxu0
      %v315 = vadd.f32 %v274, %v314
      %316 = vmatmul.f32.gmra.mxu0 %v202
      %v317 = vpop.f32.mrf.mxu0
      %v318 = vadd.f32 %v277, %v317
      %319 = vmatmul.f32.gmra.mxu0 %v203
      %v320 = vpop.f32.mrf.mxu0
      %v321 = vadd.f32 %v280, %v320
      %322 = vmatmul.f32.gmra.mxu0 %v204
      %v323 = vpop.f32.mrf.mxu0
      %v324 = vadd.f32 %v283, %v323
      %325 = vmatmul.f32.gmra.mxu0 %v205
      %v326 = vpop.f32.mrf.mxu0
      %v327 = vadd.f32 %v286, %v326
      %328 = vdwg.mxu0
      %v329 = vld [vmem:[%s192 + $0x2] sm:$0xff]
      %v330 = vld [vmem:[%s192 + $0x12] sm:$0xff]
      %v331 = vld [vmem:[%s192 + $0x22] sm:$0xff]
      %v332 = vld [vmem:[%s192 + $0x32] sm:$0xff]
      %v333 = vld [vmem:[%s192 + $0x42] sm:$0xff]
      %v334 = vld [vmem:[%s192 + $0x52] sm:$0xff]
      %v335 = vld [vmem:[%s192 + $0x62] sm:$0xff]
      %v336 = vld [vmem:[%s192 + $0x72] sm:$0xff]
      %s337 = scalar_lea.vmem %s1, 256
      %v338 = vld [vmem:[%s337] sm:$0xff]
      %v339 = vld [vmem:[%s337 + $0x8] sm:$0xff]
      %v340 = vld [vmem:[%s337 + $0x10] sm:$0xff]
      %v341 = vld [vmem:[%s337 + $0x18] sm:$0xff]
      %v342 = vld [vmem:[%s337 + $0x20] sm:$0xff]
      %v343 = vld [vmem:[%s337 + $0x28] sm:$0xff]
      %v344 = vld [vmem:[%s337 + $0x30] sm:$0xff]
      %v345 = vld [vmem:[%s337 + $0x38] sm:$0xff]
      %v346 = vld [vmem:[%s337 + $0x40] sm:$0xff]
      %v347 = vld [vmem:[%s337 + $0x48] sm:$0xff]
      %v348 = vld [vmem:[%s337 + $0x50] sm:$0xff]
      %v349 = vld [vmem:[%s337 + $0x58] sm:$0xff]
      %v350 = vld [vmem:[%s337 + $0x60] sm:$0xff]
      %v351 = vld [vmem:[%s337 + $0x68] sm:$0xff]
      %v352 = vld [vmem:[%s337 + $0x70] sm:$0xff]
      %v353 = vld [vmem:[%s337 + $0x78] sm:$0xff]
      %354 = vmatpush.msra.mxu0 %v353
      %355 = vmatpush.msra.mxu0 %v352
      %356 = vmatpush.msra.mxu0 %v351
      %357 = vmatpush.msra.mxu0 %v350
      %358 = vmatpush.msra.mxu0 %v349
      %359 = vmatpush.msra.mxu0 %v348
      %360 = vmatpush.msra.mxu0 %v347
      %361 = vmatpush.msra.mxu0 %v346
      %362 = vmatpush.msra.mxu0 %v345
      %363 = vmatpush.msra.mxu0 %v344
      %364 = vmatpush.msra.mxu0 %v343
      %365 = vmatpush.msra.mxu0 %v342
      %366 = vmatpush.msra.mxu0 %v341
      %367 = vmatpush.msra.mxu0 %v340
      %368 = vmatpush.msra.mxu0 %v339
      %369 = vmatpush.msra.mxu0 %v338
      %370 = vmatmul.f32.gmra.mxu0 %v329
      %v371 = vpop.f32.mrf.mxu0
      %v372 = vadd.f32 0.0, %v371
      %373 = vmatmul.f32.gmra.mxu0 %v330
      %v374 = vpop.f32.mrf.mxu0
      %v375 = vadd.f32 0.0, %v374
      %376 = vmatmul.f32.gmra.mxu0 %v331
      %v377 = vpop.f32.mrf.mxu0
      %v378 = vadd.f32 0.0, %v377
      %379 = vmatmul.f32.gmra.mxu0 %v332
      %v380 = vpop.f32.mrf.mxu0
      %v381 = vadd.f32 0.0, %v380
      %382 = vmatmul.f32.gmra.mxu0 %v333
      %v383 = vpop.f32.mrf.mxu0
      %v384 = vadd.f32 0.0, %v383
      %385 = vmatmul.f32.gmra.mxu0 %v334
      %v386 = vpop.f32.mrf.mxu0
      %v387 = vadd.f32 0.0, %v386
      %388 = vmatmul.f32.gmra.mxu0 %v335
      %v389 = vpop.f32.mrf.mxu0
      %v390 = vadd.f32 0.0, %v389
      %391 = vmatmul.f32.gmra.mxu0 %v336
      %v392 = vpop.f32.mrf.mxu0
      %v393 = vadd.f32 0.0, %v392
      %394 = vdwg.mxu0
      %v395 = vadd.f32 %v306, %v372
      %v396 = vadd.f32 %v309, %v375
      %v397 = vadd.f32 %v312, %v378
      %v398 = vadd.f32 %v315, %v381
      %v399 = vadd.f32 %v318, %v384
      %v400 = vadd.f32 %v321, %v387
      %v401 = vadd.f32 %v324, %v390
      %v402 = vadd.f32 %v327, %v393
      %s403 = scalar_lea.vmem %s192, 16
      %v404 = vld [vmem:[%s403] sm:$0xff]
      %v405 = vld [vmem:[%s403 + $0x10] sm:$0xff]
      %v406 = vld [vmem:[%s403 + $0x20] sm:$0xff]
      %v407 = vld [vmem:[%s403 + $0x30] sm:$0xff]
      %v408 = vld [vmem:[%s403 + $0x40] sm:$0xff]
      %v409 = vld [vmem:[%s403 + $0x50] sm:$0xff]
      %v410 = vld [vmem:[%s403 + $0x60] sm:$0xff]
      %v411 = vld [vmem:[%s403 + $0x70] sm:$0xff]
      %s412 = scalar_lea.vmem %s1, 384
      %v413 = vld [vmem:[%s412] sm:$0xff]
      %v414 = vld [vmem:[%s412 + $0x8] sm:$0xff]
      %v415 = vld [vmem:[%s412 + $0x10] sm:$0xff]
      %v416 = vld [vmem:[%s412 + $0x18] sm:$0xff]
      %v417 = vld [vmem:[%s412 + $0x20] sm:$0xff]
      %v418 = vld [vmem:[%s412 + $0x28] sm:$0xff]
      %v419 = vld [vmem:[%s412 + $0x30] sm:$0xff]
      %v420 = vld [vmem:[%s412 + $0x38] sm:$0xff]
      %v421 = vld [vmem:[%s412 + $0x40] sm:$0xff]
      %v422 = vld [vmem:[%s412 + $0x48] sm:$0xff]
      %v423 = vld [vmem:[%s412 + $0x50] sm:$0xff]
      %v424 = vld [vmem:[%s412 + $0x58] sm:$0xff]
      %v425 = vld [vmem:[%s412 + $0x60] sm:$0xff]
      %v426 = vld [vmem:[%s412 + $0x68] sm:$0xff]
      %v427 = vld [vmem:[%s412 + $0x70] sm:$0xff]
      %v428 = vld [vmem:[%s412 + $0x78] sm:$0xff]
      %429 = vmatpush.msra.mxu0 %v428
      %430 = vmatpush.msra.mxu0 %v427
      %431 = vmatpush.msra.mxu0 %v426
      %432 = vmatpush.msra.mxu0 %v425
      %433 = vmatpush.msra.mxu0 %v424
      %434 = vmatpush.msra.mxu0 %v423
      %435 = vmatpush.msra.mxu0 %v422
      %436 = vmatpush.msra.mxu0 %v421
      %437 = vmatpush.msra.mxu0 %v420
      %438 = vmatpush.msra.mxu0 %v419
      %439 = vmatpush.msra.mxu0 %v418
      %440 = vmatpush.msra.mxu0 %v417
      %441 = vmatpush.msra.mxu0 %v416
      %442 = vmatpush.msra.mxu0 %v415
      %443 = vmatpush.msra.mxu0 %v414
      %444 = vmatpush.msra.mxu0 %v413
      %445 = vmatmul.f32.gmra.mxu0 %v404
      %v446 = vpop.f32.mrf.mxu0
      %v447 = vadd.f32 0.0, %v446
      %448 = vmatmul.f32.gmra.mxu0 %v405
      %v449 = vpop.f32.mrf.mxu0
      %v450 = vadd.f32 0.0, %v449
      %451 = vmatmul.f32.gmra.mxu0 %v406
      %v452 = vpop.f32.mrf.mxu0
      %v453 = vadd.f32 0.0, %v452
      %454 = vmatmul.f32.gmra.mxu0 %v407
      %v455 = vpop.f32.mrf.mxu0
      %v456 = vadd.f32 0.0, %v455
      %457 = vmatmul.f32.gmra.mxu0 %v408
      %v458 = vpop.f32.mrf.mxu0
      %v459 = vadd.f32 0.0, %v458
      %460 = vmatmul.f32.gmra.mxu0 %v409
      %v461 = vpop.f32.mrf.mxu0
      %v462 = vadd.f32 0.0, %v461
      %463 = vmatmul.f32.gmra.mxu0 %v410
      %v464 = vpop.f32.mrf.mxu0
      %v465 = vadd.f32 0.0, %v464
      %466 = vmatmul.f32.gmra.mxu0 %v411
      %v467 = vpop.f32.mrf.mxu0
      %v468 = vadd.f32 0.0, %v467
      %469 = vdwg.mxu0
      %v470 = vadd.f32 %v395, %v447
      %v471 = vadd.f32 %v396, %v450
      %v472 = vadd.f32 %v397, %v453
      %v473 = vadd.f32 %v398, %v456
      %v474 = vadd.f32 %v399, %v459
      %v475 = vadd.f32 %v400, %v462
      %v476 = vadd.f32 %v401, %v465
      %v477 = vadd.f32 %v402, %v468
      %v478 = vld [vmem:[%s403 + $0x1] sm:$0xff]
      %v479 = vld [vmem:[%s403 + $0x11] sm:$0xff]
      %v480 = vld [vmem:[%s403 + $0x21] sm:$0xff]
      %v481 = vld [vmem:[%s403 + $0x31] sm:$0xff]
      %v482 = vld [vmem:[%s403 + $0x41] sm:$0xff]
      %v483 = vld [vmem:[%s403 + $0x51] sm:$0xff]
      %v484 = vld [vmem:[%s403 + $0x61] sm:$0xff]
      %v485 = vld [vmem:[%s403 + $0x71] sm:$0xff]
      %s486 = scalar_lea.vmem %s1, 512
      %v487 = vld [vmem:[%s486] sm:$0xff]
      %v488 = vld [vmem:[%s486 + $0x8] sm:$0xff]
      %v489 = vld [vmem:[%s486 + $0x10] sm:$0xff]
      %v490 = vld [vmem:[%s486 + $0x18] sm:$0xff]
      %v491 = vld [vmem:[%s486 + $0x20] sm:$0xff]
      %v492 = vld [vmem:[%s486 + $0x28] sm:$0xff]
      %v493 = vld [vmem:[%s486 + $0x30] sm:$0xff]
      %v494 = vld [vmem:[%s486 + $0x38] sm:$0xff]
      %v495 = vld [vmem:[%s486 + $0x40] sm:$0xff]
      %v496 = vld [vmem:[%s486 + $0x48] sm:$0xff]
      %v497 = vld [vmem:[%s486 + $0x50] sm:$0xff]
      %v498 = vld [vmem:[%s486 + $0x58] sm:$0xff]
      %v499 = vld [vmem:[%s486 + $0x60] sm:$0xff]
      %v500 = vld [vmem:[%s486 + $0x68] sm:$0xff]
      %v501 = vld [vmem:[%s486 + $0x70] sm:$0xff]
      %v502 = vld [vmem:[%s486 + $0x78] sm:$0xff]
      %503 = vmatpush.msra.mxu0 %v502
      %504 = vmatpush.msra.mxu0 %v501
      %505 = vmatpush.msra.mxu0 %v500
      %506 = vmatpush.msra.mxu0 %v499
      %507 = vmatpush.msra.mxu0 %v498
      %508 = vmatpush.msra.mxu0 %v497
      %509 = vmatpush.msra.mxu0 %v496
      %510 = vmatpush.msra.mxu0 %v495
      %511 = vmatpush.msra.mxu0 %v494
      %512 = vmatpush.msra.mxu0 %v493
      %513 = vmatpush.msra.mxu0 %v492
      %514 = vmatpush.msra.mxu0 %v491
      %515 = vmatpush.msra.mxu0 %v490
      %516 = vmatpush.msra.mxu0 %v489
      %517 = vmatpush.msra.mxu0 %v488
      %518 = vmatpush.msra.mxu0 %v487
      %519 = vmatmul.f32.gmra.mxu0 %v478
      %v520 = vpop.f32.mrf.mxu0
      %v521 = vadd.f32 0.0, %v520
      %522 = vmatmul.f32.gmra.mxu0 %v479
      %v523 = vpop.f32.mrf.mxu0
      %v524 = vadd.f32 0.0, %v523
      %525 = vmatmul.f32.gmra.mxu0 %v480
      %v526 = vpop.f32.mrf.mxu0
      %v527 = vadd.f32 0.0, %v526
      %528 = vmatmul.f32.gmra.mxu0 %v481
      %v529 = vpop.f32.mrf.mxu0
      %v530 = vadd.f32 0.0, %v529
      %531 = vmatmul.f32.gmra.mxu0 %v482
      %v532 = vpop.f32.mrf.mxu0
      %v533 = vadd.f32 0.0, %v532
      %534 = vmatmul.f32.gmra.mxu0 %v483
      %v535 = vpop.f32.mrf.mxu0
      %v536 = vadd.f32 0.0, %v535
      %537 = vmatmul.f32.gmra.mxu0 %v484
      %v538 = vpop.f32.mrf.mxu0
      %v539 = vadd.f32 0.0, %v538
      %540 = vmatmul.f32.gmra.mxu0 %v485
      %v541 = vpop.f32.mrf.mxu0
      %v542 = vadd.f32 0.0, %v541
      %543 = vdwg.mxu0
      %v544 = vadd.f32 %v470, %v521
      %v545 = vadd.f32 %v471, %v524
      %v546 = vadd.f32 %v472, %v527
      %v547 = vadd.f32 %v473, %v530
      %v548 = vadd.f32 %v474, %v533
      %v549 = vadd.f32 %v475, %v536
      %v550 = vadd.f32 %v476, %v539
      %v551 = vadd.f32 %v477, %v542
      %v552 = vld [vmem:[%s403 + $0x2] sm:$0xff]
      %v553 = vld [vmem:[%s403 + $0x12] sm:$0xff]
      %v554 = vld [vmem:[%s403 + $0x22] sm:$0xff]
      %v555 = vld [vmem:[%s403 + $0x32] sm:$0xff]
      %v556 = vld [vmem:[%s403 + $0x42] sm:$0xff]
      %v557 = vld [vmem:[%s403 + $0x52] sm:$0xff]
      %v558 = vld [vmem:[%s403 + $0x62] sm:$0xff]
      %v559 = vld [vmem:[%s403 + $0x72] sm:$0xff]
      %s560 = scalar_lea.vmem %s1, 640
      %v561 = vld [vmem:[%s560] sm:$0xff]
      %v562 = vld [vmem:[%s560 + $0x8] sm:$0xff]
      %v563 = vld [vmem:[%s560 + $0x10] sm:$0xff]
      %v564 = vld [vmem:[%s560 + $0x18] sm:$0xff]
      %v565 = vld [vmem:[%s560 + $0x20] sm:$0xff]
      %v566 = vld [vmem:[%s560 + $0x28] sm:$0xff]
      %v567 = vld [vmem:[%s560 + $0x30] sm:$0xff]
      %v568 = vld [vmem:[%s560 + $0x38] sm:$0xff]
      %v569 = vld [vmem:[%s560 + $0x40] sm:$0xff]
      %v570 = vld [vmem:[%s560 + $0x48] sm:$0xff]
      %v571 = vld [vmem:[%s560 + $0x50] sm:$0xff]
      %v572 = vld [vmem:[%s560 + $0x58] sm:$0xff]
      %v573 = vld [vmem:[%s560 + $0x60] sm:$0xff]
      %v574 = vld [vmem:[%s560 + $0x68] sm:$0xff]
      %v575 = vld [vmem:[%s560 + $0x70] sm:$0xff]
      %v576 = vld [vmem:[%s560 + $0x78] sm:$0xff]
      %577 = vmatpush.msra.mxu0 %v576
      %578 = vmatpush.msra.mxu0 %v575
      %579 = vmatpush.msra.mxu0 %v574
      %580 = vmatpush.msra.mxu0 %v573
      %581 = vmatpush.msra.mxu0 %v572
      %582 = vmatpush.msra.mxu0 %v571
      %583 = vmatpush.msra.mxu0 %v570
      %584 = vmatpush.msra.mxu0 %v569
      %585 = vmatpush.msra.mxu0 %v568
      %586 = vmatpush.msra.mxu0 %v567
      %587 = vmatpush.msra.mxu0 %v566
      %588 = vmatpush.msra.mxu0 %v565
      %589 = vmatpush.msra.mxu0 %v564
      %590 = vmatpush.msra.mxu0 %v563
      %591 = vmatpush.msra.mxu0 %v562
      %592 = vmatpush.msra.mxu0 %v561
      %593 = vmatmul.f32.gmra.mxu0 %v552
      %v594 = vpop.f32.mrf.mxu0
      %v595 = vadd.f32 0.0, %v594
      %596 = vmatmul.f32.gmra.mxu0 %v553
      %v597 = vpop.f32.mrf.mxu0
      %v598 = vadd.f32 0.0, %v597
      %599 = vmatmul.f32.gmra.mxu0 %v554
      %v600 = vpop.f32.mrf.mxu0
      %v601 = vadd.f32 0.0, %v600
      %602 = vmatmul.f32.gmra.mxu0 %v555
      %v603 = vpop.f32.mrf.mxu0
      %v604 = vadd.f32 0.0, %v603
      %605 = vmatmul.f32.gmra.mxu0 %v556
      %v606 = vpop.f32.mrf.mxu0
      %v607 = vadd.f32 0.0, %v606
      %608 = vmatmul.f32.gmra.mxu0 %v557
      %v609 = vpop.f32.mrf.mxu0
      %v610 = vadd.f32 0.0, %v609
      %611 = vmatmul.f32.gmra.mxu0 %v558
      %v612 = vpop.f32.mrf.mxu0
      %v613 = vadd.f32 0.0, %v612
      %614 = vmatmul.f32.gmra.mxu0 %v559
      %v615 = vpop.f32.mrf.mxu0
      %v616 = vadd.f32 0.0, %v615
      %617 = vdwg.mxu0
      %v618 = vadd.f32 %v544, %v595
      %v619 = vadd.f32 %v545, %v598
      %v620 = vadd.f32 %v546, %v601
      %v621 = vadd.f32 %v547, %v604
      %v622 = vadd.f32 %v548, %v607
      %v623 = vadd.f32 %v549, %v610
      %v624 = vadd.f32 %v550, %v613
      %v625 = vadd.f32 %v551, %v616
      %s626 = scalar_lea.vmem %s192, 32
      %v627 = vld [vmem:[%s626] sm:$0xff]
      %v628 = vld [vmem:[%s626 + $0x10] sm:$0xff]
      %v629 = vld [vmem:[%s626 + $0x20] sm:$0xff]
      %v630 = vld [vmem:[%s626 + $0x30] sm:$0xff]
      %v631 = vld [vmem:[%s626 + $0x40] sm:$0xff]
      %v632 = vld [vmem:[%s626 + $0x50] sm:$0xff]
      %v633 = vld [vmem:[%s626 + $0x60] sm:$0xff]
      %v634 = vld [vmem:[%s626 + $0x70] sm:$0xff]
      %s635 = scalar_lea.vmem %s1, 768
      %v636 = vld [vmem:[%s635] sm:$0xff]
      %v637 = vld [vmem:[%s635 + $0x8] sm:$0xff]
      %v638 = vld [vmem:[%s635 + $0x10] sm:$0xff]
      %v639 = vld [vmem:[%s635 + $0x18] sm:$0xff]
      %v640 = vld [vmem:[%s635 + $0x20] sm:$0xff]
      %v641 = vld [vmem:[%s635 + $0x28] sm:$0xff]
      %v642 = vld [vmem:[%s635 + $0x30] sm:$0xff]
      %v643 = vld [vmem:[%s635 + $0x38] sm:$0xff]
      %v644 = vld [vmem:[%s635 + $0x40] sm:$0xff]
      %v645 = vld [vmem:[%s635 + $0x48] sm:$0xff]
      %v646 = vld [vmem:[%s635 + $0x50] sm:$0xff]
      %v647 = vld [vmem:[%s635 + $0x58] sm:$0xff]
      %v648 = vld [vmem:[%s635 + $0x60] sm:$0xff]
      %v649 = vld [vmem:[%s635 + $0x68] sm:$0xff]
      %v650 = vld [vmem:[%s635 + $0x70] sm:$0xff]
      %v651 = vld [vmem:[%s635 + $0x78] sm:$0xff]
      %652 = vmatpush.msra.mxu0 %v651
      %653 = vmatpush.msra.mxu0 %v650
      %654 = vmatpush.msra.mxu0 %v649
      %655 = vmatpush.msra.mxu0 %v648
      %656 = vmatpush.msra.mxu0 %v647
      %657 = vmatpush.msra.mxu0 %v646
      %658 = vmatpush.msra.mxu0 %v645
      %659 = vmatpush.msra.mxu0 %v644
      %660 = vmatpush.msra.mxu0 %v643
      %661 = vmatpush.msra.mxu0 %v642
      %662 = vmatpush.msra.mxu0 %v641
      %663 = vmatpush.msra.mxu0 %v640
      %664 = vmatpush.msra.mxu0 %v639
      %665 = vmatpush.msra.mxu0 %v638
      %666 = vmatpush.msra.mxu0 %v637
      %667 = vmatpush.msra.mxu0 %v636
      %668 = vmatmul.f32.gmra.mxu0 %v627
      %v669 = vpop.f32.mrf.mxu0
      %v670 = vadd.f32 0.0, %v669
      %671 = vmatmul.f32.gmra.mxu0 %v628
      %v672 = vpop.f32.mrf.mxu0
      %v673 = vadd.f32 0.0, %v672
      %674 = vmatmul.f32.gmra.mxu0 %v629
      %v675 = vpop.f32.mrf.mxu0
      %v676 = vadd.f32 0.0, %v675
      %677 = vmatmul.f32.gmra.mxu0 %v630
      %v678 = vpop.f32.mrf.mxu0
      %v679 = vadd.f32 0.0, %v678
      %680 = vmatmul.f32.gmra.mxu0 %v631
      %v681 = vpop.f32.mrf.mxu0
      %v682 = vadd.f32 0.0, %v681
      %683 = vmatmul.f32.gmra.mxu0 %v632
      %v684 = vpop.f32.mrf.mxu0
      %v685 = vadd.f32 0.0, %v684
      %686 = vmatmul.f32.gmra.mxu0 %v633
      %v687 = vpop.f32.mrf.mxu0
      %v688 = vadd.f32 0.0, %v687
      %689 = vmatmul.f32.gmra.mxu0 %v634
      %v690 = vpop.f32.mrf.mxu0
      %v691 = vadd.f32 0.0, %v690
      %692 = vdwg.mxu0
      %v693 = vadd.f32 %v618, %v670
      %v694 = vadd.f32 %v619, %v673
      %v695 = vadd.f32 %v620, %v676
      %v696 = vadd.f32 %v621, %v679
      %v697 = vadd.f32 %v622, %v682
      %v698 = vadd.f32 %v623, %v685
      %v699 = vadd.f32 %v624, %v688
      %v700 = vadd.f32 %v625, %v691
      %v701 = vld [vmem:[%s626 + $0x1] sm:$0xff]
      %v702 = vld [vmem:[%s626 + $0x11] sm:$0xff]
      %v703 = vld [vmem:[%s626 + $0x21] sm:$0xff]
      %v704 = vld [vmem:[%s626 + $0x31] sm:$0xff]
      %v705 = vld [vmem:[%s626 + $0x41] sm:$0xff]
      %v706 = vld [vmem:[%s626 + $0x51] sm:$0xff]
      %v707 = vld [vmem:[%s626 + $0x61] sm:$0xff]
      %v708 = vld [vmem:[%s626 + $0x71] sm:$0xff]
      %s709 = scalar_lea.vmem %s1, 896
      %v710 = vld [vmem:[%s709] sm:$0xff]
      %v711 = vld [vmem:[%s709 + $0x8] sm:$0xff]
      %v712 = vld [vmem:[%s709 + $0x10] sm:$0xff]
      %v713 = vld [vmem:[%s709 + $0x18] sm:$0xff]
      %v714 = vld [vmem:[%s709 + $0x20] sm:$0xff]
      %v715 = vld [vmem:[%s709 + $0x28] sm:$0xff]
      %v716 = vld [vmem:[%s709 + $0x30] sm:$0xff]
      %v717 = vld [vmem:[%s709 + $0x38] sm:$0xff]
      %v718 = vld [vmem:[%s709 + $0x40] sm:$0xff]
      %v719 = vld [vmem:[%s709 + $0x48] sm:$0xff]
      %v720 = vld [vmem:[%s709 + $0x50] sm:$0xff]
      %v721 = vld [vmem:[%s709 + $0x58] sm:$0xff]
      %v722 = vld [vmem:[%s709 + $0x60] sm:$0xff]
      %v723 = vld [vmem:[%s709 + $0x68] sm:$0xff]
      %v724 = vld [vmem:[%s709 + $0x70] sm:$0xff]
      %v725 = vld [vmem:[%s709 + $0x78] sm:$0xff]
      %726 = vmatpush.msra.mxu0 %v725
      %727 = vmatpush.msra.mxu0 %v724
      %728 = vmatpush.msra.mxu0 %v723
      %729 = vmatpush.msra.mxu0 %v722
      %730 = vmatpush.msra.mxu0 %v721
      %731 = vmatpush.msra.mxu0 %v720
      %732 = vmatpush.msra.mxu0 %v719
      %733 = vmatpush.msra.mxu0 %v718
      %734 = vmatpush.msra.mxu0 %v717
      %735 = vmatpush.msra.mxu0 %v716
      %736 = vmatpush.msra.mxu0 %v715
      %737 = vmatpush.msra.mxu0 %v714
      %738 = vmatpush.msra.mxu0 %v713
      %739 = vmatpush.msra.mxu0 %v712
      %740 = vmatpush.msra.mxu0 %v711
      %741 = vmatpush.msra.mxu0 %v710
      %742 = vmatmul.f32.gmra.mxu0 %v701
      %v743 = vpop.f32.mrf.mxu0
      %v744 = vadd.f32 0.0, %v743
      %745 = vmatmul.f32.gmra.mxu0 %v702
      %v746 = vpop.f32.mrf.mxu0
      %v747 = vadd.f32 0.0, %v746
      %748 = vmatmul.f32.gmra.mxu0 %v703
      %v749 = vpop.f32.mrf.mxu0
      %v750 = vadd.f32 0.0, %v749
      %751 = vmatmul.f32.gmra.mxu0 %v704
      %v752 = vpop.f32.mrf.mxu0
      %v753 = vadd.f32 0.0, %v752
      %754 = vmatmul.f32.gmra.mxu0 %v705
      %v755 = vpop.f32.mrf.mxu0
      %v756 = vadd.f32 0.0, %v755
      %757 = vmatmul.f32.gmra.mxu0 %v706
      %v758 = vpop.f32.mrf.mxu0
      %v759 = vadd.f32 0.0, %v758
      %760 = vmatmul.f32.gmra.mxu0 %v707
      %v761 = vpop.f32.mrf.mxu0
      %v762 = vadd.f32 0.0, %v761
      %763 = vmatmul.f32.gmra.mxu0 %v708
      %v764 = vpop.f32.mrf.mxu0
      %v765 = vadd.f32 0.0, %v764
      %766 = vdwg.mxu0
      %v767 = vadd.f32 %v693, %v744
      %v768 = vadd.f32 %v694, %v747
      %v769 = vadd.f32 %v695, %v750
      %v770 = vadd.f32 %v696, %v753
      %v771 = vadd.f32 %v697, %v756
      %v772 = vadd.f32 %v698, %v759
      %v773 = vadd.f32 %v699, %v762
      %v774 = vadd.f32 %v700, %v765
      %v775 = vld [vmem:[%s626 + $0x2] sm:$0xff]
      %v776 = vld [vmem:[%s626 + $0x12] sm:$0xff]
      %v777 = vld [vmem:[%s626 + $0x22] sm:$0xff]
      %v778 = vld [vmem:[%s626 + $0x32] sm:$0xff]
      %v779 = vld [vmem:[%s626 + $0x42] sm:$0xff]
      %v780 = vld [vmem:[%s626 + $0x52] sm:$0xff]
      %v781 = vld [vmem:[%s626 + $0x62] sm:$0xff]
      %v782 = vld [vmem:[%s626 + $0x72] sm:$0xff]
      %s783 = scalar_lea.vmem %s1, 1024
      %v784 = vld [vmem:[%s783] sm:$0xff]
      %v785 = vld [vmem:[%s783 + $0x8] sm:$0xff]
      %v786 = vld [vmem:[%s783 + $0x10] sm:$0xff]
      %v787 = vld [vmem:[%s783 + $0x18] sm:$0xff]
      %v788 = vld [vmem:[%s783 + $0x20] sm:$0xff]
      %v789 = vld [vmem:[%s783 + $0x28] sm:$0xff]
      %v790 = vld [vmem:[%s783 + $0x30] sm:$0xff]
      %v791 = vld [vmem:[%s783 + $0x38] sm:$0xff]
      %v792 = vld [vmem:[%s783 + $0x40] sm:$0xff]
      %v793 = vld [vmem:[%s783 + $0x48] sm:$0xff]
      %v794 = vld [vmem:[%s783 + $0x50] sm:$0xff]
      %v795 = vld [vmem:[%s783 + $0x58] sm:$0xff]
      %v796 = vld [vmem:[%s783 + $0x60] sm:$0xff]
      %v797 = vld [vmem:[%s783 + $0x68] sm:$0xff]
      %v798 = vld [vmem:[%s783 + $0x70] sm:$0xff]
      %v799 = vld [vmem:[%s783 + $0x78] sm:$0xff]
      %800 = vmatpush.msra.mxu0 %v799
      %801 = vmatpush.msra.mxu0 %v798
      %802 = vmatpush.msra.mxu0 %v797
      %803 = vmatpush.msra.mxu0 %v796
      %804 = vmatpush.msra.mxu0 %v795
      %805 = vmatpush.msra.mxu0 %v794
      %806 = vmatpush.msra.mxu0 %v793
      %807 = vmatpush.msra.mxu0 %v792
      %808 = vmatpush.msra.mxu0 %v791
      %809 = vmatpush.msra.mxu0 %v790
      %810 = vmatpush.msra.mxu0 %v789
      %811 = vmatpush.msra.mxu0 %v788
      %812 = vmatpush.msra.mxu0 %v787
      %813 = vmatpush.msra.mxu0 %v786
      %814 = vmatpush.msra.mxu0 %v785
      %815 = vmatpush.msra.mxu0 %v784
      %816 = vmatmul.f32.gmra.mxu0 %v775
      %v817 = vpop.f32.mrf.mxu0
      %v818 = vadd.f32 0.0, %v817
      %819 = vmatmul.f32.gmra.mxu0 %v776
      %v820 = vpop.f32.mrf.mxu0
      %v821 = vadd.f32 0.0, %v820
      %822 = vmatmul.f32.gmra.mxu0 %v777
      %v823 = vpop.f32.mrf.mxu0
      %v824 = vadd.f32 0.0, %v823
      %825 = vmatmul.f32.gmra.mxu0 %v778
      %v826 = vpop.f32.mrf.mxu0
      %v827 = vadd.f32 0.0, %v826
      %828 = vmatmul.f32.gmra.mxu0 %v779
      %v829 = vpop.f32.mrf.mxu0
      %v830 = vadd.f32 0.0, %v829
      %831 = vmatmul.f32.gmra.mxu0 %v780
      %v832 = vpop.f32.mrf.mxu0
      %v833 = vadd.f32 0.0, %v832
      %834 = vmatmul.f32.gmra.mxu0 %v781
      %v835 = vpop.f32.mrf.mxu0
      %v836 = vadd.f32 0.0, %v835
      %837 = vmatmul.f32.gmra.mxu0 %v782
      %v838 = vpop.f32.mrf.mxu0
      %v839 = vadd.f32 0.0, %v838
      %840 = vdwg.mxu0
      %v841 = vadd.f32 %v767, %v818
      %v842 = vadd.f32 %v768, %v821
      %v843 = vadd.f32 %v769, %v824
      %v844 = vadd.f32 %v770, %v827
      %v845 = vadd.f32 %v771, %v830
      %v846 = vadd.f32 %v772, %v833
      %v847 = vadd.f32 %v773, %v836
      %v848 = vadd.f32 %v774, %v839
      %v849 = vld [vmem:[%s2] sm:$0xff]
      %v850 = vld [vmem:[%s2 + $0x8] sm:$0xff]
      %v851 = vld [vmem:[%s2 + $0x10] sm:$0xff]
      %v852 = vld [vmem:[%s2 + $0x18] sm:$0xff]
      %v853 = vld [vmem:[%s2 + $0x20] sm:$0xff]
      %v854 = vld [vmem:[%s2 + $0x28] sm:$0xff]
      %v855 = vld [vmem:[%s2 + $0x30] sm:$0xff]
      %v856 = vld [vmem:[%s2 + $0x38] sm:$0xff]
      %vm857 = vcmask 523264
      %v859 = vsel %vm857, %v849, 0
      %v862 = vsel %vm857, %v850, 0
      %v865 = vsel %vm857, %v851, 0
      %v868 = vsel %vm857, %v852, 0
      %v871 = vsel %vm857, %v853, 0
      %v874 = vsel %vm857, %v854, 0
      %v877 = vsel %vm857, %v855, 0
      %v880 = vsel %vm857, %v856, 0
      %882 = vmatpush.msra.mxu0 0.0
      %883 = vmatpush.msra.mxu0 0.0
      %884 = vmatpush.msra.mxu0 0.0
      %885 = vmatpush.msra.mxu0 0.0
      %886 = vmatpush.msra.mxu0 0.0
      %887 = vmatpush.msra.mxu0 0.0
      %888 = vmatpush.msra.mxu0 0.0
      %889 = vmatpush.msra.mxu0 0.0
      %890 = vmatpush.msra.mxu0 %v848
      %891 = vmatpush.msra.mxu0 %v847
      %892 = vmatpush.msra.mxu0 %v846
      %893 = vmatpush.msra.mxu0 %v845
      %894 = vmatpush.msra.mxu0 %v844
      %895 = vmatpush.msra.mxu0 %v843
      %896 = vmatpush.msra.mxu0 %v842
      %897 = vmatpush.msra.mxu0 %v841
      %898 = vmatmul.f32.gmra.mxu0 %v859
      %v899 = vpop.f32.mrf.mxu0
      %v900 = vadd.f32 0.0, %v899
      %901 = vmatmul.f32.gmra.mxu0 %v862
      %v902 = vpop.f32.mrf.mxu0
      %v903 = vadd.f32 0.0, %v902
      %904 = vmatmul.f32.gmra.mxu0 %v865
      %v905 = vpop.f32.mrf.mxu0
      %v906 = vadd.f32 0.0, %v905
      %907 = vmatmul.f32.gmra.mxu0 %v868
      %v908 = vpop.f32.mrf.mxu0
      %v909 = vadd.f32 0.0, %v908
      %910 = vmatmul.f32.gmra.mxu0 %v871
      %v911 = vpop.f32.mrf.mxu0
      %v912 = vadd.f32 0.0, %v911
      %913 = vmatmul.f32.gmra.mxu0 %v874
      %v914 = vpop.f32.mrf.mxu0
      %v915 = vadd.f32 0.0, %v914
      %916 = vmatmul.f32.gmra.mxu0 %v877
      %v917 = vpop.f32.mrf.mxu0
      %v918 = vadd.f32 0.0, %v917
      %919 = vmatmul.f32.gmra.mxu0 %v880
      %v920 = vpop.f32.mrf.mxu0
      %v921 = vadd.f32 0.0, %v920
      %922 = vdwg.mxu0
      %v923 = vmax.f32 %v900, %v906
      %v924 = vmax.f32 %v903, %v909
      %v925 = vmax.f32 %v912, %v918
      %v926 = vmax.f32 %v915, %v921
      %v927 = vmax.f32 %v923, %v925
      %v928 = vmax.f32 %v924, %v926
      %v929 = vld [vmem:[%s3] sm:$0x1]
      %v931 = vperm.slane %v929, 0
      %v933 = vadd.f32 %v927, %v931
      %v934 = vadd.f32 %v928, %v931
      %v935 = vmax.f32 %v933, 0.0
      %v936 = vmax.f32 %v934, 0.0
      %937 = vst.msk [vmem:[%s197] sm:$0xff] %vm857, %v935
      %938 = vst.msk [vmem:[%s197 + $0x8] sm:$0xff] %vm857, %v936
      %p939 = scmp.lt.s32.totalorder %s15, 1
      %s940 = scalar_select %p939, %s15, 1
      %s941 = smul.addr %s940, 2
      %s942 = smul.addr %s941, 8
      %s943 = scalar_lea.vmem %s4, %s942
      // Predicated region
      $region37: #{asl_forward.4} parent=35 // pred_check
        %p944 = pneg %p122
      $region38: #{asl_forward.4} parent=35 // pred_check_branch
        %946 = sbr.rel (%p944) target = $region40
      $region39: #{asl_forward.4} parent=35 // pred_region
        _
      $region40: #{asl_forward.4} parent=35 // pred_fallthru
        _
    $region36: #{asl_forward.4} parent=5 // pred_fallthru
      _
    %p947 = scmp.le.s32.totalorder 2, %s10
    // Predicated region
    $region41: #{asl_forward.4} parent=5 // pred_check
      %p948 = pneg %p947
    $region42: #{asl_forward.4} parent=5 // pred_check_branch
      %950 = sbr.rel (%p948) target = $region44
    $region43: #{asl_forward.4} parent=5 // pred_region
      %s951 = ssub.s32 %s10, 2
      // Predicated region
      $region45: #{asl_forward.4} parent=43 // pred_check
        %p952 = pneg %p128
      $region46: #{asl_forward.4} parent=43 // pred_check_branch
        %954 = sbr.rel (%p952) target = $region48
      $region47: #{asl_forward.4} parent=43 // pred_region
        %p955 = scmp.lt.s32.totalorder %s16, 1
        %s956 = scalar_select %p955, %s16, 1
        %s957 = smul.addr %s956, 2
        %s958 = smul.addr %s957, 8
        %s959 = scalar_lea.vmem %s4, %s958
      $region48: #{asl_forward.4} parent=43 // pred_fallthru
        _
    $region44: #{asl_forward.4} parent=5 // pred_fallthru
      _
  $region6: #{asl_forward.4} parent=0 // loop_footer
    %s14 = sadd.s32 1, %s10
  $region7: #{asl_forward.4} parent=0 // loop_footer_branch
    %9 = sbr.rel target = $region3
  $region8: #{asl_forward.4} parent=0 // loop_exit
    _

// kernel: asl_forward.5
$region0: #{asl_forward.5}
  #allocation0 [shape = 'u32[]', space=smem, size = 0x4, offset = 0x4, fixed_abs, tag = 'smem constant byte address 0x4 - core index']
  #allocation1 [shape = 'u32[72,128]{1,0:T(1,128)}', space=vmem, size = 0x9000, scoped, tag = 'internal scratch']
  %s0 = inlined_call_operand.vmem [shape: f32[2,4,4,64], index: 0, kind: input, shape index: {}]
  %s1 = inlined_call_operand.vmem [shape: f32[9,64,32], index: 1, kind: input, shape index: {}]
  %s2 = inlined_call_operand.vmem [shape: f32[1,32], index: 2, kind: input, shape index: {}]
  %s3 = inlined_call_operand.vmem [shape: f32[32,128], index: 3, kind: input, shape index: {}]
  %s4 = inlined_call_operand.vmem [shape: f32[1,128], index: 4, kind: input, shape index: {}]
  %s5 = inlined_call_operand.hbm [shape: f32[2,1,128], index: 5, kind: output, shape index: {}]
  %s6 = sld [smem:[#allocation0]]
  $region53: #{asl_forward.5} parent=0
    _
  %s8 = ssub.s32 1, %s6
  %s9 = scalar_select 0, %s8, %s6
  $region1: #{asl_forward.5} parent=0
    #allocation2 [shape = 'u8[1024]{0}', space=vmem, size = 0x400, scoped, tag = 'output window, operand 0']
    #allocation3 [shape = 's32[2]{0}', space=sflag, size = 0x8, scoped, tag = 'scoped memory for asl_forward.5']
    %10 = vsyncpa [#allocation3], 0
    %s11 = scalar_lea.sflag [#allocation3], 1
    %12 = vsyncpa %s11, 0
    loop: start=0, step=1, limit=4
    $region2: #{asl_forward.5} parent=1 // loop_pre_header
      _
    $region3: #{asl_forward.5} parent=1 // loop_header
      %s14 = sphi 0, %s18
      %p15 = scmp.ge.s32.totalorder %s14, 4
      %s24 = sphi 0, %s26
      %s27 = sphi 0, %s24
      %s28 = sphi 0, %s27
      %s44 = sphi 0, %s28
      %s48 = sphi 0, %s48
      %s50 = sphi 0, %s48
      %s51 = sphi 0, %s50
      %s65 = sphi 0, %s51
      %s69 = sphi 0, %s69
      %s71 = sphi 0, %s69
      %s72 = sphi 0, %s71
      %s86 = sphi 0, %s72
      %s90 = sphi 0, %s90
      %s92 = sphi 0, %s90
      %s93 = sphi 0, %s92
      %s107 = sphi 0, %s93
      %s111 = sphi 0, %s111
      %s113 = sphi 0, %s111
      %s114 = sphi 0, %s113
      %s128 = sphi 0, %s114
      %s134 = sphi 0, %s136
      %s137 = sphi 0, %s134
      %s138 = sphi 0, %s137
      %s154 = sphi 0, %s138
    $region4: #{asl_forward.5} parent=1 // loop_header_branch
      %17 = sbr.rel (%p15) target = $region8
    $region5: #{asl_forward.5} parent=1 // loop_body
      %s19 = ssub.s32 %s14, 1
      %s20 = ssub.s32 %s14, 2
      %s21 = sadd.s32 %s14, 1
      %s22 = ssub.s32 %s14, %s21
      %p23 = scmp.eq.s32.totalorder %s22, 0
      %s25 = sadd.s32 %s24, 1
      %s26 = scalar_select %p23, %s24, %s25
      %p29 = pneg %p23
      %p30 = scmp.eq.s32.totalorder %s14, 1
      %p31 = por %p29, %p30
      %p32 = scmp.ne.s32.totalorder %s24, %s27
      %p33 = scmp.eq.s32.totalorder %s14, 0
      %p34 = por %p32, %p33
      %p35 = scmp.ne.s32.totalorder %s24, %s27
      %p36 = scmp.eq.s32.totalorder %s19, 1
      %p37 = por %p35, %p36
      %p38 = scmp.ne.s32.totalorder %s27, %s28
      %p39 = scmp.eq.s32.totalorder %s19, 0
      %p40 = por %p38, %p39
      %p41 = scmp.ne.s32.totalorder %s27, %s28
      %p42 = scmp.eq.s32.totalorder %s20, 1
      %p43 = por %p41, %p42
      %p45 = scmp.ne.s32.totalorder %s28, %s44
      %p46 = scmp.eq.s32.totalorder %s20, 0
      %p47 = por %p45, %p46
      %s49 = sadd.s32 %s48, 1
      %p52 = scmp.eq.s32.totalorder %s14, 1
      %p53 = scmp.ne.s32.totalorder %s48, %s50
      %p54 = scmp.eq.s32.totalorder %s14, 0
      %p55 = por %p53, %p54
      %p56 = scmp.ne.s32.totalorder %s48, %s50
      %p57 = scmp.eq.s32.totalorder %s19, 1
      %p58 = por %p56, %p57
      %p59 = scmp.ne.s32.totalorder %s50, %s51
      %p60 = scmp.eq.s32.totalorder %s19, 0
      %p61 = por %p59, %p60
      %p62 = scmp.ne.s32.totalorder %s50, %s51
      %p63 = scmp.eq.s32.totalorder %s20, 1
      %p64 = por %p62, %p63
      %p66 = scmp.ne.s32.totalorder %s51, %s65
      %p67 = scmp.eq.s32.totalorder %s20, 0
      %p68 = por %p66, %p67
      %s70 = sadd.s32 %s69, 1
      %p73 = scmp.eq.s32.totalorder %s14, 1
      %p74 = scmp.ne.s32.totalorder %s69, %s71
      %p75 = scmp.eq.s32.totalorder %s14, 0
      %p76 = por %p74, %p75
      %p77 = scmp.ne.s32.totalorder %s69, %s71
      %p78 = scmp.eq.s32.totalorder %s19, 1
      %p79 = por %p77, %p78
      %p80 = scmp.ne.s32.totalorder %s71, %s72
      %p81 = scmp.eq.s32.totalorder %s19, 0
      %p82 = por %p80, %p81
      %p83 = scmp.ne.s32.totalorder %s71, %s72
      %p84 = scmp.eq.s32.totalorder %s20, 1
      %p85 = por %p83, %p84
      %p87 = scmp.ne.s32.totalorder %s72, %s86
      %p88 = scmp.eq.s32.totalorder %s20, 0
      %p89 = por %p87, %p88
      %s91 = sadd.s32 %s90, 1
      %p94 = scmp.eq.s32.totalorder %s14, 1
      %p95 = scmp.ne.s32.totalorder %s90, %s92
      %p96 = scmp.eq.s32.totalorder %s14, 0
      %p97 = por %p95, %p96
      %p98 = scmp.ne.s32.totalorder %s90, %s92
      %p99 = scmp.eq.s32.totalorder %s19, 1
      %p100 = por %p98, %p99
      %p101 = scmp.ne.s32.totalorder %s92, %s93
      %p102 = scmp.eq.s32.totalorder %s19, 0
      %p103 = por %p101, %p102
      %p104 = scmp.ne.s32.totalorder %s92, %s93
      %p105 = scmp.eq.s32.totalorder %s20, 1
      %p106 = por %p104, %p105
      %p108 = scmp.ne.s32.totalorder %s93, %s107
      %p109 = scmp.eq.s32.totalorder %s20, 0
      %p110 = por %p108, %p109
      %s112 = sadd.s32 %s111, 1
      %p115 = scmp.eq.s32.totalorder %s14, 1
      %p116 = scmp.ne.s32.totalorder %s111, %s113
      %p117 = scmp.eq.s32.totalorder %s14, 0
      %p118 = por %p116, %p117
      %p119 = scmp.ne.s32.totalorder %s111, %s113
      %p120 = scmp.eq.s32.totalorder %s19, 1
      %p121 = por %p119, %p120
      %p122 = scmp.ne.s32.totalorder %s113, %s114
      %p123 = scmp.eq.s32.totalorder %s19, 0
      %p124 = por %p122, %p123
      %p125 = scmp.ne.s32.totalorder %s113, %s114
      %p126 = scmp.eq.s32.totalorder %s20, 1
      %p127 = por %p125, %p126
      %p129 = scmp.ne.s32.totalorder %s114, %s128
      %p130 = scmp.eq.s32.totalorder %s20, 0
      %p131 = por %p129, %p130
      %s132 = ssub.s32 %s14, %s21
      %p133 = scmp.eq.s32.totalorder %s132, 0
      %s135 = sadd.s32 %s134, 1
      %s136 = scalar_select %p133, %s134, %s135
      %p139 = pneg %p133
      %p140 = scmp.eq.s32.totalorder %s14, 1
      %p141 = por %p139, %p140
      %p142 = scmp.ne.s32.totalorder %s134, %s137
      %p143 = scmp.eq.s32.totalorder %s14, 0
      %p144 = por %p142, %p143
      %p145 = scmp.ne.s32.totalorder %s134, %s137
      %p146 = scmp.eq.s32.totalorder %s19, 1
      %p147 = por %p145, %p146
      %p148 = scmp.ne.s32.totalorder %s137, %s138
      %p149 = scmp.eq.s32.totalorder %s19, 0
      %p150 = por %p148, %p149
      %p151 = scmp.ne.s32.totalorder %s137, %s138
      %p152 = scmp.eq.s32.totalorder %s20, 1
      %p153 = por %p151, %p152
      %p155 = scmp.ne.s32.totalorder %s138, %s154
      %p156 = scmp.eq.s32.totalorder %s20, 0
      %p157 = por %p155, %p156
      %p158 = scmp.le.s32.totalorder 1, %s14
      %p159 = scmp.lt.s32.totalorder %s14, 3
      %p160 = pnand %p158, %p159
      %p161 = pneg %p160
      // Predicated region
      $region9: #{asl_forward.5} parent=5 // pred_check
        _
      $region10: #{asl_forward.5} parent=5 // pred_check_branch
        %163 = sbr.rel (%p160) target = $region12
      $region11: #{asl_forward.5} parent=5 // pred_region
        %s164 = ssub.s32 %s14, 1
        // Predicated region
        $region13: #{asl_forward.5} parent=11 // pred_check
          %p165 = pneg %p61
        $region14: #{asl_forward.5} parent=11 // pred_check_branch
          %167 = sbr.rel (%p165) target = $region16
        $region15: #{asl_forward.5} parent=11 // pred_region
          _
        $region16: #{asl_forward.5} parent=11 // pred_fallthru
          _
        // Predicated region
        $region17: #{asl_forward.5} parent=11 // pred_check
          %p168 = pneg %p82
        $region18: #{asl_forward.5} parent=11 // pred_check_branch
          %170 = sbr.rel (%p168) target = $region20
        $region19: #{asl_forward.5} parent=11 // pred_region
          _
        $region20: #{asl_forward.5} parent=11 // pred_fallthru
          _
        // Predicated region
        $region21: #{asl_forward.5} parent=11 // pred_check
          %p171 = pneg %p103
        $region22: #{asl_forward.5} parent=11 // pred_check_branch
          %173 = sbr.rel (%p171) target = $region24
        $region23: #{asl_forward.5} parent=11 // pred_region
          _
        $region24: #{asl_forward.5} parent=11 // pred_fallthru
          _
        // Predicated region
        $region25: #{asl_forward.5} parent=11 // pred_check
          %p174 = pneg %p124
        $region26: #{asl_forward.5} parent=11 // pred_check_branch
          %176 = sbr.rel (%p174) target = $region28
        $region27: #{asl_forward.5} parent=11 // pred_region
          _
        $region28: #{asl_forward.5} parent=11 // pred_fallthru
          _
      $region12: #{asl_forward.5} parent=5 // pred_fallthru
        _
      %p177 = scmp.lt.s32.totalorder %s14, 2
      // Predicated region
      $region29: #{asl_forward.5} parent=5 // pred_check
        %p178 = pneg %p177
      $region30: #{asl_forward.5} parent=5 // pred_check_branch
        %180 = sbr.rel (%p178) target = $region32
      $region31: #{asl_forward.5} parent=5 // pred_region
        // Predicated region
        $region33: #{asl_forward.5} parent=31 // pred_check
          %p181 = pneg %p34
        $region34: #{asl_forward.5} parent=31 // pred_check_branch
          %183 = sbr.rel (%p181) target = $region36
        $region35: #{asl_forward.5} parent=31 // pred_region
          %p184 = scmp.lt.s32.totalorder %s14, 1
          %s185 = scalar_select %p184, %s14, 1
          %s186 = smul.addr %s185, 4
          %s187 = smul.addr %s186, 4
          %s188 = scalar_lea.vmem %s0, %s187
        $region36: #{asl_forward.5} parent=31 // pred_fallthru
          _
      $region32: #{asl_forward.5} parent=5 // pred_fallthru
        _
      %p189 = scmp.le.s32.totalorder 1, %s14
      %p190 = scmp.lt.s32.totalorder %s14, 3
      %p191 = pnand %p189, %p190
      %p192 = pneg %p191
      // Predicated region
      $region37: #{asl_forward.5} parent=5 // pred_check
        _
      $region38: #{asl_forward.5} parent=5 // pred_check_branch
        %194 = sbr.rel (%p191) target = $region40
      $region39: #{asl_forward.5} parent=5 // pred_region
        %s195 = ssub.s32 %s14, 1
        %p196 = scmp.lt.s32.totalorder %s19, 1
        %s197 = scalar_select %p196, %s19, 1
        %s198 = smul.addr %s197, 4
        %s199 = smul.addr %s198, 4
        %s200 = scalar_lea.vmem %s0, %s199
        %p201 = pneg %p40
        %p202 = pneg %p37
        %p203 = pneg %p61
        %p204 = pneg %p58
        %p205 = pneg %p82
        %p206 = pneg %p79
        %p207 = pneg %p103
        %p208 = pneg %p100
        %p209 = pneg %p124
        %p210 = pneg %p121
        %p211 = pneg %p150
        %p212 = pneg %p147
        %s213 = sand.u32 %s137, 1
        %s214 = scalar_lea.sflag [#allocation3], %s213
        %s215 = sand.u32 %s137, 1
        %s216 = scalar_lea.vmem [#allocation2], %s215
        %p217 = scmp.lt.s32.totalorder %s19, 1
        %s218 = scalar_select %p217, %s19, 1
        %s219 = smul.addr %s218, 4
        %s220 = smul.addr %s219, 4
        %s221 = scalar_lea.vmem %s0, %s220
        %v222 = vld [vmem:[%s221] sm:$0x3]
        %v223 = vld [vmem:[%s1] sm:$0xff]
        %v224 = vld [vmem:[%s1 + $0x8] sm:$0xff]
        %v225 = vld [vmem:[%s1 + $0x10] sm:$0xff]
        %v226 = vld [vmem:[%s1 + $0x18] sm:$0xff]
        %v227 = vld [vmem:[%s1 + $0x20] sm:$0xff]
        %v228 = vld [vmem:[%s1 + $0x28] sm:$0xff]
        %v229 = vld [vmem:[%s1 + $0x30] sm:$0xff]
        %v230 = vld [vmem:[%s1 + $0x38] sm:$0xff]
        %v231 = vld [vmem:[%s221 + $0x1] sm:$0x3]
        %s232 = scalar_lea.vmem %s1, 64
        %v233 = vld [vmem:[%s232] sm:$0xff]
        %v234 = vld [vmem:[%s232 + $0x8] sm:$0xff]
        %v235 = vld [vmem:[%s232 + $0x10] sm:$0xff]
        %v236 = vld [vmem:[%s232 + $0x18] sm:$0xff]
        %v237 = vld [vmem:[%s232 + $0x20] sm:$0xff]
        %v238 = vld [vmem:[%s232 + $0x28] sm:$0xff]
        %v239 = vld [vmem:[%s232 + $0x30] sm:$0xff]
        %v240 = vld [vmem:[%s232 + $0x38] sm:$0xff]
        %vm241 = vcmask 523264
        %v243 = vsel %vm241, %v231, 0
        %245 = vmatpush.msra.mxu0 0.0
        %246 = vmatpush.msra.mxu0 0.0
        %247 = vmatpush.msra.mxu0 0.0
        %248 = vmatpush.msra.mxu0 0.0
        %249 = vmatpush.msra.mxu0 0.0
        %250 = vmatpush.msra.mxu0 0.0
        %251 = vmatpush.msra.mxu0 0.0
        %252 = vmatpush.msra.mxu0 0.0
        %253 = vmatpush.msra.mxu0 %v240
        %254 = vmatpush.msra.mxu0 %v239
        %255 = vmatpush.msra.mxu0 %v238
        %256 = vmatpush.msra.mxu0 %v237
        %257 = vmatpush.msra.mxu0 %v236
        %258 = vmatpush.msra.mxu0 %v235
        %259 = vmatpush.msra.mxu0 %v234
        %260 = vmatpush.msra.mxu0 %v233
        %261 = vmatmul.f32.gmra.mxu0 %v243
        %v262 = vpop.f32.mrf.mxu0
        %v263 = vadd.f32 0.0, %v262
        %264 = vdwg.mxu0
        %v266 = vsel %vm241, %v222, 0
        %268 = vmatpush.msra.mxu0 0.0
        %269 = vmatpush.msra.mxu0 0.0
        %270 = vmatpush.msra.mxu0 0.0
        %271 = vmatpush.msra.mxu0 0.0
        %272 = vmatpush.msra.mxu0 0.0
        %273 = vmatpush.msra.mxu0 0.0
        %274 = vmatpush.msra.mxu0 0.0
        %275 = vmatpush.msra.mxu0 0.0
        %276 = vmatpush.msra.mxu0 %v230
        %277 = vmatpush.msra.mxu0 %v229
        %278 = vmatpush.msra.mxu0 %v228
        %279 = vmatpush.msra.mxu0 %v227
        %280 = vmatpush.msra.mxu0 %v226
        %281 = vmatpush.msra.mxu0 %v225
        %282 = vmatpush.msra.mxu0 %v224
        %283 = vmatpush.msra.mxu0 %v223
        %284 = vmatmul.f32.gmra.mxu0 %v266
        %v285 = vpop.f32.mrf.mxu0
        %v286 = vadd.f32 %v263, %v285
        %287 = vdwg.mxu0
        %v288 = vld [vmem:[%s221 + $0x2] sm:$0x3]
        %s289 = scalar_lea.vmem %s1, 128
        %v290 = vld [vmem:[%s289] sm:$0xff]
        %v291 = vld [vmem:[%s289 + $0x8] sm:$0xff]
        %v292 = vld [vmem:[%s289 + $0x10] sm:$0xff]
        %v293 = vld [vmem:[%s289 + $0x18] sm:$0xff]
        %v294 = vld [vmem:[%s289 + $0x20] sm:$0xff]
        %v295 = vld [vmem:[%s289 + $0x28] sm:$0xff]
        %v296 = vld [vmem:[%s289 + $0x30] sm:$0xff]
        %v297 = vld [vmem:[%s289 + $0x38] sm:$0xff]
        %v299 = vsel %vm241, %v288, 0
        %301 = vmatpush.msra.mxu0 0.0
        %302 = vmatpush.msra.mxu0 0.0
        %303 = vmatpush.msra.mxu0 0.0
        %304 = vmatpush.msra.mxu0 0.0
        %305 = vmatpush.msra.mxu0 0.0
        %306 = vmatpush.msra.mxu0 0.0
        %307 = vmatpush.msra.mxu0 0.0
        %308 = vmatpush.msra.mxu0 0.0
        %309 = vmatpush.msra.mxu0 %v297
        %310 = vmatpush.msra.mxu0 %v296
        %311 = vmatpush.msra.mxu0 %v295
        %312 = vmatpush.msra.mxu0 %v294
        %313 = vmatpush.msra.mxu0 %v293
        %314 = vmatpush.msra.mxu0 %v292
        %315 = vmatpush.msra.mxu0 %v291
        %316 = vmatpush.msra.mxu0 %v290
        %317 = vmatmul.f32.gmra.mxu0 %v299
        %v318 = vpop.f32.mrf.mxu0
        %v319 = vadd.f32 0.0, %v318
        %320 = vdwg.mxu0
        %v321 = vadd.f32 %v286, %v319
        %s322 = scalar_lea.vmem %s221, 4
        %v323 = vld [vmem:[%s322] sm:$0x3]
        %s324 = scalar_lea.vmem %s1, 192
        %v325 = vld [vmem:[%s324] sm:$0xff]
        %v326 = vld [vmem:[%s324 + $0x8] sm:$0xff]
        %v327 = vld [vmem:[%s324 + $0x10] sm:$0xff]
        %v328 = vld [vmem:[%s324 + $0x18] sm:$0xff]
        %v329 = vld [vmem:[%s324 + $0x20] sm:$0xff]
        %v330 = vld [vmem:[%s324 + $0x28] sm:$0xff]
        %v331 = vld [vmem:[%s324 + $0x30] sm:$0xff]
        %v332 = vld [vmem:[%s324 + $0x38] sm:$0xff]
        %v334 = vsel %vm241, %v323, 0
        %336 = vmatpush.msra.mxu0 0.0
        %337 = vmatpush.msra.mxu0 0.0
        %338 = vmatpush.msra.mxu0 0.0
        %339 = vmatpush.msra.mxu0 0.0
        %340 = vmatpush.msra.mxu0 0.0
        %341 = vmatpush.msra.mxu0 0.0
        %342 = vmatpush.msra.mxu0 0.0
        %343 = vmatpush.msra.mxu0 0.0
        %344 = vmatpush.msra.mxu0 %v332
        %345 = vmatpush.msra.mxu0 %v331
        %346 = vmatpush.msra.mxu0 %v330
        %347 = vmatpush.msra.mxu0 %v329
        %348 = vmatpush.msra.mxu0 %v328
        %349 = vmatpush.msra.mxu0 %v327
        %350 = vmatpush.msra.mxu0 %v326
        %351 = vmatpush.msra.mxu0 %v325
        %352 = vmatmul.f32.gmra.mxu0 %v334
        %v353 = vpop.f32.mrf.mxu0
        %v354 = vadd.f32 0.0, %v353
        %355 = vdwg.mxu0
        %v356 = vadd.f32 %v321, %v354
        %v357 = vld [vmem:[%s322 + $0x1] sm:$0x3]
        %s358 = scalar_lea.vmem %s1, 256
        %v359 = vld [vmem:[%s358] sm:$0xff]
        %v360 = vld [vmem:[%s358 + $0x8] sm:$0xff]
        %v361 = vld [vmem:[%s358 + $0x10] sm:$0xff]
        %v362 = vld [vmem:[%s358 + $0x18] sm:$0xff]
        %v363 = vld [vmem:[%s358 + $0x20] sm:$0xff]
        %v364 = vld [vmem:[%s358 + $0x28] sm:$0xff]
        %v365 = vld [vmem:[%s358 + $0x30] sm:$0xff]
        %v366 = vld [vmem:[%s358 + $0x38] sm:$0xff]
        %v368 = vsel %vm241, %v357, 0
        %370 = vmatpush.msra.mxu0 0.0
        %371 = vmatpush.msra.mxu0 0.0
        %372 = vmatpush.msra.mxu0 0.0
        %373 = vmatpush.msra.mxu0 0.0
        %374 = vmatpush.msra.mxu0 0.0
        %375 = vmatpush.msra.mxu0 0.0
        %376 = vmatpush.msra.mxu0 0.0
        %377 = vmatpush.msra.mxu0 0.0
        %378 = vmatpush.msra.mxu0 %v366
        %379 = vmatpush.msra.mxu0 %v365
        %380 = vmatpush.msra.mxu0 %v364
        %381 = vmatpush.msra.mxu0 %v363
        %382 = vmatpush.msra.mxu0 %v362
        %383 = vmatpush.msra.mxu0 %v361
        %384 = vmatpush.msra.mxu0 %v360
        %385 = vmatpush.msra.mxu0 %v359
        %386 = vmatmul.f32.gmra.mxu0 %v368
        %v387 = vpop.f32.mrf.mxu0
        %v388 = vadd.f32 0.0, %v387
        %389 = vdwg.mxu0
        %v390 = vadd.f32 %v356, %v388
        %v391 = vld [vmem:[%s322 + $0x2] sm:$0x3]
        %s392 = scalar_lea.vmem %s1, 320
        %v393 = vld [vmem:[%s392] sm:$0xff]
        %v394 = vld [vmem:[%s392 + $0x8] sm:$0xff]
        %v395 = vld [vmem:[%s392 + $0x10] sm:$0xff]
        %v396 = vld [vmem:[%s392 + $0x18] sm:$0xff]
        %v397 = vld [vmem:[%s392 + $0x20] sm:$0xff]
        %v398 = vld [vmem:[%s392 + $0x28] sm:$0xff]
        %v399 = vld [vmem:[%s392 + $0x30] sm:$0xff]
        %v400 = vld [vmem:[%s392 + $0x38] sm:$0xff]
        %v402 = vsel %vm241, %v391, 0
        %404 = vmatpush.msra.mxu0 0.0
        %405 = vmatpush.msra.mxu0 0.0
        %406 = vmatpush.msra.mxu0 0.0
        %407 = vmatpush.msra.mxu0 0.0
        %408 = vmatpush.msra.mxu0 0.0
        %409 = vmatpush.msra.mxu0 0.0
        %410 = vmatpush.msra.mxu0 0.0
        %411 = vmatpush.msra.mxu0 0.0
        %412 = vmatpush.msra.mxu0 %v400
        %413 = vmatpush.msra.mxu0 %v399
        %414 = vmatpush.msra.mxu0 %v398
        %415 = vmatpush.msra.mxu0 %v397
        %416 = vmatpush.msra.mxu0 %v396
        %417 = vmatpush.msra.mxu0 %v395
        %418 = vmatpush.msra.mxu0 %v394
        %419 = vmatpush.msra.mxu0 %v393
        %420 = vmatmul.f32.gmra.mxu0 %v402
        %v421 = vpop.f32.mrf.mxu0
        %v422 = vadd.f32 0.0, %v421
        %423 = vdwg.mxu0
        %v424 = vadd.f32 %v390, %v422
        %s425 = scalar_lea.vmem %s221, 8
        %v426 = vld [vmem:[%s425] sm:$0x3]
        %s427 = scalar_lea.vmem %s1, 384
        %v428 = vld [vmem:[%s427] sm:$0xff]
        %v429 = vld [vmem:[%s427 + $0x8] sm:$0xff]
        %v430 = vld [vmem:[%s427 + $0x10] sm:$0xff]
        %v431 = vld [vmem:[%s427 + $0x18] sm:$0xff]
        %v432 = vld [vmem:[%s427 + $0x20] sm:$0xff]
        %v433 = vld [vmem:[%s427 + $0x28] sm:$0xff]
        %v434 = vld [vmem:[%s427 + $0x30] sm:$0xff]
        %v435 = vld [vmem:[%s427 + $0x38] sm:$0xff]
        %v437 = vsel %vm241, %v426, 0
        %439 = vmatpush.msra.mxu0 0.0
        %440 = vmatpush.msra.mxu0 0.0
        %441 = vmatpush.msra.mxu0 0.0
        %442 = vmatpush.msra.mxu0 0.0
        %443 = vmatpush.msra.mxu0 0.0
        %444 = vmatpush.msra.mxu0 0.0
        %445 = vmatpush.msra.mxu0 0.0
        %446 = vmatpush.msra.mxu0 0.0
        %447 = vmatpush.msra.mxu0 %v435
        %448 = vmatpush.msra.mxu0 %v434
        %449 = vmatpush.msra.mxu0 %v433
        %450 = vmatpush.msra.mxu0 %v432
        %451 = vmatpush.msra.mxu0 %v431
        %452 = vmatpush.msra.mxu0 %v430
        %453 = vmatpush.msra.mxu0 %v429
        %454 = vmatpush.msra.mxu0 %v428
        %455 = vmatmul.f32.gmra.mxu0 %v437
        %v456 = vpop.f32.mrf.mxu0
        %v457 = vadd.f32 0.0, %v456
        %458 = vdwg.mxu0
        %v459 = vadd.f32 %v424, %v457
        %v460 = vld [vmem:[%s425 + $0x1] sm:$0x3]
        %s461 = scalar_lea.vmem %s1, 448
        %v462 = vld [vmem:[%s461] sm:$0xff]
        %v463 = vld [vmem:[%s461 + $0x8] sm:$0xff]
        %v464 = vld [vmem:[%s461 + $0x10] sm:$0xff]
        %v465 = vld [vmem:[%s461 + $0x18] sm:$0xff]
        %v466 = vld [vmem:[%s461 + $0x20] sm:$0xff]
        %v467 = vld [vmem:[%s461 + $0x28] sm:$0xff]
        %v468 = vld [vmem:[%s461 + $0x30] sm:$0xff]
        %v469 = vld [vmem:[%s461 + $0x38] sm:$0xff]
        %v471 = vsel %vm241, %v460, 0
        %473 = vmatpush.msra.mxu0 0.0
        %474 = vmatpush.msra.mxu0 0.0
        %475 = vmatpush.msra.mxu0 0.0
        %476 = vmatpush.msra.mxu0 0.0
        %477 = vmatpush.msra.mxu0 0.0
        %478 = vmatpush.msra.mxu0 0.0
        %479 = vmatpush.msra.mxu0 0.0
        %480 = vmatpush.msra.mxu0 0.0
        %481 = vmatpush.msra.mxu0 %v469
        %482 = vmatpush.msra.mxu0 %v468
        %483 = vmatpush.msra.mxu0 %v467
        %484 = vmatpush.msra.mxu0 %v466
        %485 = vmatpush.msra.mxu0 %v465
        %486 = vmatpush.msra.mxu0 %v464
        %487 = vmatpush.msra.mxu0 %v463
        %488 = vmatpush.msra.mxu0 %v462
        %489 = vmatmul.f32.gmra.mxu0 %v471
        %v490 = vpop.f32.mrf.mxu0
        %v491 = vadd.f32 0.0, %v490
        %492 = vdwg.mxu0
        %v493 = vadd.f32 %v459, %v491
        %v494 = vld [vmem:[%s425 + $0x2] sm:$0x3]
        %s495 = scalar_lea.vmem %s1, 512
        %v496 = vld [vmem:[%s495] sm:$0xff]
        %v497 = vld [vmem:[%s495 + $0x8] sm:$0xff]
        %v498 = vld [vmem:[%s495 + $0x10] sm:$0xff]
        %v499 = vld [vmem:[%s495 + $0x18] sm:$0xff]
        %v500 = vld [vmem:[%s495 + $0x20] sm:$0xff]
        %v501 = vld [vmem:[%s495 + $0x28] sm:$0xff]
        %v502 = vld [vmem:[%s495 + $0x30] sm:$0xff]
        %v503 = vld [vmem:[%s495 + $0x38] sm:$0xff]
        %v505 = vsel %vm241, %v494, 0
        %507 = vmatpush.msra.mxu0 0.0
        %508 = vmatpush.msra.mxu0 0.0
        %509 = vmatpush.msra.mxu0 0.0
        %510 = vmatpush.msra.mxu0 0.0
        %511 = vmatpush.msra.mxu0 0.0
        %512 = vmatpush.msra.mxu0 0.0
        %513 = vmatpush.msra.mxu0 0.0
        %514 = vmatpush.msra.mxu0 0.0
        %515 = vmatpush.msra.mxu0 %v503
        %516 = vmatpush.msra.mxu0 %v502
        %517 = vmatpush.msra.mxu0 %v501
        %518 = vmatpush.msra.mxu0 %v500
        %519 = vmatpush.msra.mxu0 %v499
        %520 = vmatpush.msra.mxu0 %v498
        %521 = vmatpush.msra.mxu0 %v497
        %522 = vmatpush.msra.mxu0 %v496
        %523 = vmatmul.f32.gmra.mxu0 %v505
        %v524 = vpop.f32.mrf.mxu0
        %v525 = vadd.f32 0.0, %v524
        %526 = vdwg.mxu0
        %v527 = vadd.f32 %v493, %v525
        %v528 = vld [vmem:[%s2] sm:$0x1]
        %v530 = vperm.slane %v528, 0
        %v532 = vadd.f32 %v527, %v530
        %v533 = vmax.f32 %v532, 0.0
        %vm534 = vcmask 254976
        %v535 = vsel %vm534, %v533, 0.0
        %v536 = vrot.slane %v535, 4
        %v537 = vadd.f32 %v535, %v536
        %v538 = vrot.slane %v537, 2
        %v539 = vadd.f32 %v537, %v538
        %v540 = vrot.slane %v539, 1
        %v541 = vadd.f32 %v539, %v540
        %v542 = vadd.f32 %v541, 0.0
        %543 = vmatpush.msra.mxu0 0.0
        %544 = vmatpush.msra.mxu0 0.0
        %545 = vmatpush.msra.mxu0 0.0
        %546 = vmatpush.msra.mxu0 0.0
        %547 = vmatpush.msra.mxu0 0.0
        %548 = vmatpush.msra.mxu0 0.0
        %549 = vmatpush.msra.mxu0 0.0
        %550 = vmatpush.msra.mxu0 0.0
        %551 = vmatpush.msra.mxu0 %v240
        %552 = vmatpush.msra.mxu0 %v239
        %553 = vmatpush.msra.mxu0 %v238
        %554 = vmatpush.msra.mxu0 %v237
        %555 = vmatpush.msra.mxu0 %v236
        %556 = vmatpush.msra.mxu0 %v235
        %557 = vmatpush.msra.mxu0 %v234
        %558 = vmatpush.msra.mxu0 %v233
        %559 = vmatmul.f32.gmra.mxu0 %v368
        %v560 = vpop.f32.mrf.mxu0
        %v561 = vadd.f32 0.0, %v560
        %562 = vdwg.mxu0
        %563 = vmatpush.msra.mxu0 0.0
        %564 = vmatpush.msra.mxu0 0.0
        %565 = vmatpush.msra.mxu0 0.0
        %566 = vmatpush.msra.mxu0 0.0
        %567 = vmatpush.msra.mxu0 0.0
        %568 = vmatpush.msra.mxu0 0.0
        %569 = vmatpush.msra.mxu0 0.0
        %570 = vmatpush.msra.mxu0 0.0
        %571 = vmatpush.msra.mxu0 %v230
        %572 = vmatpush.msra.mxu0 %v229
        %573 = vmatpush.msra.mxu0 %v228
        %574 = vmatpush.msra.mxu0 %v227
        %575 = vmatpush.msra.mxu0 %v226
        %576 = vmatpush.msra.mxu0 %v225
        %577 = vmatpush.msra.mxu0 %v224
        %578 = vmatpush.msra.mxu0 %v223
        %579 = vmatmul.f32.gmra.mxu0 %v334
        %v580 = vpop.f32.mrf.mxu0
        %v581 = vadd.f32 %v561, %v580
        %582 = vdwg.mxu0
        %583 = vmatpush.msra.mxu0 0.0
        %584 = vmatpush.msra.mxu0 0.0
        %585 = vmatpush.msra.mxu0 0.0
        %586 = vmatpush.msra.mxu0 0.0
        %587 = vmatpush.msra.mxu0 0.0
        %588 = vmatpush.msra.mxu0 0.0
        %589 = vmatpush.msra.mxu0 0.0
        %590 = vmatpush.msra.mxu0 0.0
        %591 = vmatpush.msra.mxu0 %v297
        %592 = vmatpush.msra.mxu0 %v296
        %593 = vmatpush.msra.mxu0 %v295
        %594 = vmatpush.msra.mxu0 %v294
        %595 = vmatpush.msra.mxu0 %v293
        %596 = vmatpush.msra.mxu0 %v292
        %597 = vmatpush.msra.mxu0 %v291
        %598 = vmatpush.msra.mxu0 %v290
        %599 = vmatmul.f32.gmra.mxu0 %v402
        %v600 = vpop.f32.mrf.mxu0
        %v601 = vadd.f32 0.0, %v600
        %602 = vdwg.mxu0
        %v603 = vadd.f32 %v581, %v601
        %604 = vmatpush.msra.mxu0 0.0
        %605 = vmatpush.msra.mxu0 0.0
        %606 = vmatpush.msra.mxu0 0.0
        %607 = vmatpush.msra.mxu0 0.0
        %608 = vmatpush.msra.mxu0 0.0
        %609 = vmatpush.msra.mxu0 0.0
        %610 = vmatpush.msra.mxu0 0.0
        %611 = vmatpush.msra.mxu0 0.0
        %612 = vmatpush.msra.mxu0 %v332
        %613 = vmatpush.msra.mxu0 %v331
        %614 = vmatpush.msra.mxu0 %v330
        %615 = vmatpush.msra.mxu0 %v329
        %616 = vmatpush.msra.mxu0 %v328
        %617 = vmatpush.msra.mxu0 %v327
        %618 = vmatpush.msra.mxu0 %v326
        %619 = vmatpush.msra.mxu0 %v325
        %620 = vmatmul.f32.gmra.mxu0 %v437
        %v621 = vpop.f32.mrf.mxu0
        %v622 = vadd.f32 0.0, %v621
        %623 = vdwg.mxu0
        %v624 = vadd.f32 %v603, %v622
        %625 = vmatpush.msra.mxu0 0.0
        %626 = vmatpush.msra.mxu0 0.0
        %627 = vmatpush.msra.mxu0 0.0
        %628 = vmatpush.msra.mxu0 0.0
        %629 = vmatpush.msra.mxu0 0.0
        %630 = vmatpush.msra.mxu0 0.0
        %631 = vmatpush.msra.mxu0 0.0
        %632 = vmatpush.msra.mxu0 0.0
        %633 = vmatpush.msra.mxu0 %v366
        %634 = vmatpush.msra.mxu0 %v365
        %635 = vmatpush.msra.mxu0 %v364
        %636 = vmatpush.msra.mxu0 %v363
        %637 = vmatpush.msra.mxu0 %v362
        %638 = vmatpush.msra.mxu0 %v361
        %639 = vmatpush.msra.mxu0 %v360
        %640 = vmatpush.msra.mxu0 %v359
        %641 = vmatmul.f32.gmra.mxu0 %v471
        %v642 = vpop.f32.mrf.mxu0
        %v643 = vadd.f32 0.0, %v642
        %644 = vdwg.mxu0
        %v645 = vadd.f32 %v624, %v643
        %646 = vmatpush.msra.mxu0 0.0
        %647 = vmatpush.msra.mxu0 0.0
        %648 = vmatpush.msra.mxu0 0.0
        %649 = vmatpush.msra.mxu0 0.0
        %650 = vmatpush.msra.mxu0 0.0
        %651 = vmatpush.msra.mxu0 0.0
        %652 = vmatpush.msra.mxu0 0.0
        %653 = vmatpush.msra.mxu0 0.0
        %654 = vmatpush.msra.mxu0 %v400
        %655 = vmatpush.msra.mxu0 %v399
        %656 = vmatpush.msra.mxu0 %v398
        %657 = vmatpush.msra.mxu0 %v397
        %658 = vmatpush.msra.mxu0 %v396
        %659 = vmatpush.msra.mxu0 %v395
        %660 = vmatpush.msra.mxu0 %v394
        %661 = vmatpush.msra.mxu0 %v393
        %662 = vmatmul.f32.gmra.mxu0 %v505
        %v663 = vpop.f32.mrf.mxu0
        %v664 = vadd.f32 0.0, %v663
        %665 = vdwg.mxu0
        %v666 = vadd.f32 %v645, %v664
        %s667 = scalar_lea.vmem %s221, 12
        %v668 = vld [vmem:[%s667] sm:$0x3]
        %v670 = vsel %vm241, %v668, 0
        %672 = vmatpush.msra.mxu0 0.0
        %673 = vmatpush.msra.mxu0 0.0
        %674 = vmatpush.msra.mxu0 0.0
        %675 = vmatpush.msra.mxu0 0.0
        %676 = vmatpush.msra.mxu0 0.0
        %677 = vmatpush.msra.mxu0 0.0
        %678 = vmatpush.msra.mxu0 0.0
        %679 = vmatpush.msra.mxu0 0.0
        %680 = vmatpush.msra.mxu0 %v435
        %681 = vmatpush.msra.mxu0 %v434
        %682 = vmatpush.msra.mxu0 %v433
        %683 = vmatpush.msra.mxu0 %v432
        %684 = vmatpush.msra.mxu0 %v431
        %685 = vmatpush.msra.mxu0 %v430
        %686 = vmatpush.msra.mxu0 %v429
        %687 = vmatpush.msra.mxu0 %v428
        %688 = vmatmul.f32.gmra.mxu0 %v670
        %v689 = vpop.f32.mrf.mxu0
        %v690 = vadd.f32 0.0, %v689
        %691 = vdwg.mxu0
        %v692 = vadd.f32 %v666, %v690
        %v693 = vld [vmem:[%s667 + $0x1] sm:$0x3]
        %v695 = vsel %vm241, %v693, 0
        %697 = vmatpush.msra.mxu0 0.0
        %698 = vmatpush.msra.mxu0 0.0
        %699 = vmatpush.msra.mxu0 0.0
        %700 = vmatpush.msra.mxu0 0.0
        %701 = vmatpush.msra.mxu0 0.0
        %702 = vmatpush.msra.mxu0 0.0
        %703 = vmatpush.msra.mxu0 0.0
        %704 = vmatpush.msra.mxu0 0.0
        %705 = vmatpush.msra.mxu0 %v469
        %706 = vmatpush.msra.mxu0 %v468
        %707 = vmatpush.msra.mxu0 %v467
        %708 = vmatpush.msra.mxu0 %v466
        %709 = vmatpush.msra.mxu0 %v465
        %710 = vmatpush.msra.mxu0 %v464
        %711 = vmatpush.msra.mxu0 %v463
        %712 = vmatpush.msra.mxu0 %v462
        %713 = vmatmul.f32.gmra.mxu0 %v695
        %v714 = vpop.f32.mrf.mxu0
        %v715 = vadd.f32 0.0, %v714
        %716 = vdwg.mxu0
        %v717 = vadd.f32 %v692, %v715
        %v718 = vld [vmem:[%s667 + $0x2] sm:$0x3]
        %v720 = vsel %vm241, %v718, 0
        %722 = vmatpush.msra.mxu0 0.0
        %723 = vmatpush.msra.mxu0 0.0
        %724 = vmatpush.msra.mxu0 0.0
        %725 = vmatpush.msra.mxu0 0.0
        %726 = vmatpush.msra.mxu0 0.0
        %727 = vmatpush.msra.mxu0 0.0
        %728 = vmatpush.msra.mxu0 0.0
        %729 = vmatpush.msra.mxu0 0.0
        %730 = vmatpush.msra.mxu0 %v503
        %731 = vmatpush.msra.mxu0 %v502
        %732 = vmatpush.msra.mxu0 %v501
        %733 = vmatpush.msra.mxu0 %v500
        %734 = vmatpush.msra.mxu0 %v499
        %735 = vmatpush.msra.mxu0 %v498
        %736 = vmatpush.msra.mxu0 %v497
        %737 = vmatpush.msra.mxu0 %v496
        %738 = vmatmul.f32.gmra.mxu0 %v720
        %v739 = vpop.f32.mrf.mxu0
        %v740 = vadd.f32 0.0, %v739
        %741 = vdwg.mxu0
        %v742 = vadd.f32 %v717, %v740
        %v743 = vadd.f32 %v742, %v530
        %v744 = vmax.f32 %v743, 0.0
        %v745 = vsel %vm534, %v744, 0.0
        %v746 = vrot.slane %v745, 4
        %v747 = vadd.f32 %v745, %v746
        %v748 = vrot.slane %v747, 2
        %v749 = vadd.f32 %v747, %v748
        %v750 = vrot.slane %v749, 1
        %v751 = vadd.f32 %v749, %v750
        %v752 = vadd.f32 %v542, %v751
        %v753 = vmul.f32 %v752, 0.25
        %v754 = vld [vmem:[%s3] sm:$0xff]
        %v755 = vld [vmem:[%s3 + $0x8] sm:$0xff]
        %v756 = vld [vmem:[%s3 + $0x10] sm:$0xff]
        %v757 = vld [vmem:[%s3 + $0x18] sm:$0xff]
        %v758 = vld [vmem:[%s4] sm:$0x1]
        %vm759 = vcmask 261120
        %v761 = vsel %vm759, %v753, 0
        %763 = vmatpush.msra.mxu0 0.0
        %764 = vmatpush.msra.mxu0 0.0
        %765 = vmatpush.msra.mxu0 0.0
        %766 = vmatpush.msra.mxu0 0.0
        %767 = vmatpush.msra.mxu0 0.0
        %768 = vmatpush.msra.mxu0 0.0
        %769 = vmatpush.msra.mxu0 0.0
        %770 = vmatpush.msra.mxu0 0.0
        %771 = vmatpush.msra.mxu0 0.0
        %772 = vmatpush.msra.mxu0 0.0
        %773 = vmatpush.msra.mxu0 0.0
        %774 = vmatpush.msra.mxu0 0.0
        %775 = vmatpush.msra.mxu0 %v757
        %776 = vmatpush.msra.mxu0 %v756
        %777 = vmatpush.msra.mxu0 %v755
        %778 = vmatpush.msra.mxu0 %v754
        %779 = vmatmul.f32.gmra.mxu0 %v761
        %v780 = vpop.f32.mrf.mxu0
        %v781 = vadd.f32 %v758, %v780
        %782 = vdwg.mxu0
        %783 = vst [vmem:[%s216] sm:$0x1] %v781
        %s784 = sand.u32 %s137, 1
        %s785 = scalar_lea.sflag [#allocation3], %s784
        %s786 = sand.u32 %s137, 1
        %s787 = scalar_lea.vmem [#allocation2], %s786
        // Predicated region
        $region41: #{asl_forward.5} parent=39 // pred_check
          %p788 = pneg %p147
        $region42: #{asl_forward.5} parent=39 // pred_check_branch
          %790 = sbr.rel (%p788) target = $region44
        $region43: #{asl_forward.5} parent=39 // pred_region
          %792 = vsyncadd %s785, 0
          %s793 = scalar_lea.hbm %s5, %s19
          %s795 = sshll.u32 %s787, 4
          %s796 = int_to_ptr.vmem [resolvable:$true] %s795
          %s797 = sshll.u32 %s793, 4
          %s798 = int_to_ptr.hbm [resolvable:$true] %s797
          %800 = dma.vmem_to_hbm [thread:$0]  %s796, 16, %s798, %s785
        $region44: #{asl_forward.5} parent=39 // pred_fallthru
          _
      $region40: #{asl_forward.5} parent=5 // pred_fallthru
        _
      %p801 = scmp.le.s32.totalorder 2, %s14
      // Predicated region
      $region45: #{asl_forward.5} parent=5 // pred_check
        %p802 = pneg %p801
      $region46: #{asl_forward.5} parent=5 // pred_check_branch
        %804 = sbr.rel (%p802) target = $region48
      $region47: #{asl_forward.5} parent=5 // pred_region
        %s805 = ssub.s32 %s14, 2
        // Predicated region
        $region49: #{asl_forward.5} parent=47 // pred_check
          %p806 = pneg %p153
        $region50: #{asl_forward.5} parent=47 // pred_check_branch
          %808 = sbr.rel (%p806) target = $region52
        $region51: #{asl_forward.5} parent=47 // pred_region
          %s809 = sand.u32 %s138, 1
          %s810 = scalar_lea.sflag [#allocation3], %s809
          %s811 = sand.u32 %s138, 1
          %s812 = scalar_lea.vmem [#allocation2], %s811
          %814 = dma.done %s810, 16
        $region52: #{asl_forward.5} parent=47 // pred_fallthru
          _
      $region48: #{asl_forward.5} parent=5 // pred_fallthru
        _
    $region6: #{asl_forward.5} parent=1 // loop_footer
      %s18 = sadd.s32 1, %s14
    $region7: #{asl_forward.5} parent=1 // loop_footer_branch
      %13 = sbr.rel target = $region3
    $region8: #{asl_forward.5} parent=1 // loop_exit
      _
    %815 = vsyncpa [#allocation3], 1
    %s816 = scalar_lea.sflag [#allocation3], 1
    %817 = vsyncpa %s816, 1

// kernel: asl_forward.3
$region0: #{asl_forward.3}
  #allocation0 [shape = 'u32[]', space=smem, size = 0x4, offset = 0x4, fixed_abs, tag = 'smem constant byte address 0x4 - core index']
  #allocation1 [shape = 'u32[72,128]{1,0:T(1,128)}', space=vmem, size = 0x9000, scoped, tag = 'internal scratch']
  %s0 = inlined_call_operand.vmem [shape: f32[2,18,18,1], index: 0, kind: input, shape index: {}]
  %s1 = inlined_call_operand.vmem [shape: f32[9,1,128], index: 1, kind: input, shape index: {}]
  %s2 = inlined_call_operand.vmem [shape: f32[256,256], index: 2, kind: input, shape index: {}]
  %s3 = inlined_call_operand.vmem [shape: f32[1,128], index: 3, kind: input, shape index: {}]
  %s4 = inlined_call_operand.vmem [shape: f32[2,64,128], index: 4, kind: output, shape index: {}]
  %s5 = sld [smem:[#allocation0]]
  $region49: #{asl_forward.3} parent=0
    _
  %s7 = ssub.s32 1, %s5
  %s8 = scalar_select 0, %s7, %s5
  loop: start=0, step=1, limit=4
  $region2: #{asl_forward.3} parent=0 // loop_pre_header
    _
  $region3: #{asl_forward.3} parent=0 // loop_header
    %s10 = sphi 0, %s14
    %p11 = scmp.ge.s32.totalorder %s10, 4
    %s20 = sphi 0, %s22
    %s23 = sphi 0, %s20
    %s24 = sphi 0, %s23
    %s40 = sphi 0, %s24
    %s44 = sphi 0, %s44
    %s46 = sphi 0, %s44
    %s47 = sphi 0, %s46
    %s61 = sphi 0, %s47
    %s65 = sphi 0, %s65
    %s67 = sphi 0, %s65
    %s68 = sphi 0, %s67
    %s82 = sphi 0, %s68
    %s86 = sphi 0, %s86
    %s88 = sphi 0, %s86
    %s89 = sphi 0, %s88
    %s103 = sphi 0, %s89
    %s109 = sphi 0, %s111
    %s112 = sphi 0, %s109
    %s113 = sphi 0, %s112
    %s129 = sphi 0, %s113
  $region4: #{asl_forward.3} parent=0 // loop_header_branch
    %13 = sbr.rel (%p11) target = $region8
  $region5: #{asl_forward.3} parent=0 // loop_body
    %s15 = ssub.s32 %s10, 1
    %s16 = ssub.s32 %s10, 2
    %s17 = sadd.s32 %s10, 1
    %s18 = ssub.s32 %s10, %s17
    %p19 = scmp.eq.s32.totalorder %s18, 0
    %s21 = sadd.s32 %s20, 1
    %s22 = scalar_select %p19, %s20, %s21
    %p25 = pneg %p19
    %p26 = scmp.eq.s32.totalorder %s10, 1
    %p27 = por %p25, %p26
    %p28 = scmp.ne.s32.totalorder %s20, %s23
    %p29 = scmp.eq.s32.totalorder %s10, 0
    %p30 = por %p28, %p29
    %p31 = scmp.ne.s32.totalorder %s20, %s23
    %p32 = scmp.eq.s32.totalorder %s15, 1
    %p33 = por %p31, %p32
    %p34 = scmp.ne.s32.totalorder %s23, %s24
    %p35 = scmp.eq.s32.totalorder %s15, 0
    %p36 = por %p34, %p35
    %p37 = scmp.ne.s32.totalorder %s23, %s24
    %p38 = scmp.eq.s32.totalorder %s16, 1
    %p39 = por %p37, %p38
    %p41 = scmp.ne.s32.totalorder %s24, %s40
    %p42 = scmp.eq.s32.totalorder %s16, 0
    %p43 = por %p41, %p42
    %s45 = sadd.s32 %s44, 1
    %p48 = scmp.eq.s32.totalorder %s10, 1
    %p49 = scmp.ne.s32.totalorder %s44, %s46
    %p50 = scmp.eq.s32.totalorder %s10, 0
    %p51 = por %p49, %p50
    %p52 = scmp.ne.s32.totalorder %s44, %s46
    %p53 = scmp.eq.s32.totalorder %s15, 1
    %p54 = por %p52, %p53
    %p55 = scmp.ne.s32.totalorder %s46, %s47
    %p56 = scmp.eq.s32.totalorder %s15, 0
    %p57 = por %p55, %p56
    %p58 = scmp.ne.s32.totalorder %s46, %s47
    %p59 = scmp.eq.s32.totalorder %s16, 1
    %p60 = por %p58, %p59
    %p62 = scmp.ne.s32.totalorder %s47, %s61
    %p63 = scmp.eq.s32.totalorder %s16, 0
    %p64 = por %p62, %p63
    %s66 = sadd.s32 %s65, 1
    %p69 = scmp.eq.s32.totalorder %s10, 1
    %p70 = scmp.ne.s32.totalorder %s65, %s67
    %p71 = scmp.eq.s32.totalorder %s10, 0
    %p72 = por %p70, %p71
    %p73 = scmp.ne.s32.totalorder %s65, %s67
    %p74 = scmp.eq.s32.totalorder %s15, 1
    %p75 = por %p73, %p74
    %p76 = scmp.ne.s32.totalorder %s67, %s68
    %p77 = scmp.eq.s32.totalorder %s15, 0
    %p78 = por %p76, %p77
    %p79 = scmp.ne.s32.totalorder %s67, %s68
    %p80 = scmp.eq.s32.totalorder %s16, 1
    %p81 = por %p79, %p80
    %p83 = scmp.ne.s32.totalorder %s68, %s82
    %p84 = scmp.eq.s32.totalorder %s16, 0
    %p85 = por %p83, %p84
    %s87 = sadd.s32 %s86, 1
    %p90 = scmp.eq.s32.totalorder %s10, 1
    %p91 = scmp.ne.s32.totalorder %s86, %s88
    %p92 = scmp.eq.s32.totalorder %s10, 0
    %p93 = por %p91, %p92
    %p94 = scmp.ne.s32.totalorder %s86, %s88
    %p95 = scmp.eq.s32.totalorder %s15, 1
    %p96 = por %p94, %p95
    %p97 = scmp.ne.s32.totalorder %s88, %s89
    %p98 = scmp.eq.s32.totalorder %s15, 0
    %p99 = por %p97, %p98
    %p100 = scmp.ne.s32.totalorder %s88, %s89
    %p101 = scmp.eq.s32.totalorder %s16, 1
    %p102 = por %p100, %p101
    %p104 = scmp.ne.s32.totalorder %s89, %s103
    %p105 = scmp.eq.s32.totalorder %s16, 0
    %p106 = por %p104, %p105
    %s107 = ssub.s32 %s10, %s17
    %p108 = scmp.eq.s32.totalorder %s107, 0
    %s110 = sadd.s32 %s109, 1
    %s111 = scalar_select %p108, %s109, %s110
    %p114 = pneg %p108
    %p115 = scmp.eq.s32.totalorder %s10, 1
    %p116 = por %p114, %p115
    %p117 = scmp.ne.s32.totalorder %s109, %s112
    %p118 = scmp.eq.s32.totalorder %s10, 0
    %p119 = por %p117, %p118
    %p120 = scmp.ne.s32.totalorder %s109, %s112
    %p121 = scmp.eq.s32.totalorder %s15, 1
    %p122 = por %p120, %p121
    %p123 = scmp.ne.s32.totalorder %s112, %s113
    %p124 = scmp.eq.s32.totalorder %s15, 0
    %p125 = por %p123, %p124
    %p126 = scmp.ne.s32.totalorder %s112, %s113
    %p127 = scmp.eq.s32.totalorder %s16, 1
    %p128 = por %p126, %p127
    %p130 = scmp.ne.s32.totalorder %s113, %s129
    %p131 = scmp.eq.s32.totalorder %s16, 0
    %p132 = por %p130, %p131
    %p133 = scmp.le.s32.totalorder 1, %s10
    %p134 = scmp.lt.s32.totalorder %s10, 3
    %p135 = pnand %p133, %p134
    %p136 = pneg %p135
    // Predicated region
    $region9: #{asl_forward.3} parent=5 // pred_check
      _
    $region10: #{asl_forward.3} parent=5 // pred_check_branch
      %138 = sbr.rel (%p135) target = $region12
    $region11: #{asl_forward.3} parent=5 // pred_region
      %s139 = ssub.s32 %s10, 1
      // Predicated region
      $region13: #{asl_forward.3} parent=11 // pred_check
        %p140 = pneg %p57
      $region14: #{asl_forward.3} parent=11 // pred_check_branch
        %142 = sbr.rel (%p140) target = $region16
      $region15: #{asl_forward.3} parent=11 // pred_region
        _
      $region16: #{asl_forward.3} parent=11 // pred_fallthru
        _
      // Predicated region
      $region17: #{asl_forward.3} parent=11 // pred_check
        %p143 = pneg %p78
      $region18: #{asl_forward.3} parent=11 // pred_check_branch
        %145 = sbr.rel (%p143) target = $region20
      $region19: #{asl_forward.3} parent=11 // pred_region
        _
      $region20: #{asl_forward.3} parent=11 // pred_fallthru
        _
      // Predicated region
      $region21: #{asl_forward.3} parent=11 // pred_check
        %p146 = pneg %p99
      $region22: #{asl_forward.3} parent=11 // pred_check_branch
        %148 = sbr.rel (%p146) target = $region24
      $region23: #{asl_forward.3} parent=11 // pred_region
        _
      $region24: #{asl_forward.3} parent=11 // pred_fallthru
        _
    $region12: #{asl_forward.3} parent=5 // pred_fallthru
      _
    %p149 = scmp.lt.s32.totalorder %s10, 2
    // Predicated region
    $region25: #{asl_forward.3} parent=5 // pred_check
      %p150 = pneg %p149
    $region26: #{asl_forward.3} parent=5 // pred_check_branch
      %152 = sbr.rel (%p150) target = $region28
    $region27: #{asl_forward.3} parent=5 // pred_region
      // Predicated region
      $region29: #{asl_forward.3} parent=27 // pred_check
        %p153 = pneg %p30
      $region30: #{asl_forward.3} parent=27 // pred_check_branch
        %155 = sbr.rel (%p153) target = $region32
      $region31: #{asl_forward.3} parent=27 // pred_region
        %p156 = scmp.lt.s32.totalorder %s10, 1
        %s157 = scalar_select %p156, %s10, 1
        %s158 = smul.addr %s157, 54
        %s159 = smul.addr %s158, 8
        %s160 = scalar_lea.vmem %s0, %s159
      $region32: #{asl_forward.3} parent=27 // pred_fallthru
        _
    $region28: #{asl_forward.3} parent=5 // pred_fallthru
      _
    %p161 = scmp.le.s32.totalorder 1, %s10
    %p162 = scmp.lt.s32.totalorder %s10, 3
    %p163 = pnand %p161, %p162
    %p164 = pneg %p163
    // Predicated region
    $region33: #{asl_forward.3} parent=5 // pred_check
      _
    $region34: #{asl_forward.3} parent=5 // pred_check_branch
      %166 = sbr.rel (%p163) target = $region36
    $region35: #{asl_forward.3} parent=5 // pred_region
      %s167 = ssub.s32 %s10, 1
      %p168 = scmp.lt.s32.totalorder %s15, 1
      %s169 = scalar_select %p168, %s15, 1
      %s170 = smul.addr %s169, 54
      %s171 = smul.addr %s170, 8
      %s172 = scalar_lea.vmem %s0, %s171
      %p173 = pneg %p36
      %p174 = pneg %p33
      %p175 = pneg %p57
      %p176 = pneg %p54
      %p177 = pneg %p78
      %p178 = pneg %p75
      %p179 = pneg %p99
      %p180 = pneg %p96
      %p181 = pneg %p125
      %p182 = pneg %p122
      %p183 = scmp.lt.s32.totalorder %s15, 1
      %s184 = scalar_select %p183, %s15, 1
      %s185 = smul.addr %s184, 8
      %s186 = smul.addr %s185, 8
      %s187 = scalar_lea.vmem %s4, %s186
      %p188 = scmp.lt.s32.totalorder %s15, 1
      %s189 = scalar_select %p188, %s15, 1
      %s190 = smul.addr %s189, 54
      %s191 = smul.addr %s190, 8
      %s192 = scalar_lea.vmem %s0, %s191
      %p193 = scmp.lt.s32.totalorder %s15, 1
      %s194 = scalar_select %p193, %s15, 1
      %s195 = smul.addr %s194, 8
      %s196 = smul.addr %s195, 8
      %s197 = scalar_lea.vmem %s4, %s196
      %v198 = vld [vmem:[%s192] sm:$0xff]
      %v199 = vld [vmem:[%s192 + $0x8] sm:$0xff]
      %v200 = vld [vmem:[%s192 + $0x18] sm:$0xff]
      %v201 = vld [vmem:[%s192 + $0x20] sm:$0xff]
      %v202 = vld [vmem:[%s192 + $0x30] sm:$0xff]
      %v203 = vld [vmem:[%s192 + $0x38] sm:$0xff]
      %v204 = vld [vmem:[%s192 + $0x48] sm:$0xff]
      %v205 = vld [vmem:[%s192 + $0x50] sm:$0xff]
      %v206 = vld [vmem:[%s192 + $0x60] sm:$0xff]
      %v207 = vld [vmem:[%s192 + $0x68] sm:$0xff]
      %v208 = vld [vmem:[%s192 + $0x78] sm:$0xff]
      %v209 = vld [vmem:[%s192 + $0x80] sm:$0xff]
      %v210 = vld [vmem:[%s192 + $0x90] sm:$0xff]
      %v211 = vld [vmem:[%s192 + $0x98] sm:$0xff]
      %v212 = vld [vmem:[%s192 + $0xa8] sm:$0xff]
      %v213 = vld [vmem:[%s192 + $0xb0] sm:$0xff]
      %v214 = vld [vmem:[%s192 + $0xc0] sm:$0xff]
      %v215 = vld [vmem:[%s192 + $0xc8] sm:$0xff]
      %v216 = vld [vmem:[%s192 + $0xd8] sm:$0xff]
      %v217 = vld [vmem:[%s192 + $0xe0] sm:$0xff]
      %v218 = vld [vmem:[%s192 + $0xf0] sm:$0xff]
      %v219 = vld [vmem:[%s192 + $0xf8] sm:$0xff]
      %v220 = vld [vmem:[%s192 + $0x108] sm:$0xff]
      %v221 = vld [vmem:[%s192 + $0x110] sm:$0xff]
      %v222 = vld [vmem:[%s192 + $0x120] sm:$0xff]
      %v223 = vld [vmem:[%s192 + $0x128] sm:$0xff]
      %v224 = vld [vmem:[%s192 + $0x138] sm:$0xff]
      %v225 = vld [vmem:[%s192 + $0x140] sm:$0xff]
      %v226 = vld [vmem:[%s192 + $0x150] sm:$0xff]
      %v227 = vld [vmem:[%s192 + $0x158] sm:$0xff]
      %v228 = vld [vmem:[%s192 + $0x168] sm:$0xff]
      %v229 = vld [vmem:[%s192 + $0x170] sm:$0xff]
      %v230 = vld [vmem:[%s1] sm:$0x1]
      %232 = vset.pattern.permute.xlu0 0
      %233 = vperm.xlu0 %232, %v198
      %v234 = vpop.permute.xlu0 %233
      %237 = vset.pattern.permute.xlu0 0
      %238 = vperm.xlu0 %237, %v199
      %v239 = vpop.permute.xlu0 %238
      %242 = vset.pattern.permute.xlu0 0
      %243 = vperm.xlu0 %242, %v200
      %v244 = vpop.permute.xlu0 %243
      %247 = vset.pattern.permute.xlu0 0
      %248 = vperm.xlu0 %247, %v201
      %v249 = vpop.permute.xlu0 %248
      %252 = vset.pattern.permute.xlu0 0
      %253 = vperm.xlu0 %252, %v202
      %v254 = vpop.permute.xlu0 %253
      %257 = vset.pattern.permute.xlu0 0
      %258 = vperm.xlu0 %257, %v203
      %v259 = vpop.permute.xlu0 %258
      %262 = vset.pattern.permute.xlu0 0
      %263 = vperm.xlu0 %262, %v204
      %v264 = vpop.permute.xlu0 %263
      %267 = vset.pattern.permute.xlu0 0
      %268 = vperm.xlu0 %267, %v205
      %v269 = vpop.permute.xlu0 %268
      %272 = vset.pattern.permute.xlu0 0
      %273 = vperm.xlu0 %272, %v206
      %v274 = vpop.permute.xlu0 %273
      %277 = vset.pattern.permute.xlu0 0
      %278 = vperm.xlu0 %277, %v207
      %v279 = vpop.permute.xlu0 %278
      %282 = vset.pattern.permute.xlu0 0
      %283 = vperm.xlu0 %282, %v208
      %v284 = vpop.permute.xlu0 %283
      %287 = vset.pattern.permute.xlu0 0
      %288 = vperm.xlu0 %287, %v209
      %v289 = vpop.permute.xlu0 %288
      %292 = vset.pattern.permute.xlu0 0
      %293 = vperm.xlu0 %292, %v210
      %v294 = vpop.permute.xlu0 %293
      %297 = vset.pattern.permute.xlu0 0
      %298 = vperm.xlu0 %297, %v211
      %v299 = vpop.permute.xlu0 %298
      %302 = vset.pattern.permute.xlu0 0
      %303 = vperm.xlu0 %302, %v212
      %v304 = vpop.permute.xlu0 %303
      %307 = vset.pattern.permute.xlu0 0
      %308 = vperm.xlu0 %307, %v213
      %v309 = vpop.permute.xlu0 %308
      %312 = vset.pattern.permute.xlu0 0
      %313 = vperm.xlu0 %312, %v214
      %v314 = vpop.permute.xlu0 %313
      %317 = vset.pattern.permute.xlu0 0
      %318 = vperm.xlu0 %317, %v215
      %v319 = vpop.permute.xlu0 %318
      %322 = vset.pattern.permute.xlu0 0
      %323 = vperm.xlu0 %322, %v216
      %v324 = vpop.permute.xlu0 %323
      %327 = vset.pattern.permute.xlu0 0
      %328 = vperm.xlu0 %327, %v217
      %v329 = vpop.permute.xlu0 %328
      %332 = vset.pattern.permute.xlu0 0
      %333 = vperm.xlu0 %332, %v218
      %v334 = vpop.permute.xlu0 %333
      %337 = vset.pattern.permute.xlu0 0
      %338 = vperm.xlu0 %337, %v219
      %v339 = vpop.permute.xlu0 %338
      %342 = vset.pattern.permute.xlu0 0
      %343 = vperm.xlu0 %342, %v220
      %v344 = vpop.permute.xlu0 %343
      %347 = vset.pattern.permute.xlu0 0
      %348 = vperm.xlu0 %347, %v221
      %v349 = vpop.permute.xlu0 %348
      %352 = vset.pattern.permute.xlu0 0
      %353 = vperm.xlu0 %352, %v222
      %v354 = vpop.permute.xlu0 %353
      %357 = vset.pattern.permute.xlu0 0
      %358 = vperm.xlu0 %357, %v223
      %v359 = vpop.permute.xlu0 %358
      %362 = vset.pattern.permute.xlu0 0
      %363 = vperm.xlu0 %362, %v224
      %v364 = vpop.permute.xlu0 %363
      %367 = vset.pattern.permute.xlu0 0
      %368 = vperm.xlu0 %367, %v225
      %v369 = vpop.permute.xlu0 %368
      %372 = vset.pattern.permute.xlu0 0
      %373 = vperm.xlu0 %372, %v226
      %v374 = vpop.permute.xlu0 %373
      %377 = vset.pattern.permute.xlu0 0
      %378 = vperm.xlu0 %377, %v227
      %v379 = vpop.permute.xlu0 %378
      %382 = vset.pattern.permute.xlu0 0
      %383 = vperm.xlu0 %382, %v228
      %v384 = vpop.permute.xlu0 %383
      %387 = vset.pattern.permute.xlu0 0
      %388 = vperm.xlu0 %387, %v229
      %v389 = vpop.permute.xlu0 %388
      %v392 = vperm.slane %v230, 0
      %v394 = vmul.f32 %v234, %v392
      %v395 = vmul.f32 %v239, %v392
      %v396 = vmul.f32 %v244, %v392
      %v397 = vmul.f32 %v249, %v392
      %v398 = vmul.f32 %v254, %v392
      %v399 = vmul.f32 %v259, %v392
      %v400 = vmul.f32 %v264, %v392
      %v401 = vmul.f32 %v269, %v392
      %v402 = vmul.f32 %v274, %v392
      %v403 = vmul.f32 %v279, %v392
      %v404 = vmul.f32 %v284, %v392
      %v405 = vmul.f32 %v289, %v392
      %v406 = vmul.f32 %v294, %v392
      %v407 = vmul.f32 %v299, %v392
      %v408 = vmul.f32 %v304, %v392
      %v409 = vmul.f32 %v309, %v392
      %v410 = vmul.f32 %v314, %v392
      %v411 = vmul.f32 %v319, %v392
      %v412 = vmul.f32 %v324, %v392
      %v413 = vmul.f32 %v329, %v392
      %v414 = vmul.f32 %v334, %v392
      %v415 = vmul.f32 %v339, %v392
      %v416 = vmul.f32 %v344, %v392
      %v417 = vmul.f32 %v349, %v392
      %v418 = vmul.f32 %v354, %v392
      %v419 = vmul.f32 %v359, %v392
      %v420 = vmul.f32 %v364, %v392
      %v421 = vmul.f32 %v369, %v392
      %v422 = vmul.f32 %v374, %v392
      %v423 = vmul.f32 %v379, %v392
      %v424 = vmul.f32 %v384, %v392
      %v425 = vmul.f32 %v389, %v392
      %v426 = vadd.f32 %v394, 0.0
      %v427 = vadd.f32 %v395, 0.0
      %v428 = vadd.f32 %v396, 0.0
      %v429 = vadd.f32 %v397, 0.0
      %v430 = vadd.f32 %v398, 0.0
      %v431 = vadd.f32 %v399, 0.0
      %v432 = vadd.f32 %v400, 0.0
      %v433 = vadd.f32 %v401, 0.0
      %v434 = vadd.f32 %v402, 0.0
      %v435 = vadd.f32 %v403, 0.0
      %v436 = vadd.f32 %v404, 0.0
      %v437 = vadd.f32 %v405, 0.0
      %v438 = vadd.f32 %v406, 0.0
      %v439 = vadd.f32 %v407, 0.0
      %v440 = vadd.f32 %v408, 0.0
      %v441 = vadd.f32 %v409, 0.0
      %v442 = vadd.f32 %v410, 0.0
      %v443 = vadd.f32 %v411, 0.0
      %v444 = vadd.f32 %v412, 0.0
      %v445 = vadd.f32 %v413, 0.0
      %v446 = vadd.f32 %v414, 0.0
      %v447 = vadd.f32 %v415, 0.0
      %v448 = vadd.f32 %v416, 0.0
      %v449 = vadd.f32 %v417, 0.0
      %v450 = vadd.f32 %v418, 0.0
      %v451 = vadd.f32 %v419, 0.0
      %v452 = vadd.f32 %v420, 0.0
      %v453 = vadd.f32 %v421, 0.0
      %v454 = vadd.f32 %v422, 0.0
      %v455 = vadd.f32 %v423, 0.0
      %v456 = vadd.f32 %v424, 0.0
      %v457 = vadd.f32 %v425, 0.0
      %v458 = vld [vmem:[%s192 + $0x1] sm:$0xff]
      %v459 = vld [vmem:[%s192 + $0x9] sm:$0xff]
      %v460 = vld [vmem:[%s192 + $0x19] sm:$0xff]
      %v461 = vld [vmem:[%s192 + $0x21] sm:$0xff]
      %v462 = vld [vmem:[%s192 + $0x31] sm:$0xff]
      %v463 = vld [vmem:[%s192 + $0x39] sm:$0xff]
      %v464 = vld [vmem:[%s192 + $0x49] sm:$0xff]
      %v465 = vld [vmem:[%s192 + $0x51] sm:$0xff]
      %v466 = vld [vmem:[%s192 + $0x61] sm:$0xff]
      %v467 = vld [vmem:[%s192 + $0x69] sm:$0xff]
      %v468 = vld [vmem:[%s192 + $0x79] sm:$0xff]
      %v469 = vld [vmem:[%s192 + $0x81] sm:$0xff]
      %v470 = vld [vmem:[%s192 + $0x91] sm:$0xff]
      %v471 = vld [vmem:[%s192 + $0x99] sm:$0xff]
      %v472 = vld [vmem:[%s192 + $0xa9] sm:$0xff]
      %v473 = vld [vmem:[%s192 + $0xb1] sm:$0xff]
      %v474 = vld [vmem:[%s192 + $0xc1] sm:$0xff]
      %v475 = vld [vmem:[%s192 + $0xc9] sm:$0xff]
      %v476 = vld [vmem:[%s192 + $0xd9] sm:$0xff]
      %v477 = vld [vmem:[%s192 + $0xe1] sm:$0xff]
      %v478 = vld [vmem:[%s192 + $0xf1] sm:$0xff]
      %v479 = vld [vmem:[%s192 + $0xf9] sm:$0xff]
      %v480 = vld [vmem:[%s192 + $0x109] sm:$0xff]
      %v481 = vld [vmem:[%s192 + $0x111] sm:$0xff]
      %v482 = vld [vmem:[%s192 + $0x121] sm:$0xff]
      %v483 = vld [vmem:[%s192 + $0x129] sm:$0xff]
      %v484 = vld [vmem:[%s192 + $0x139] sm:$0xff]
      %v485 = vld [vmem:[%s192 + $0x141] sm:$0xff]
      %v486 = vld [vmem:[%s192 + $0x151] sm:$0xff]
      %v487 = vld [vmem:[%s192 + $0x159] sm:$0xff]
      %v488 = vld [vmem:[%s192 + $0x169] sm:$0xff]
      %v489 = vld [vmem:[%s192 + $0x171] sm:$0xff]
      %s490 = scalar_lea.vmem %s1, 1
      %v491 = vld [vmem:[%s490] sm:$0x1]
      %493 = vset.pattern.permute.xlu0 0
      %494 = vperm.xlu0 %493, %v458
      %v495 = vpop.permute.xlu0 %494
      %498 = vset.pattern.permute.xlu0 0
      %499 = vperm.xlu0 %498, %v459
      %v500 = vpop.permute.xlu0 %499
      %503 = vset.pattern.permute.xlu0 0
      %504 = vperm.xlu0 %503, %v460
      %v505 = vpop.permute.xlu0 %504
      %508 = vset.pattern.permute.xlu0 0
      %509 = vperm.xlu0 %508, %v461
      %v510 = vpop.permute.xlu0 %509
      %513 = vset.pattern.permute.xlu0 0
      %514 = vperm.xlu0 %513, %v462
      %v515 = vpop.permute.xlu0 %514
      %518 = vset.pattern.permute.xlu0 0
      %519 = vperm.xlu0 %518, %v463
      %v520 = vpop.permute.xlu0 %519
      %523 = vset.pattern.permute.xlu0 0
      %524 = vperm.xlu0 %523, %v464
      %v525 = vpop.permute.xlu0 %524
      %528 = vset.pattern.permute.xlu0 0
      %529 = vperm.xlu0 %528, %v465
      %v530 = vpop.permute.xlu0 %529
      %533 = vset.pattern.permute.xlu0 0
      %534 = vperm.xlu0 %533, %v466
      %v535 = vpop.permute.xlu0 %534
      %538 = vset.pattern.permute.xlu0 0
      %539 = vperm.xlu0 %538, %v467
      %v540 = vpop.permute.xlu0 %539
      %543 = vset.pattern.permute.xlu0 0
      %544 = vperm.xlu0 %543, %v468
      %v545 = vpop.permute.xlu0 %544
      %548 = vset.pattern.permute.xlu0 0
      %549 = vperm.xlu0 %548, %v469
      %v550 = vpop.permute.xlu0 %549
      %553 = vset.pattern.permute.xlu0 0
      %554 = vperm.xlu0 %553, %v470
      %v555 = vpop.permute.xlu0 %554
      %558 = vset.pattern.permute.xlu0 0
      %559 = vperm.xlu0 %558, %v471
      %v560 = vpop.permute.xlu0 %559
      %563 = vset.pattern.permute.xlu0 0
      %564 = vperm.xlu0 %563, %v472
      %v565 = vpop.permute.xlu0 %564
      %568 = vset.pattern.permute.xlu0 0
      %569 = vperm.xlu0 %568, %v473
      %v570 = vpop.permute.xlu0 %569
      %573 = vset.pattern.permute.xlu0 0
      %574 = vperm.xlu0 %573, %v474
      %v575 = vpop.permute.xlu0 %574
      %578 = vset.pattern.permute.xlu0 0
      %579 = vperm.xlu0 %578, %v475
      %v580 = vpop.permute.xlu0 %579
      %583 = vset.pattern.permute.xlu0 0
      %584 = vperm.xlu0 %583, %v476
      %v585 = vpop.permute.xlu0 %584
      %588 = vset.pattern.permute.xlu0 0
      %589 = vperm.xlu0 %588, %v477
      %v590 = vpop.permute.xlu0 %589
      %593 = vset.pattern.permute.xlu0 0
      %594 = vperm.xlu0 %593, %v478
      %v595 = vpop.permute.xlu0 %594
      %598 = vset.pattern.permute.xlu0 0
      %599 = vperm.xlu0 %598, %v479
      %v600 = vpop.permute.xlu0 %599
      %603 = vset.pattern.permute.xlu0 0
      %604 = vperm.xlu0 %603, %v480
      %v605 = vpop.permute.xlu0 %604
      %608 = vset.pattern.permute.xlu0 0
      %609 = vperm.xlu0 %608, %v481
      %v610 = vpop.permute.xlu0 %609
      %613 = vset.pattern.permute.xlu0 0
      %614 = vperm.xlu0 %613, %v482
      %v615 = vpop.permute.xlu0 %614
      %618 = vset.pattern.permute.xlu0 0
      %619 = vperm.xlu0 %618, %v483
      %v620 = vpop.permute.xlu0 %619
      %623 = vset.pattern.permute.xlu0 0
      %624 = vperm.xlu0 %623, %v484
      %v625 = vpop.permute.xlu0 %624
      %628 = vset.pattern.permute.xlu0 0
      %629 = vperm.xlu0 %628, %v485
      %v630 = vpop.permute.xlu0 %629
      %633 = vset.pattern.permute.xlu0 0
      %634 = vperm.xlu0 %633, %v486
      %v635 = vpop.permute.xlu0 %634
      %638 = vset.pattern.permute.xlu0 0
      %639 = vperm.xlu0 %638, %v487
      %v640 = vpop.permute.xlu0 %639
      %643 = vset.pattern.permute.xlu0 0
      %644 = vperm.xlu0 %643, %v488
      %v645 = vpop.permute.xlu0 %644
      %648 = vset.pattern.permute.xlu0 0
      %649 = vperm.xlu0 %648, %v489
      %v650 = vpop.permute.xlu0 %649
      %v653 = vperm.slane %v491, 0
      %v655 = vmul.f32 %v495, %v653
      %v656 = vmul.f32 %v500, %v653
      %v657 = vmul.f32 %v505, %v653
      %v658 = vmul.f32 %v510, %v653
      %v659 = vmul.f32 %v515, %v653
      %v660 = vmul.f32 %v520, %v653
      %v661 = vmul.f32 %v525, %v653
      %v662 = vmul.f32 %v530, %v653
      %v663 = vmul.f32 %v535, %v653
      %v664 = vmul.f32 %v540, %v653
      %v665 = vmul.f32 %v545, %v653
      %v666 = vmul.f32 %v550, %v653
      %v667 = vmul.f32 %v555, %v653
      %v668 = vmul.f32 %v560, %v653
      %v669 = vmul.f32 %v565, %v653
      %v670 = vmul.f32 %v570, %v653
      %v671 = vmul.f32 %v575, %v653
      %v672 = vmul.f32 %v580, %v653
      %v673 = vmul.f32 %v585, %v653
      %v674 = vmul.f32 %v590, %v653
      %v675 = vmul.f32 %v595, %v653
      %v676 = vmul.f32 %v600, %v653
      %v677 = vmul.f32 %v605, %v653
      %v678 = vmul.f32 %v610, %v653
      %v679 = vmul.f32 %v615, %v653
      %v680 = vmul.f32 %v620, %v653
      %v681 = vmul.f32 %v625, %v653
      %v682 = vmul.f32 %v630, %v653
      %v683 = vmul.f32 %v635, %v653
      %v684 = vmul.f32 %v640, %v653
      %v685 = vmul.f32 %v645, %v653
      %v686 = vmul.f32 %v650, %v653
      %v687 = vadd.f32 %v426, %v655
      %v688 = vadd.f32 %v427, %v656
      %v689 = vadd.f32 %v428, %v657
      %v690 = vadd.f32 %v429, %v658
      %v691 = vadd.f32 %v430, %v659
      %v692 = vadd.f32 %v431, %v660
      %v693 = vadd.f32 %v432, %v661
      %v694 = vadd.f32 %v433, %v662
      %v695 = vadd.f32 %v434, %v663
      %v696 = vadd.f32 %v435, %v664
      %v697 = vadd.f32 %v436, %v665
      %v698 = vadd.f32 %v437, %v666
      %v699 = vadd.f32 %v438, %v667
      %v700 = vadd.f32 %v439, %v668
      %v701 = vadd.f32 %v440, %v669
      %v702 = vadd.f32 %v441, %v670
      %v703 = vadd.f32 %v442, %v671
      %v704 = vadd.f32 %v443, %v672
      %v705 = vadd.f32 %v444, %v673
      %v706 = vadd.f32 %v445, %v674
      %v707 = vadd.f32 %v446, %v675
      %v708 = vadd.f32 %v447, %v676
      %v709 = vadd.f32 %v448, %v677
      %v710 = vadd.f32 %v449, %v678
      %v711 = vadd.f32 %v450, %v679
      %v712 = vadd.f32 %v451, %v680
      %v713 = vadd.f32 %v452, %v681
      %v714 = vadd.f32 %v453, %v682
      %v715 = vadd.f32 %v454, %v683
      %v716 = vadd.f32 %v455, %v684
      %v717 = vadd.f32 %v456, %v685
      %v718 = vadd.f32 %v457, %v686
      %v719 = vld [vmem:[%s192 + $0x2] sm:$0xff]
      %v720 = vld [vmem:[%s192 + $0xa] sm:$0xff]
      %v721 = vld [vmem:[%s192 + $0x1a] sm:$0xff]
      %v722 = vld [vmem:[%s192 + $0x22] sm:$0xff]
      %v723 = vld [vmem:[%s192 + $0x32] sm:$0xff]
      %v724 = vld [vmem:[%s192 + $0x3a] sm:$0xff]
      %v725 = vld [vmem:[%s192 + $0x4a] sm:$0xff]
      %v726 = vld [vmem:[%s192 + $0x52] sm:$0xff]
      %v727 = vld [vmem:[%s192 + $0x62] sm:$0xff]
      %v728 = vld [vmem:[%s192 + $0x6a] sm:$0xff]
      %v729 = vld [vmem:[%s192 + $0x7a] sm:$0xff]
      %v730 = vld [vmem:[%s192 + $0x82] sm:$0xff]
      %v731 = vld [vmem:[%s192 + $0x92] sm:$0xff]
      %v732 = vld [vmem:[%s192 + $0x9a] sm:$0xff]
      %v733 = vld [vmem:[%s192 + $0xaa] sm:$0xff]
      %v734 = vld [vmem:[%s192 + $0xb2] sm:$0xff]
      %v735 = vld [vmem:[%s192 + $0xc2] sm:$0xff]
      %v736 = vld [vmem:[%s192 + $0xca] sm:$0xff]
      %v737 = vld [vmem:[%s192 + $0xda] sm:$0xff]
      %v738 = vld [vmem:[%s192 + $0xe2] sm:$0xff]
      %v739 = vld [vmem:[%s192 + $0xf2] sm:$0xff]
      %v740 = vld [vmem:[%s192 + $0xfa] sm:$0xff]
      %v741 = vld [vmem:[%s192 + $0x10a] sm:$0xff]
      %v742 = vld [vmem:[%s192 + $0x112] sm:$0xff]
      %v743 = vld [vmem:[%s192 + $0x122] sm:$0xff]
      %v744 = vld [vmem:[%s192 + $0x12a] sm:$0xff]
      %v745 = vld [vmem:[%s192 + $0x13a] sm:$0xff]
      %v746 = vld [vmem:[%s192 + $0x142] sm:$0xff]
      %v747 = vld [vmem:[%s192 + $0x152] sm:$0xff]
      %v748 = vld [vmem:[%s192 + $0x15a] sm:$0xff]
      %v749 = vld [vmem:[%s192 + $0x16a] sm:$0xff]
      %v750 = vld [vmem:[%s192 + $0x172] sm:$0xff]
      %s751 = scalar_lea.vmem %s1, 2
      %v752 = vld [vmem:[%s751] sm:$0x1]
      %754 = vset.pattern.permute.xlu0 0
      %755 = vperm.xlu0 %754, %v719
      %v756 = vpop.permute.xlu0 %755
      %759 = vset.pattern.permute.xlu0 0
      %760 = vperm.xlu0 %759, %v720
      %v761 = vpop.permute.xlu0 %760
      %764 = vset.pattern.permute.xlu0 0
      %765 = vperm.xlu0 %764, %v721
      %v766 = vpop.permute.xlu0 %765
      %769 = vset.pattern.permute.xlu0 0
      %770 = vperm.xlu0 %769, %v722
      %v771 = vpop.permute.xlu0 %770
      %774 = vset.pattern.permute.xlu0 0
      %775 = vperm.xlu0 %774, %v723
      %v776 = vpop.permute.xlu0 %775
      %779 = vset.pattern.permute.xlu0 0
      %780 = vperm.xlu0 %779, %v724
      %v781 = vpop.permute.xlu0 %780
      %784 = vset.pattern.permute.xlu0 0
      %785 = vperm.xlu0 %784, %v725
      %v786 = vpop.permute.xlu0 %785
      %789 = vset.pattern.permute.xlu0 0
      %790 = vperm.xlu0 %789, %v726
      %v791 = vpop.permute.xlu0 %790
      %794 = vset.pattern.permute.xlu0 0
      %795 = vperm.xlu0 %794, %v727
      %v796 = vpop.permute.xlu0 %795
      %799 = vset.pattern.permute.xlu0 0
      %800 = vperm.xlu0 %799, %v728
      %v801 = vpop.permute.xlu0 %800
      %804 = vset.pattern.permute.xlu0 0
      %805 = vperm.xlu0 %804, %v729
      %v806 = vpop.permute.xlu0 %805
      %809 = vset.pattern.permute.xlu0 0
      %810 = vperm.xlu0 %809, %v730
      %v811 = vpop.permute.xlu0 %810
      %814 = vset.pattern.permute.xlu0 0
      %815 = vperm.xlu0 %814, %v731
      %v816 = vpop.permute.xlu0 %815
      %819 = vset.pattern.permute.xlu0 0
      %820 = vperm.xlu0 %819, %v732
      %v821 = vpop.permute.xlu0 %820
      %824 = vset.pattern.permute.xlu0 0
      %825 = vperm.xlu0 %824, %v733
      %v826 = vpop.permute.xlu0 %825
      %829 = vset.pattern.permute.xlu0 0
      %830 = vperm.xlu0 %829, %v734
      %v831 = vpop.permute.xlu0 %830
      %834 = vset.pattern.permute.xlu0 0
      %835 = vperm.xlu0 %834, %v735
      %v836 = vpop.permute.xlu0 %835
      %839 = vset.pattern.permute.xlu0 0
      %840 = vperm.xlu0 %839, %v736
      %v841 = vpop.permute.xlu0 %840
      %844 = vset.pattern.permute.xlu0 0
      %845 = vperm.xlu0 %844, %v737
      %v846 = vpop.permute.xlu0 %845
      %849 = vset.pattern.permute.xlu0 0
      %850 = vperm.xlu0 %849, %v738
      %v851 = vpop.permute.xlu0 %850
      %854 = vset.pattern.permute.xlu0 0
      %855 = vperm.xlu0 %854, %v739
      %v856 = vpop.permute.xlu0 %855
      %859 = vset.pattern.permute.xlu0 0
      %860 = vperm.xlu0 %859, %v740
      %v861 = vpop.permute.xlu0 %860
      %864 = vset.pattern.permute.xlu0 0
      %865 = vperm.xlu0 %864, %v741
      %v866 = vpop.permute.xlu0 %865
      %869 = vset.pattern.permute.xlu0 0
      %870 = vperm.xlu0 %869, %v742
      %v871 = vpop.permute.xlu0 %870
      %874 = vset.pattern.permute.xlu0 0
      %875 = vperm.xlu0 %874, %v743
      %v876 = vpop.permute.xlu0 %875
      %879 = vset.pattern.permute.xlu0 0
      %880 = vperm.xlu0 %879, %v744
      %v881 = vpop.permute.xlu0 %880
      %884 = vset.pattern.permute.xlu0 0
      %885 = vperm.xlu0 %884, %v745
      %v886 = vpop.permute.xlu0 %885
      %889 = vset.pattern.permute.xlu0 0
      %890 = vperm.xlu0 %889, %v746
      %v891 = vpop.permute.xlu0 %890
      %894 = vset.pattern.permute.xlu0 0
      %895 = vperm.xlu0 %894, %v747
      %v896 = vpop.permute.xlu0 %895
      %899 = vset.pattern.permute.xlu0 0
      %900 = vperm.xlu0 %899, %v748
      %v901 = vpop.permute.xlu0 %900
      %904 = vset.pattern.permute.xlu0 0
      %905 = vperm.xlu0 %904, %v749
      %v906 = vpop.permute.xlu0 %905
      %909 = vset.pattern.permute.xlu0 0
      %910 = vperm.xlu0 %909, %v750
      %v911 = vpop.permute.xlu0 %910
      %v914 = vperm.slane %v752, 0
      %v916 = vmul.f32 %v756, %v914
      %v917 = vmul.f32 %v761, %v914
      %v918 = vmul.f32 %v766, %v914
      %v919 = vmul.f32 %v771, %v914
      %v920 = vmul.f32 %v776, %v914
      %v921 = vmul.f32 %v781, %v914
      %v922 = vmul.f32 %v786, %v914
      %v923 = vmul.f32 %v791, %v914
      %v924 = vmul.f32 %v796, %v914
      %v925 = vmul.f32 %v801, %v914
      %v926 = vmul.f32 %v806, %v914
      %v927 = vmul.f32 %v811, %v914
      %v928 = vmul.f32 %v816, %v914
      %v929 = vmul.f32 %v821, %v914
      %v930 = vmul.f32 %v826, %v914
      %v931 = vmul.f32 %v831, %v914
      %v932 = vmul.f32 %v836, %v914
      %v933 = vmul.f32 %v841, %v914
      %v934 = vmul.f32 %v846, %v914
      %v935 = vmul.f32 %v851, %v914
      %v936 = vmul.f32 %v856, %v914
      %v937 = vmul.f32 %v861, %v914
      %v938 = vmul.f32 %v866, %v914
      %v939 = vmul.f32 %v871, %v914
      %v940 = vmul.f32 %v876, %v914
      %v941 = vmul.f32 %v881, %v914
      %v942 = vmul.f32 %v886, %v914
      %v943 = vmul.f32 %v891, %v914
      %v944 = vmul.f32 %v896, %v914
      %v945 = vmul.f32 %v901, %v914
      %v946 = vmul.f32 %v906, %v914
      %v947 = vmul.f32 %v911, %v914
      %v948 = vadd.f32 %v687, %v916
      %v949 = vadd.f32 %v688, %v917
      %v950 = vadd.f32 %v689, %v918
      %v951 = vadd.f32 %v690, %v919
      %v952 = vadd.f32 %v691, %v920
      %v953 = vadd.f32 %v692, %v921
      %v954 = vadd.f32 %v693, %v922
      %v955 = vadd.f32 %v694, %v923
      %v956 = vadd.f32 %v695, %v924
      %v957 = vadd.f32 %v696, %v925
      %v958 = vadd.f32 %v697, %v926
      %v959 = vadd.f32 %v698, %v927
      %v960 = vadd.f32 %v699, %v928
      %v961 = vadd.f32 %v700, %v929
      %v962 = vadd.f32 %v701, %v930
      %v963 = vadd.f32 %v702, %v931
      %v964 = vadd.f32 %v703, %v932
      %v965 = vadd.f32 %v704, %v933
      %v966 = vadd.f32 %v705, %v934
      %v967 = vadd.f32 %v706, %v935
      %v968 = vadd.f32 %v707, %v936
      %v969 = vadd.f32 %v708, %v937
      %v970 = vadd.f32 %v709, %v938
      %v971 = vadd.f32 %v710, %v939
      %v972 = vadd.f32 %v711, %v940
      %v973 = vadd.f32 %v712, %v941
      %v974 = vadd.f32 %v713, %v942
      %v975 = vadd.f32 %v714, %v943
      %v976 = vadd.f32 %v715, %v944
      %v977 = vadd.f32 %v716, %v945
      %v978 = vadd.f32 %v717, %v946
      %v979 = vadd.f32 %v718, %v947
      %s980 = scalar_lea.vmem %s192, 24
      %v981 = vld [vmem:[%s980] sm:$0xff]
      %v982 = vld [vmem:[%s980 + $0x8] sm:$0xff]
      %v983 = vld [vmem:[%s980 + $0x18] sm:$0xff]
      %v984 = vld [vmem:[%s980 + $0x20] sm:$0xff]
      %v985 = vld [vmem:[%s980 + $0x30] sm:$0xff]
      %v986 = vld [vmem:[%s980 + $0x38] sm:$0xff]
      %v987 = vld [vmem:[%s980 + $0x48] sm:$0xff]
      %v988 = vld [vmem:[%s980 + $0x50] sm:$0xff]
      %v989 = vld [vmem:[%s980 + $0x60] sm:$0xff]
      %v990 = vld [vmem:[%s980 + $0x68] sm:$0xff]
      %v991 = vld [vmem:[%s980 + $0x78] sm:$0xff]
      %v992 = vld [vmem:[%s980 + $0x80] sm:$0xff]
      %v993 = vld [vmem:[%s980 + $0x90] sm:$0xff]
      %v994 = vld [vmem:[%s980 + $0x98] sm:$0xff]
      %v995 = vld [vmem:[%s980 + $0xa8] sm:$0xff]
      %v996 = vld [vmem:[%s980 + $0xb0] sm:$0xff]
      %v997 = vld [vmem:[%s980 + $0xc0] sm:$0xff]
      %v998 = vld [vmem:[%s980 + $0xc8] sm:$0xff]
      %v999 = vld [vmem:[%s980 + $0xd8] sm:$0xff]
      %v1000 = vld [vmem:[%s980 + $0xe0] sm:$0xff]
      %v1001 = vld [vmem:[%s980 + $0xf0] sm:$0xff]
      %v1002 = vld [vmem:[%s980 + $0xf8] sm:$0xff]
      %v1003 = vld [vmem:[%s980 + $0x108] sm:$0xff]
      %v1004 = vld [vmem:[%s980 + $0x110] sm:$0xff]
      %v1005 = vld [vmem:[%s980 + $0x120] sm:$0xff]
      %v1006 = vld [vmem:[%s980 + $0x128] sm:$0xff]
      %v1007 = vld [vmem:[%s980 + $0x138] sm:$0xff]
      %v1008 = vld [vmem:[%s980 + $0x140] sm:$0xff]
      %v1009 = vld [vmem:[%s980 + $0x150] sm:$0xff]
      %v1010 = vld [vmem:[%s980 + $0x158] sm:$0xff]
      %v1011 = vld [vmem:[%s980 + $0x168] sm:$0xff]
      %v1012 = vld [vmem:[%s980 + $0x170] sm:$0xff]
      %s1013 = scalar_lea.vmem %s1, 3
      %v1014 = vld [vmem:[%s1013] sm:$0x1]
      %1016 = vset.pattern.permute.xlu0 0
      %1017 = vperm.xlu0 %1016, %v981
      %v1018 = vpop.permute.xlu0 %1017
      %1021 = vset.pattern.permute.xlu0 0
      %1022 = vperm.xlu0 %1021, %v982
      %v1023 = vpop.permute.xlu0 %1022
      %1026 = vset.pattern.permute.xlu0 0
      %1027 = vperm.xlu0 %1026, %v983
      %v1028 = vpop.permute.xlu0 %1027
      %1031 = vset.pattern.permute.xlu0 0
      %1032 = vperm.xlu0 %1031, %v984
      %v1033 = vpop.permute.xlu0 %1032
      %1036 = vset.pattern.permute.xlu0 0
      %1037 = vperm.xlu0 %1036, %v985
      %v1038 = vpop.permute.xlu0 %1037
      %1041 = vset.pattern.permute.xlu0 0
      %1042 = vperm.xlu0 %1041, %v986
      %v1043 = vpop.permute.xlu0 %1042
      %1046 = vset.pattern.permute.xlu0 0
      %1047 = vperm.xlu0 %1046, %v987
      %v1048 = vpop.permute.xlu0 %1047
      %1051 = vset.pattern.permute.xlu0 0
      %1052 = vperm.xlu0 %1051, %v988
      %v1053 = vpop.permute.xlu0 %1052
      %1056 = vset.pattern.permute.xlu0 0
      %1057 = vperm.xlu0 %1056, %v989
      %v1058 = vpop.permute.xlu0 %1057
      %1061 = vset.pattern.permute.xlu0 0
      %1062 = vperm.xlu0 %1061, %v990
      %v1063 = vpop.permute.xlu0 %1062
      %1066 = vset.pattern.permute.xlu0 0
      %1067 = vperm.xlu0 %1066, %v991
      %v1068 = vpop.permute.xlu0 %1067
      %1071 = vset.pattern.permute.xlu0 0
      %1072 = vperm.xlu0 %1071, %v992
      %v1073 = vpop.permute.xlu0 %1072
      %1076 = vset.pattern.permute.xlu0 0
      %1077 = vperm.xlu0 %1076, %v993
      %v1078 = vpop.permute.xlu0 %1077
      %1081 = vset.pattern.permute.xlu0 0
      %1082 = vperm.xlu0 %1081, %v994
      %v1083 = vpop.permute.xlu0 %1082
      %1086 = vset.pattern.permute.xlu0 0
      %1087 = vperm.xlu0 %1086, %v995
      %v1088 = vpop.permute.xlu0 %1087
      %1091 = vset.pattern.permute.xlu0 0
      %1092 = vperm.xlu0 %1091, %v996
      %v1093 = vpop.permute.xlu0 %1092
      %1096 = vset.pattern.permute.xlu0 0
      %1097 = vperm.xlu0 %1096, %v997
      %v1098 = vpop.permute.xlu0 %1097
      %1101 = vset.pattern.permute.xlu0 0
      %1102 = vperm.xlu0 %1101, %v998
      %v1103 = vpop.permute.xlu0 %1102
      %1106 = vset.pattern.permute.xlu0 0
      %1107 = vperm.xlu0 %1106, %v999
      %v1108 = vpop.permute.xlu0 %1107
      %1111 = vset.pattern.permute.xlu0 0
      %1112 = vperm.xlu0 %1111, %v1000
      %v1113 = vpop.permute.xlu0 %1112
      %1116 = vset.pattern.permute.xlu0 0
      %1117 = vperm.xlu0 %1116, %v1001
      %v1118 = vpop.permute.xlu0 %1117
      %1121 = vset.pattern.permute.xlu0 0
      %1122 = vperm.xlu0 %1121, %v1002
      %v1123 = vpop.permute.xlu0 %1122
      %1126 = vset.pattern.permute.xlu0 0
      %1127 = vperm.xlu0 %1126, %v1003
      %v1128 = vpop.permute.xlu0 %1127
      %1131 = vset.pattern.permute.xlu0 0
      %1132 = vperm.xlu0 %1131, %v1004
      %v1133 = vpop.permute.xlu0 %1132
      %1136 = vset.pattern.permute.xlu0 0
      %1137 = vperm.xlu0 %1136, %v1005
      %v1138 = vpop.permute.xlu0 %1137
      %1141 = vset.pattern.permute.xlu0 0
      %1142 = vperm.xlu0 %1141, %v1006
      %v1143 = vpop.permute.xlu0 %1142
      %1146 = vset.pattern.permute.xlu0 0
      %1147 = vperm.xlu0 %1146, %v1007
      %v1148 = vpop.permute.xlu0 %1147
      %1151 = vset.pattern.permute.xlu0 0
      %1152 = vperm.xlu0 %1151, %v1008
      %v1153 = vpop.permute.xlu0 %1152
      %1156 = vset.pattern.permute.xlu0 0
      %1157 = vperm.xlu0 %1156, %v1009
      %v1158 = vpop.permute.xlu0 %1157
      %1161 = vset.pattern.permute.xlu0 0
      %1162 = vperm.xlu0 %1161, %v1010
      %v1163 = vpop.permute.xlu0 %1162
      %1166 = vset.pattern.permute.xlu0 0
      %1167 = vperm.xlu0 %1166, %v1011
      %v1168 = vpop.permute.xlu0 %1167
      %1171 = vset.pattern.permute.xlu0 0
      %1172 = vperm.xlu0 %1171, %v1012
      %v1173 = vpop.permute.xlu0 %1172
      %v1176 = vperm.slane %v1014, 0
      %v1178 = vmul.f32 %v1018, %v1176
      %v1179 = vmul.f32 %v1023, %v1176
      %v1180 = vmul.f32 %v1028, %v1176
      %v1181 = vmul.f32 %v1033, %v1176
      %v1182 = vmul.f32 %v1038, %v1176
      %v1183 = vmul.f32 %v1043, %v1176
      %v1184 = vmul.f32 %v1048, %v1176
      %v1185 = vmul.f32 %v1053, %v1176
      %v1186 = vmul.f32 %v1058, %v1176
      %v1187 = vmul.f32 %v1063, %v1176
      %v1188 = vmul.f32 %v1068, %v1176
      %v1189 = vmul.f32 %v1073, %v1176
      %v1190 = vmul.f32 %v1078, %v1176
      %v1191 = vmul.f32 %v1083, %v1176
      %v1192 = vmul.f32 %v1088, %v1176
      %v1193 = vmul.f32 %v1093, %v1176
      %v1194 = vmul.f32 %v1098, %v1176
      %v1195 = vmul.f32 %v1103, %v1176
      %v1196 = vmul.f32 %v1108, %v1176
      %v1197 = vmul.f32 %v1113, %v1176
      %v1198 = vmul.f32 %v1118, %v1176
      %v1199 = vmul.f32 %v1123, %v1176
      %v1200 = vmul.f32 %v1128, %v1176
      %v1201 = vmul.f32 %v1133, %v1176
      %v1202 = vmul.f32 %v1138, %v1176
      %v1203 = vmul.f32 %v1143, %v1176
      %v1204 = vmul.f32 %v1148, %v1176
      %v1205 = vmul.f32 %v1153, %v1176
      %v1206 = vmul.f32 %v1158, %v1176
      %v1207 = vmul.f32 %v1163, %v1176
      %v1208 = vmul.f32 %v1168, %v1176
      %v1209 = vmul.f32 %v1173, %v1176
      %v1210 = vadd.f32 %v948, %v1178
      %v1211 = vadd.f32 %v949, %v1179
      %v1212 = vadd.f32 %v950, %v1180
      %v1213 = vadd.f32 %v951, %v1181
      %v1214 = vadd.f32 %v952, %v1182
      %v1215 = vadd.f32 %v953, %v1183
      %v1216 = vadd.f32 %v954, %v1184
      %v1217 = vadd.f32 %v955, %v1185
      %v1218 = vadd.f32 %v956, %v1186
      %v1219 = vadd.f32 %v957, %v1187
      %v1220 = vadd.f32 %v958, %v1188
      %v1221 = vadd.f32 %v959, %v1189
      %v1222 = vadd.f32 %v960, %v1190
      %v1223 = vadd.f32 %v961, %v1191
      %v1224 = vadd.f32 %v962, %v1192
      %v1225 = vadd.f32 %v963, %v1193
      %v1226 = vadd.f32 %v964, %v1194
      %v1227 = vadd.f32 %v965, %v1195
      %v1228 = vadd.f32 %v966, %v1196
      %v1229 = vadd.f32 %v967, %v1197
      %v1230 = vadd.f32 %v968, %v1198
      %v1231 = vadd.f32 %v969, %v1199
      %v1232 = vadd.f32 %v970, %v1200
      %v1233 = vadd.f32 %v971, %v1201
      %v1234 = vadd.f32 %v972, %v1202
      %v1235 = vadd.f32 %v973, %v1203
      %v1236 = vadd.f32 %v974, %v1204
      %v1237 = vadd.f32 %v975, %v1205
      %v1238 = vadd.f32 %v976, %v1206
      %v1239 = vadd.f32 %v977, %v1207
      %v1240 = vadd.f32 %v978, %v1208
      %v1241 = vadd.f32 %v979, %v1209
      %v1242 = vld [vmem:[%s980 + $0x1] sm:$0xff]
      %v1243 = vld [vmem:[%s980 + $0x9] sm:$0xff]
      %v1244 = vld [vmem:[%s980 + $0x19] sm:$0xff]
      %v1245 = vld [vmem:[%s980 + $0x21] sm:$0xff]
      %v1246 = vld [vmem:[%s980 + $0x31] sm:$0xff]
      %v1247 = vld [vmem:[%s980 + $0x39] sm:$0xff]
      %v1248 = vld [vmem:[%s980 + $0x49] sm:$0xff]
      %v1249 = vld [vmem:[%s980 + $0x51] sm:$0xff]
      %v1250 = vld [vmem:[%s980 + $0x61] sm:$0xff]
      %v1251 = vld [vmem:[%s980 + $0x69] sm:$0xff]
      %v1252 = vld [vmem:[%s980 + $0x79] sm:$0xff]
      %v1253 = vld [vmem:[%s980 + $0x81] sm:$0xff]
      %v1254 = vld [vmem:[%s980 + $0x91] sm:$0xff]
      %v1255 = vld [vmem:[%s980 + $0x99] sm:$0xff]
      %v1256 = vld [vmem:[%s980 + $0xa9] sm:$0xff]
      %v1257 = vld [vmem:[%s980 + $0xb1] sm:$0xff]
      %v1258 = vld [vmem:[%s980 + $0xc1] sm:$0xff]
      %v1259 = vld [vmem:[%s980 + $0xc9] sm:$0xff]
      %v1260 = vld [vmem:[%s980 + $0xd9] sm:$0xff]
      %v1261 = vld [vmem:[%s980 + $0xe1] sm:$0xff]
      %v1262 = vld [vmem:[%s980 + $0xf1] sm:$0xff]
      %v1263 = vld [vmem:[%s980 + $0xf9] sm:$0xff]
      %v1264 = vld [vmem:[%s980 + $0x109] sm:$0xff]
      %v1265 = vld [vmem:[%s980 + $0x111] sm:$0xff]
      %v1266 = vld [vmem:[%s980 + $0x121] sm:$0xff]
      %v1267 = vld [vmem:[%s980 + $0x129] sm:$0xff]
      %v1268 = vld [vmem:[%s980 + $0x139] sm:$0xff]
      %v1269 = vld [vmem:[%s980 + $0x141] sm:$0xff]
      %v1270 = vld [vmem:[%s980 + $0x151] sm:$0xff]
      %v1271 = vld [vmem:[%s980 + $0x159] sm:$0xff]
      %v1272 = vld [vmem:[%s980 + $0x169] sm:$0xff]
      %v1273 = vld [vmem:[%s980 + $0x171] sm:$0xff]
      %s1274 = scalar_lea.vmem %s1, 4
      %v1275 = vld [vmem:[%s1274] sm:$0x1]
      %1277 = vset.pattern.permute.xlu0 0
      %1278 = vperm.xlu0 %1277, %v1242
      %v1279 = vpop.permute.xlu0 %1278
      %1282 = vset.pattern.permute.xlu0 0
      %1283 = vperm.xlu0 %1282, %v1243
      %v1284 = vpop.permute.xlu0 %1283
      %1287 = vset.pattern.permute.xlu0 0
      %1288 = vperm.xlu0 %1287, %v1244
      %v1289 = vpop.permute.xlu0 %1288
      %1292 = vset.pattern.permute.xlu0 0
      %1293 = vperm.xlu0 %1292, %v1245
      %v1294 = vpop.permute.xlu0 %1293
      %1297 = vset.pattern.permute.xlu0 0
      %1298 = vperm.xlu0 %1297, %v1246
      %v1299 = vpop.permute.xlu0 %1298
      %1302 = vset.pattern.permute.xlu0 0
      %1303 = vperm.xlu0 %1302, %v1247
      %v1304 = vpop.permute.xlu0 %1303
      %1307 = vset.pattern.permute.xlu0 0
      %1308 = vperm.xlu0 %1307, %v1248
      %v1309 = vpop.permute.xlu0 %1308
      %1312 = vset.pattern.permute.xlu0 0
      %1313 = vperm.xlu0 %1312, %v1249
      %v1314 = vpop.permute.xlu0 %1313
      %1317 = vset.pattern.permute.xlu0 0
      %1318 = vperm.xlu0 %1317, %v1250
      %v1319 = vpop.permute.xlu0 %1318
      %1322 = vset.pattern.permute.xlu0 0
      %1323 = vperm.xlu0 %1322, %v1251
      %v1324 = vpop.permute.xlu0 %1323
      %1327 = vset.pattern.permute.xlu0 0
      %1328 = vperm.xlu0 %1327, %v1252
      %v1329 = vpop.permute.xlu0 %1328
      %1332 = vset.pattern.permute.xlu0 0
      %1333 = vperm.xlu0 %1332, %v1253
      %v1334 = vpop.permute.xlu0 %1333
      %1337 = vset.pattern.permute.xlu0 0
      %1338 = vperm.xlu0 %1337, %v1254
      %v1339 = vpop.permute.xlu0 %1338
      %1342 = vset.pattern.permute.xlu0 0
      %1343 = vperm.xlu0 %1342, %v1255
      %v1344 = vpop.permute.xlu0 %1343
      %1347 = vset.pattern.permute.xlu0 0
      %1348 = vperm.xlu0 %1347, %v1256
      %v1349 = vpop.permute.xlu0 %1348
      %1352 = vset.pattern.permute.xlu0 0
      %1353 = vperm.xlu0 %1352, %v1257
      %v1354 = vpop.permute.xlu0 %1353
      %1357 = vset.pattern.permute.xlu0 0
      %1358 = vperm.xlu0 %1357, %v1258
      %v1359 = vpop.permute.xlu0 %1358
      %1362 = vset.pattern.permute.xlu0 0
      %1363 = vperm.xlu0 %1362, %v1259
      %v1364 = vpop.permute.xlu0 %1363
      %1367 = vset.pattern.permute.xlu0 0
      %1368 = vperm.xlu0 %1367, %v1260
      %v1369 = vpop.permute.xlu0 %1368
      %1372 = vset.pattern.permute.xlu0 0
      %1373 = vperm.xlu0 %1372, %v1261
      %v1374 = vpop.permute.xlu0 %1373
      %1377 = vset.pattern.permute.xlu0 0
      %1378 = vperm.xlu0 %1377, %v1262
      %v1379 = vpop.permute.xlu0 %1378
      %1382 = vset.pattern.permute.xlu0 0
      %1383 = vperm.xlu0 %1382, %v1263
      %v1384 = vpop.permute.xlu0 %1383
      %1387 = vset.pattern.permute.xlu0 0
      %1388 = vperm.xlu0 %1387, %v1264
      %v1389 = vpop.permute.xlu0 %1388
      %1392 = vset.pattern.permute.xlu0 0
      %1393 = vperm.xlu0 %1392, %v1265
      %v1394 = vpop.permute.xlu0 %1393
      %1397 = vset.pattern.permute.xlu0 0
      %1398 = vperm.xlu0 %1397, %v1266
      %v1399 = vpop.permute.xlu0 %1398
      %1402 = vset.pattern.permute.xlu0 0
      %1403 = vperm.xlu0 %1402, %v1267
      %v1404 = vpop.permute.xlu0 %1403
      %1407 = vset.pattern.permute.xlu0 0
      %1408 = vperm.xlu0 %1407, %v1268
      %v1409 = vpop.permute.xlu0 %1408
      %1412 = vset.pattern.permute.xlu0 0
      %1413 = vperm.xlu0 %1412, %v1269
      %v1414 = vpop.permute.xlu0 %1413
      %1417 = vset.pattern.permute.xlu0 0
      %1418 = vperm.xlu0 %1417, %v1270
      %v1419 = vpop.permute.xlu0 %1418
      %1422 = vset.pattern.permute.xlu0 0
      %1423 = vperm.xlu0 %1422, %v1271
      %v1424 = vpop.permute.xlu0 %1423
      %1427 = vset.pattern.permute.xlu0 0
      %1428 = vperm.xlu0 %1427, %v1272
      %v1429 = vpop.permute.xlu0 %1428
      %1432 = vset.pattern.permute.xlu0 0
      %1433 = vperm.xlu0 %1432, %v1273
      %v1434 = vpop.permute.xlu0 %1433
      %v1437 = vperm.slane %v1275, 0
      %v1439 = vmul.f32 %v1279, %v1437
      %v1440 = vmul.f32 %v1284, %v1437
      %v1441 = vmul.f32 %v1289, %v1437
      %v1442 = vmul.f32 %v1294, %v1437
      %v1443 = vmul.f32 %v1299, %v1437
      %v1444 = vmul.f32 %v1304, %v1437
      %v1445 = vmul.f32 %v1309, %v1437
      %v1446 = vmul.f32 %v1314, %v1437
      %v1447 = vmul.f32 %v1319, %v1437
      %v1448 = vmul.f32 %v1324, %v1437
      %v1449 = vmul.f32 %v1329, %v1437
      %v1450 = vmul.f32 %v1334, %v1437
      %v1451 = vmul.f32 %v1339, %v1437
      %v1452 = vmul.f32 %v1344, %v1437
      %v1453 = vmul.f32 %v1349, %v1437
      %v1454 = vmul.f32 %v1354, %v1437
      %v1455 = vmul.f32 %v1359, %v1437
      %v1456 = vmul.f32 %v1364, %v1437
      %v1457 = vmul.f32 %v1369, %v1437
      %v1458 = vmul.f32 %v1374, %v1437
      %v1459 = vmul.f32 %v1379, %v1437
      %v1460 = vmul.f32 %v1384, %v1437
      %v1461 = vmul.f32 %v1389, %v1437
      %v1462 = vmul.f32 %v1394, %v1437
      %v1463 = vmul.f32 %v1399, %v1437
      %v1464 = vmul.f32 %v1404, %v1437
      %v1465 = vmul.f32 %v1409, %v1437
      %v1466 = vmul.f32 %v1414, %v1437
      %v1467 = vmul.f32 %v1419, %v1437
      %v1468 = vmul.f32 %v1424, %v1437
      %v1469 = vmul.f32 %v1429, %v1437
      %v1470 = vmul.f32 %v1434, %v1437
      %v1471 = vadd.f32 %v1210, %v1439
      %v1472 = vadd.f32 %v1211, %v1440
      %v1473 = vadd.f32 %v1212, %v1441
      %v1474 = vadd.f32 %v1213, %v1442
      %v1475 = vadd.f32 %v1214, %v1443
      %v1476 = vadd.f32 %v1215, %v1444
      %v1477 = vadd.f32 %v1216, %v1445
      %v1478 = vadd.f32 %v1217, %v1446
      %v1479 = vadd.f32 %v1218, %v1447
      %v1480 = vadd.f32 %v1219, %v1448
      %v1481 = vadd.f32 %v1220, %v1449
      %v1482 = vadd.f32 %v1221, %v1450
      %v1483 = vadd.f32 %v1222, %v1451
      %v1484 = vadd.f32 %v1223, %v1452
      %v1485 = vadd.f32 %v1224, %v1453
      %v1486 = vadd.f32 %v1225, %v1454
      %v1487 = vadd.f32 %v1226, %v1455
      %v1488 = vadd.f32 %v1227, %v1456
      %v1489 = vadd.f32 %v1228, %v1457
      %v1490 = vadd.f32 %v1229, %v1458
      %v1491 = vadd.f32 %v1230, %v1459
      %v1492 = vadd.f32 %v1231, %v1460
      %v1493 = vadd.f32 %v1232, %v1461
      %v1494 = vadd.f32 %v1233, %v1462
      %v1495 = vadd.f32 %v1234, %v1463
      %v1496 = vadd.f32 %v1235, %v1464
      %v1497 = vadd.f32 %v1236, %v1465
      %v1498 = vadd.f32 %v1237, %v1466
      %v1499 = vadd.f32 %v1238, %v1467
      %v1500 = vadd.f32 %v1239, %v1468
      %v1501 = vadd.f32 %v1240, %v1469
      %v1502 = vadd.f32 %v1241, %v1470
      %v1503 = vld [vmem:[%s980 + $0x2] sm:$0xff]
      %v1504 = vld [vmem:[%s980 + $0xa] sm:$0xff]
      %v1505 = vld [vmem:[%s980 + $0x1a] sm:$0xff]
      %v1506 = vld [vmem:[%s980 + $0x22] sm:$0xff]
      %v1507 = vld [vmem:[%s980 + $0x32] sm:$0xff]
      %v1508 = vld [vmem:[%s980 + $0x3a] sm:$0xff]
      %v1509 = vld [vmem:[%s980 + $0x4a] sm:$0xff]
      %v1510 = vld [vmem:[%s980 + $0x52] sm:$0xff]
      %v1511 = vld [vmem:[%s980 + $0x62] sm:$0xff]
      %v1512 = vld [vmem:[%s980 + $0x6a] sm:$0xff]
      %v1513 = vld [vmem:[%s980 + $0x7a] sm:$0xff]
      %v1514 = vld [vmem:[%s980 + $0x82] sm:$0xff]
      %v1515 = vld [vmem:[%s980 + $0x92] sm:$0xff]
      %v1516 = vld [vmem:[%s980 + $0x9a] sm:$0xff]
      %v1517 = vld [vmem:[%s980 + $0xaa] sm:$0xff]
      %v1518 = vld [vmem:[%s980 + $0xb2] sm:$0xff]
      %v1519 = vld [vmem:[%s980 + $0xc2] sm:$0xff]
      %v1520 = vld [vmem:[%s980 + $0xca] sm:$0xff]
      %v1521 = vld [vmem:[%s980 + $0xda] sm:$0xff]
      %v1522 = vld [vmem:[%s980 + $0xe2] sm:$0xff]
      %v1523 = vld [vmem:[%s980 + $0xf2] sm:$0xff]
      %v1524 = vld [vmem:[%s980 + $0xfa] sm:$0xff]
      %v1525 = vld [vmem:[%s980 + $0x10a] sm:$0xff]
      %v1526 = vld [vmem:[%s980 + $0x112] sm:$0xff]
      %v1527 = vld [vmem:[%s980 + $0x122] sm:$0xff]
      %v1528 = vld [vmem:[%s980 + $0x12a] sm:$0xff]
      %v1529 = vld [vmem:[%s980 + $0x13a] sm:$0xff]
      %v1530 = vld [vmem:[%s980 + $0x142] sm:$0xff]
      %v1531 = vld [vmem:[%s980 + $0x152] sm:$0xff]
      %v1532 = vld [vmem:[%s980 + $0x15a] sm:$0xff]
      %v1533 = vld [vmem:[%s980 + $0x16a] sm:$0xff]
      %v1534 = vld [vmem:[%s980 + $0x172] sm:$0xff]
      %s1535 = scalar_lea.vmem %s1, 5
      %v1536 = vld [vmem:[%s1535] sm:$0x1]
      %1538 = vset.pattern.permute.xlu0 0
      %1539 = vperm.xlu0 %1538, %v1503
      %v1540 = vpop.permute.xlu0 %1539
      %1543 = vset.pattern.permute.xlu0 0
      %1544 = vperm.xlu0 %1543, %v1504
      %v1545 = vpop.permute.xlu0 %1544
      %1548 = vset.pattern.permute.xlu0 0
      %1549 = vperm.xlu0 %1548, %v1505
      %v1550 = vpop.permute.xlu0 %1549
      %1553 = vset.pattern.permute.xlu0 0
      %1554 = vperm.xlu0 %1553, %v1506
      %v1555 = vpop.permute.xlu0 %1554
      %1558 = vset.pattern.permute.xlu0 0
      %1559 = vperm.xlu0 %1558, %v1507
      %v1560 = vpop.permute.xlu0 %1559
      %1563 = vset.pattern.permute.xlu0 0
      %1564 = vperm.xlu0 %1563, %v1508
      %v1565 = vpop.permute.xlu0 %1564
      %1568 = vset.pattern.permute.xlu0 0
      %1569 = vperm.xlu0 %1568, %v1509
      %v1570 = vpop.permute.xlu0 %1569
      %1573 = vset.pattern.permute.xlu0 0
      %1574 = vperm.xlu0 %1573, %v1510
      %v1575 = vpop.permute.xlu0 %1574
      %1578 = vset.pattern.permute.xlu0 0
      %1579 = vperm.xlu0 %1578, %v1511
      %v1580 = vpop.permute.xlu0 %1579
      %1583 = vset.pattern.permute.xlu0 0
      %1584 = vperm.xlu0 %1583, %v1512
      %v1585 = vpop.permute.xlu0 %1584
      %1588 = vset.pattern.permute.xlu0 0
      %1589 = vperm.xlu0 %1588, %v1513
      %v1590 = vpop.permute.xlu0 %1589
      %1593 = vset.pattern.permute.xlu0 0
      %1594 = vperm.xlu0 %1593, %v1514
      %v1595 = vpop.permute.xlu0 %1594
      %1598 = vset.pattern.permute.xlu0 0
      %1599 = vperm.xlu0 %1598, %v1515
      %v1600 = vpop.permute.xlu0 %1599
      %1603 = vset.pattern.permute.xlu0 0
      %1604 = vperm.xlu0 %1603, %v1516
      %v1605 = vpop.permute.xlu0 %1604
      %1608 = vset.pattern.permute.xlu0 0
      %1609 = vperm.xlu0 %1608, %v1517
      %v1610 = vpop.permute.xlu0 %1609
      %1613 = vset.pattern.permute.xlu0 0
      %1614 = vperm.xlu0 %1613, %v1518
      %v1615 = vpop.permute.xlu0 %1614
      %1618 = vset.pattern.permute.xlu0 0
      %1619 = vperm.xlu0 %1618, %v1519
      %v1620 = vpop.permute.xlu0 %1619
      %1623 = vset.pattern.permute.xlu0 0
      %1624 = vperm.xlu0 %1623, %v1520
      %v1625 = vpop.permute.xlu0 %1624
      %1628 = vset.pattern.permute.xlu0 0
      %1629 = vperm.xlu0 %1628, %v1521
      %v1630 = vpop.permute.xlu0 %1629
      %1633 = vset.pattern.permute.xlu0 0
      %1634 = vperm.xlu0 %1633, %v1522
      %v1635 = vpop.permute.xlu0 %1634
      %1638 = vset.pattern.permute.xlu0 0
      %1639 = vperm.xlu0 %1638, %v1523
      %v1640 = vpop.permute.xlu0 %1639
      %1643 = vset.pattern.permute.xlu0 0
      %1644 = vperm.xlu0 %1643, %v1524
      %v1645 = vpop.permute.xlu0 %1644
      %1648 = vset.pattern.permute.xlu0 0
      %1649 = vperm.xlu0 %1648, %v1525
      %v1650 = vpop.permute.xlu0 %1649
      %1653 = vset.pattern.permute.xlu0 0
      %1654 = vperm.xlu0 %1653, %v1526
      %v1655 = vpop.permute.xlu0 %1654
      %1658 = vset.pattern.permute.xlu0 0
      %1659 = vperm.xlu0 %1658, %v1527
      %v1660 = vpop.permute.xlu0 %1659
      %1663 = vset.pattern.permute.xlu0 0
      %1664 = vperm.xlu0 %1663, %v1528
      %v1665 = vpop.permute.xlu0 %1664
      %1668 = vset.pattern.permute.xlu0 0
      %1669 = vperm.xlu0 %1668, %v1529
      %v1670 = vpop.permute.xlu0 %1669
      %1673 = vset.pattern.permute.xlu0 0
      %1674 = vperm.xlu0 %1673, %v1530
      %v1675 = vpop.permute.xlu0 %1674
      %1678 = vset.pattern.permute.xlu0 0
      %1679 = vperm.xlu0 %1678, %v1531
      %v1680 = vpop.permute.xlu0 %1679
      %1683 = vset.pattern.permute.xlu0 0
      %1684 = vperm.xlu0 %1683, %v1532
      %v1685 = vpop.permute.xlu0 %1684
      %1688 = vset.pattern.permute.xlu0 0
      %1689 = vperm.xlu0 %1688, %v1533
      %v1690 = vpop.permute.xlu0 %1689
      %1693 = vset.pattern.permute.xlu0 0
      %1694 = vperm.xlu0 %1693, %v1534
      %v1695 = vpop.permute.xlu0 %1694
      %v1698 = vperm.slane %v1536, 0
      %v1700 = vmul.f32 %v1540, %v1698
      %v1701 = vmul.f32 %v1545, %v1698
      %v1702 = vmul.f32 %v1550, %v1698
      %v1703 = vmul.f32 %v1555, %v1698
      %v1704 = vmul.f32 %v1560, %v1698
      %v1705 = vmul.f32 %v1565, %v1698
      %v1706 = vmul.f32 %v1570, %v1698
      %v1707 = vmul.f32 %v1575, %v1698
      %v1708 = vmul.f32 %v1580, %v1698
      %v1709 = vmul.f32 %v1585, %v1698
      %v1710 = vmul.f32 %v1590, %v1698
      %v1711 = vmul.f32 %v1595, %v1698
      %v1712 = vmul.f32 %v1600, %v1698
      %v1713 = vmul.f32 %v1605, %v1698
      %v1714 = vmul.f32 %v1610, %v1698
      %v1715 = vmul.f32 %v1615, %v1698
      %v1716 = vmul.f32 %v1620, %v1698
      %v1717 = vmul.f32 %v1625, %v1698
      %v1718 = vmul.f32 %v1630, %v1698
      %v1719 = vmul.f32 %v1635, %v1698
      %v1720 = vmul.f32 %v1640, %v1698
      %v1721 = vmul.f32 %v1645, %v1698
      %v1722 = vmul.f32 %v1650, %v1698
      %v1723 = vmul.f32 %v1655, %v1698
      %v1724 = vmul.f32 %v1660, %v1698
      %v1725 = vmul.f32 %v1665, %v1698
      %v1726 = vmul.f32 %v1670, %v1698
      %v1727 = vmul.f32 %v1675, %v1698
      %v1728 = vmul.f32 %v1680, %v1698
      %v1729 = vmul.f32 %v1685, %v1698
      %v1730 = vmul.f32 %v1690, %v1698
      %v1731 = vmul.f32 %v1695, %v1698
      %v1732 = vadd.f32 %v1471, %v1700
      %v1733 = vadd.f32 %v1472, %v1701
      %v1734 = vadd.f32 %v1473, %v1702
      %v1735 = vadd.f32 %v1474, %v1703
      %v1736 = vadd.f32 %v1475, %v1704
      %v1737 = vadd.f32 %v1476, %v1705
      %v1738 = vadd.f32 %v1477, %v1706
      %v1739 = vadd.f32 %v1478, %v1707
      %v1740 = vadd.f32 %v1479, %v1708
      %v1741 = vadd.f32 %v1480, %v1709
      %v1742 = vadd.f32 %v1481, %v1710
      %v1743 = vadd.f32 %v1482, %v1711
      %v1744 = vadd.f32 %v1483, %v1712
      %v1745 = vadd.f32 %v1484, %v1713
      %v1746 = vadd.f32 %v1485, %v1714
      %v1747 = vadd.f32 %v1486, %v1715
      %v1748 = vadd.f32 %v1487, %v1716
      %v1749 = vadd.f32 %v1488, %v1717
      %v1750 = vadd.f32 %v1489, %v1718
      %v1751 = vadd.f32 %v1490, %v1719
      %v1752 = vadd.f32 %v1491, %v1720
      %v1753 = vadd.f32 %v1492, %v1721
      %v1754 = vadd.f32 %v1493, %v1722
      %v1755 = vadd.f32 %v1494, %v1723
      %v1756 = vadd.f32 %v1495, %v1724
      %v1757 = vadd.f32 %v1496, %v1725
      %v1758 = vadd.f32 %v1497, %v1726
      %v1759 = vadd.f32 %v1498, %v1727
      %v1760 = vadd.f32 %v1499, %v1728
      %v1761 = vadd.f32 %v1500, %v1729
      %v1762 = vadd.f32 %v1501, %v1730
      %v1763 = vadd.f32 %v1502, %v1731
      %s1764 = scalar_lea.vmem %s192, 48
      %v1765 = vld [vmem:[%s1764] sm:$0xff]
      %v1766 = vld [vmem:[%s1764 + $0x8] sm:$0xff]
      %v1767 = vld [vmem:[%s1764 + $0x18] sm:$0xff]
      %v1768 = vld [vmem:[%s1764 + $0x20] sm:$0xff]
      %v1769 = vld [vmem:[%s1764 + $0x30] sm:$0xff]
      %v1770 = vld [vmem:[%s1764 + $0x38] sm:$0xff]
      %v1771 = vld [vmem:[%s1764 + $0x48] sm:$0xff]
      %v1772 = vld [vmem:[%s1764 + $0x50] sm:$0xff]
      %v1773 = vld [vmem:[%s1764 + $0x60] sm:$0xff]
      %v1774 = vld [vmem:[%s1764 + $0x68] sm:$0xff]
      %v1775 = vld [vmem:[%s1764 + $0x78] sm:$0xff]
      %v1776 = vld [vmem:[%s1764 + $0x80] sm:$0xff]
      %v1777 = vld [vmem:[%s1764 + $0x90] sm:$0xff]
      %v1778 = vld [vmem:[%s1764 + $0x98] sm:$0xff]
      %v1779 = vld [vmem:[%s1764 + $0xa8] sm:$0xff]
      %v1780 = vld [vmem:[%s1764 + $0xb0] sm:$0xff]
      %v1781 = vld [vmem:[%s1764 + $0xc0] sm:$0xff]
      %v1782 = vld [vmem:[%s1764 + $0xc8] sm:$0xff]
      %v1783 = vld [vmem:[%s1764 + $0xd8] sm:$0xff]
      %v1784 = vld [vmem:[%s1764 + $0xe0] sm:$0xff]
      %v1785 = vld [vmem:[%s1764 + $0xf0] sm:$0xff]
      %v1786 = vld [vmem:[%s1764 + $0xf8] sm:$0xff]
      %v1787 = vld [vmem:[%s1764 + $0x108] sm:$0xff]
      %v1788 = vld [vmem:[%s1764 + $0x110] sm:$0xff]
      %v1789 = vld [vmem:[%s1764 + $0x120] sm:$0xff]
      %v1790 = vld [vmem:[%s1764 + $0x128] sm:$0xff]
      %v1791 = vld [vmem:[%s1764 + $0x138] sm:$0xff]
      %v1792 = vld [vmem:[%s1764 + $0x140] sm:$0xff]
      %v1793 = vld [vmem:[%s1764 + $0x150] sm:$0xff]
      %v1794 = vld [vmem:[%s1764 + $0x158] sm:$0xff]
      %v1795 = vld [vmem:[%s1764 + $0x168] sm:$0xff]
      %v1796 = vld [vmem:[%s1764 + $0x170] sm:$0xff]
      %s1797 = scalar_lea.vmem %s1, 6
      %v1798 = vld [vmem:[%s1797] sm:$0x1]
      %1800 = vset.pattern.permute.xlu0 0
      %1801 = vperm.xlu0 %1800, %v1765
      %v1802 = vpop.permute.xlu0 %1801
      %1805 = vset.pattern.permute.xlu0 0
      %1806 = vperm.xlu0 %1805, %v1766
      %v1807 = vpop.permute.xlu0 %1806
      %1810 = vset.pattern.permute.xlu0 0
      %1811 = vperm.xlu0 %1810, %v1767
      %v1812 = vpop.permute.xlu0 %1811
      %1815 = vset.pattern.permute.xlu0 0
      %1816 = vperm.xlu0 %1815, %v1768
      %v1817 = vpop.permute.xlu0 %1816
      %1820 = vset.pattern.permute.xlu0 0
      %1821 = vperm.xlu0 %1820, %v1769
      %v1822 = vpop.permute.xlu0 %1821
      %1825 = vset.pattern.permute.xlu0 0
      %1826 = vperm.xlu0 %1825, %v1770
      %v1827 = vpop.permute.xlu0 %1826
      %1830 = vset.pattern.permute.xlu0 0
      %1831 = vperm.xlu0 %1830, %v1771
      %v1832 = vpop.permute.xlu0 %1831
      %1835 = vset.pattern.permute.xlu0 0
      %1836 = vperm.xlu0 %1835, %v1772
      %v1837 = vpop.permute.xlu0 %1836
      %1840 = vset.pattern.permute.xlu0 0
      %1841 = vperm.xlu0 %1840, %v1773
      %v1842 = vpop.permute.xlu0 %1841
      %1845 = vset.pattern.permute.xlu0 0
      %1846 = vperm.xlu0 %1845, %v1774
      %v1847 = vpop.permute.xlu0 %1846
      %1850 = vset.pattern.permute.xlu0 0
      %1851 = vperm.xlu0 %1850, %v1775
      %v1852 = vpop.permute.xlu0 %1851
      %1855 = vset.pattern.permute.xlu0 0
      %1856 = vperm.xlu0 %1855, %v1776
      %v1857 = vpop.permute.xlu0 %1856
      %1860 = vset.pattern.permute.xlu0 0
      %1861 = vperm.xlu0 %1860, %v1777
      %v1862 = vpop.permute.xlu0 %1861
      %1865 = vset.pattern.permute.xlu0 0
      %1866 = vperm.xlu0 %1865, %v1778
      %v1867 = vpop.permute.xlu0 %1866
      %1870 = vset.pattern.permute.xlu0 0
      %1871 = vperm.xlu0 %1870, %v1779
      %v1872 = vpop.permute.xlu0 %1871
      %1875 = vset.pattern.permute.xlu0 0
      %1876 = vperm.xlu0 %1875, %v1780
      %v1877 = vpop.permute.xlu0 %1876
      %1880 = vset.pattern.permute.xlu0 0
      %1881 = vperm.xlu0 %1880, %v1781
      %v1882 = vpop.permute.xlu0 %1881
      %1885 = vset.pattern.permute.xlu0 0
      %1886 = vperm.xlu0 %1885, %v1782
      %v1887 = vpop.permute.xlu0 %1886
      %1890 = vset.pattern.permute.xlu0 0
      %1891 = vperm.xlu0 %1890, %v1783
      %v1892 = vpop.permute.xlu0 %1891
      %1895 = vset.pattern.permute.xlu0 0
      %1896 = vperm.xlu0 %1895, %v1784
      %v1897 = vpop.permute.xlu0 %1896
      %1900 = vset.pattern.permute.xlu0 0
      %1901 = vperm.xlu0 %1900, %v1785
      %v1902 = vpop.permute.xlu0 %1901
      %1905 = vset.pattern.permute.xlu0 0
      %1906 = vperm.xlu0 %1905, %v1786
      %v1907 = vpop.permute.xlu0 %1906
      %1910 = vset.pattern.permute.xlu0 0
      %1911 = vperm.xlu0 %1910, %v1787
      %v1912 = vpop.permute.xlu0 %1911
      %1915 = vset.pattern.permute.xlu0 0
      %1916 = vperm.xlu0 %1915, %v1788
      %v1917 = vpop.permute.xlu0 %1916
      %1920 = vset.pattern.permute.xlu0 0
      %1921 = vperm.xlu0 %1920, %v1789
      %v1922 = vpop.permute.xlu0 %1921
      %1925 = vset.pattern.permute.xlu0 0
      %1926 = vperm.xlu0 %1925, %v1790
      %v1927 = vpop.permute.xlu0 %1926
      %1930 = vset.pattern.permute.xlu0 0
      %1931 = vperm.xlu0 %1930, %v1791
      %v1932 = vpop.permute.xlu0 %1931
      %1935 = vset.pattern.permute.xlu0 0
      %1936 = vperm.xlu0 %1935, %v1792
      %v1937 = vpop.permute.xlu0 %1936
      %1940 = vset.pattern.permute.xlu0 0
      %1941 = vperm.xlu0 %1940, %v1793
      %v1942 = vpop.permute.xlu0 %1941
      %1945 = vset.pattern.permute.xlu0 0
      %1946 = vperm.xlu0 %1945, %v1794
      %v1947 = vpop.permute.xlu0 %1946
      %1950 = vset.pattern.permute.xlu0 0
      %1951 = vperm.xlu0 %1950, %v1795
      %v1952 = vpop.permute.xlu0 %1951
      %1955 = vset.pattern.permute.xlu0 0
      %1956 = vperm.xlu0 %1955, %v1796
      %v1957 = vpop.permute.xlu0 %1956
      %v1960 = vperm.slane %v1798, 0
      %v1962 = vmul.f32 %v1802, %v1960
      %v1963 = vmul.f32 %v1807, %v1960
      %v1964 = vmul.f32 %v1812, %v1960
      %v1965 = vmul.f32 %v1817, %v1960
      %v1966 = vmul.f32 %v1822, %v1960
      %v1967 = vmul.f32 %v1827, %v1960
      %v1968 = vmul.f32 %v1832, %v1960
      %v1969 = vmul.f32 %v1837, %v1960
      %v1970 = vmul.f32 %v1842, %v1960
      %v1971 = vmul.f32 %v1847, %v1960
      %v1972 = vmul.f32 %v1852, %v1960
      %v1973 = vmul.f32 %v1857, %v1960
      %v1974 = vmul.f32 %v1862, %v1960
      %v1975 = vmul.f32 %v1867, %v1960
      %v1976 = vmul.f32 %v1872, %v1960
      %v1977 = vmul.f32 %v1877, %v1960
      %v1978 = vmul.f32 %v1882, %v1960
      %v1979 = vmul.f32 %v1887, %v1960
      %v1980 = vmul.f32 %v1892, %v1960
      %v1981 = vmul.f32 %v1897, %v1960
      %v1982 = vmul.f32 %v1902, %v1960
      %v1983 = vmul.f32 %v1907, %v1960
      %v1984 = vmul.f32 %v1912, %v1960
      %v1985 = vmul.f32 %v1917, %v1960
      %v1986 = vmul.f32 %v1922, %v1960
      %v1987 = vmul.f32 %v1927, %v1960
      %v1988 = vmul.f32 %v1932, %v1960
      %v1989 = vmul.f32 %v1937, %v1960
      %v1990 = vmul.f32 %v1942, %v1960
      %v1991 = vmul.f32 %v1947, %v1960
      %v1992 = vmul.f32 %v1952, %v1960
      %v1993 = vmul.f32 %v1957, %v1960
      %v1994 = vadd.f32 %v1732, %v1962
      %v1995 = vadd.f32 %v1733, %v1963
      %v1996 = vadd.f32 %v1734, %v1964
      %v1997 = vadd.f32 %v1735, %v1965
      %v1998 = vadd.f32 %v1736, %v1966
      %v1999 = vadd.f32 %v1737, %v1967
      %v2000 = vadd.f32 %v1738, %v1968
      %v2001 = vadd.f32 %v1739, %v1969
      %v2002 = vadd.f32 %v1740, %v1970
      %v2003 = vadd.f32 %v1741, %v1971
      %v2004 = vadd.f32 %v1742, %v1972
      %v2005 = vadd.f32 %v1743, %v1973
      %v2006 = vadd.f32 %v1744, %v1974
      %v2007 = vadd.f32 %v1745, %v1975
      %v2008 = vadd.f32 %v1746, %v1976
      %v2009 = vadd.f32 %v1747, %v1977
      %v2010 = vadd.f32 %v1748, %v1978
      %v2011 = vadd.f32 %v1749, %v1979
      %v2012 = vadd.f32 %v1750, %v1980
      %v2013 = vadd.f32 %v1751, %v1981
      %v2014 = vadd.f32 %v1752, %v1982
      %v2015 = vadd.f32 %v1753, %v1983
      %v2016 = vadd.f32 %v1754, %v1984
      %v2017 = vadd.f32 %v1755, %v1985
      %v2018 = vadd.f32 %v1756, %v1986
      %v2019 = vadd.f32 %v1757, %v1987
      %v2020 = vadd.f32 %v1758, %v1988
      %v2021 = vadd.f32 %v1759, %v1989
      %v2022 = vadd.f32 %v1760, %v1990
      %v2023 = vadd.f32 %v1761, %v1991
      %v2024 = vadd.f32 %v1762, %v1992
      %v2025 = vadd.f32 %v1763, %v1993
      %v2026 = vld [vmem:[%s1764 + $0x1] sm:$0xff]
      %v2027 = vld [vmem:[%s1764 + $0x9] sm:$0xff]
      %v2028 = vld [vmem:[%s1764 + $0x19] sm:$0xff]
      %v2029 = vld [vmem:[%s1764 + $0x21] sm:$0xff]
      %v2030 = vld [vmem:[%s1764 + $0x31] sm:$0xff]
      %v2031 = vld [vmem:[%s1764 + $0x39] sm:$0xff]
      %v2032 = vld [vmem:[%s1764 + $0x49] sm:$0xff]
      %v2033 = vld [vmem:[%s1764 + $0x51] sm:$0xff]
      %v2034 = vld [vmem:[%s1764 + $0x61] sm:$0xff]
      %v2035 = vld [vmem:[%s1764 + $0x69] sm:$0xff]
      %v2036 = vld [vmem:[%s1764 + $0x79] sm:$0xff]
      %v2037 = vld [vmem:[%s1764 + $0x81] sm:$0xff]
      %v2038 = vld [vmem:[%s1764 + $0x91] sm:$0xff]
      %v2039 = vld [vmem:[%s1764 + $0x99] sm:$0xff]
      %v2040 = vld [vmem:[%s1764 + $0xa9] sm:$0xff]
      %v2041 = vld [vmem:[%s1764 + $0xb1] sm:$0xff]
      %v2042 = vld [vmem:[%s1764 + $0xc1] sm:$0xff]
      %v2043 = vld [vmem:[%s1764 + $0xc9] sm:$0xff]
      %v2044 = vld [vmem:[%s1764 + $0xd9] sm:$0xff]
      %v2045 = vld [vmem:[%s1764 + $0xe1] sm:$0xff]
      %v2046 = vld [vmem:[%s1764 + $0xf1] sm:$0xff]
      %v2047 = vld [vmem:[%s1764 + $0xf9] sm:$0xff]
      %v2048 = vld [vmem:[%s1764 + $0x109] sm:$0xff]
      %v2049 = vld [vmem:[%s1764 + $0x111] sm:$0xff]
      %v2050 = vld [vmem:[%s1764 + $0x121] sm:$0xff]
      %v2051 = vld [vmem:[%s1764 + $0x129] sm:$0xff]
      %v2052 = vld [vmem:[%s1764 + $0x139] sm:$0xff]
      %v2053 = vld [vmem:[%s1764 + $0x141] sm:$0xff]
      %v2054 = vld [vmem:[%s1764 + $0x151] sm:$0xff]
      %v2055 = vld [vmem:[%s1764 + $0x159] sm:$0xff]
      %v2056 = vld [vmem:[%s1764 + $0x169] sm:$0xff]
      %v2057 = vld [vmem:[%s1764 + $0x171] sm:$0xff]
      %s2058 = scalar_lea.vmem %s1, 7
      %v2059 = vld [vmem:[%s2058] sm:$0x1]
      %2061 = vset.pattern.permute.xlu0 0
      %2062 = vperm.xlu0 %2061, %v2026
      %v2063 = vpop.permute.xlu0 %2062
      %2066 = vset.pattern.permute.xlu0 0
      %2067 = vperm.xlu0 %2066, %v2027
      %v2068 = vpop.permute.xlu0 %2067
      %2071 = vset.pattern.permute.xlu0 0
      %2072 = vperm.xlu0 %2071, %v2028
      %v2073 = vpop.permute.xlu0 %2072
      %2076 = vset.pattern.permute.xlu0 0
      %2077 = vperm.xlu0 %2076, %v2029
      %v2078 = vpop.permute.xlu0 %2077
      %2081 = vset.pattern.permute.xlu0 0
      %2082 = vperm.xlu0 %2081, %v2030
      %v2083 = vpop.permute.xlu0 %2082
      %2086 = vset.pattern.permute.xlu0 0
      %2087 = vperm.xlu0 %2086, %v2031
      %v2088 = vpop.permute.xlu0 %2087
      %2091 = vset.pattern.permute.xlu0 0
      %2092 = vperm.xlu0 %2091, %v2032
      %v2093 = vpop.permute.xlu0 %2092
      %2096 = vset.pattern.permute.xlu0 0
      %2097 = vperm.xlu0 %2096, %v2033
      %v2098 = vpop.permute.xlu0 %2097
      %2101 = vset.pattern.permute.xlu0 0
      %2102 = vperm.xlu0 %2101, %v2034
      %v2103 = vpop.permute.xlu0 %2102
      %2106 = vset.pattern.permute.xlu0 0
      %2107 = vperm.xlu0 %2106, %v2035
      %v2108 = vpop.permute.xlu0 %2107
      %2111 = vset.pattern.permute.xlu0 0
      %2112 = vperm.xlu0 %2111, %v2036
      %v2113 = vpop.permute.xlu0 %2112
      %2116 = vset.pattern.permute.xlu0 0
      %2117 = vperm.xlu0 %2116, %v2037
      %v2118 = vpop.permute.xlu0 %2117
      %2121 = vset.pattern.permute.xlu0 0
      %2122 = vperm.xlu0 %2121, %v2038
      %v2123 = vpop.permute.xlu0 %2122
      %2126 = vset.pattern.permute.xlu0 0
      %2127 = vperm.xlu0 %2126, %v2039
      %v2128 = vpop.permute.xlu0 %2127
      %2131 = vset.pattern.permute.xlu0 0
      %2132 = vperm.xlu0 %2131, %v2040
      %v2133 = vpop.permute.xlu0 %2132
      %2136 = vset.pattern.permute.xlu0 0
      %2137 = vperm.xlu0 %2136, %v2041
      %v2138 = vpop.permute.xlu0 %2137
      %2141 = vset.pattern.permute.xlu0 0
      %2142 = vperm.xlu0 %2141, %v2042
      %v2143 = vpop.permute.xlu0 %2142
      %2146 = vset.pattern.permute.xlu0 0
      %2147 = vperm.xlu0 %2146, %v2043
      %v2148 = vpop.permute.xlu0 %2147
      %2151 = vset.pattern.permute.xlu0 0
      %2152 = vperm.xlu0 %2151, %v2044
      %v2153 = vpop.permute.xlu0 %2152
      %2156 = vset.pattern.permute.xlu0 0
      %2157 = vperm.xlu0 %2156, %v2045
      %v2158 = vpop.permute.xlu0 %2157
      %2161 = vset.pattern.permute.xlu0 0
      %2162 = vperm.xlu0 %2161, %v2046
      %v2163 = vpop.permute.xlu0 %2162
      %2166 = vset.pattern.permute.xlu0 0
      %2167 = vperm.xlu0 %2166, %v2047
      %v2168 = vpop.permute.xlu0 %2167
      %2171 = vset.pattern.permute.xlu0 0
      %2172 = vperm.xlu0 %2171, %v2048
      %v2173 = vpop.permute.xlu0 %2172
      %2176 = vset.pattern.permute.xlu0 0
      %2177 = vperm.xlu0 %2176, %v2049
      %v2178 = vpop.permute.xlu0 %2177
      %2181 = vset.pattern.permute.xlu0 0
      %2182 = vperm.xlu0 %2181, %v2050
      %v2183 = vpop.permute.xlu0 %2182
      %2186 = vset.pattern.permute.xlu0 0
      %2187 = vperm.xlu0 %2186, %v2051
      %v2188 = vpop.permute.xlu0 %2187
      %2191 = vset.pattern.permute.xlu0 0
      %2192 = vperm.xlu0 %2191, %v2052
      %v2193 = vpop.permute.xlu0 %2192
      %2196 = vset.pattern.permute.xlu0 0
      %2197 = vperm.xlu0 %2196, %v2053
      %v2198 = vpop.permute.xlu0 %2197
      %2201 = vset.pattern.permute.xlu0 0
      %2202 = vperm.xlu0 %2201, %v2054
      %v2203 = vpop.permute.xlu0 %2202
      %2206 = vset.pattern.permute.xlu0 0
      %2207 = vperm.xlu0 %2206, %v2055
      %v2208 = vpop.permute.xlu0 %2207
      %2211 = vset.pattern.permute.xlu0 0
      %2212 = vperm.xlu0 %2211, %v2056
      %v2213 = vpop.permute.xlu0 %2212
      %2216 = vset.pattern.permute.xlu0 0
      %2217 = vperm.xlu0 %2216, %v2057
      %v2218 = vpop.permute.xlu0 %2217
      %v2221 = vperm.slane %v2059, 0
      %v2223 = vmul.f32 %v2063, %v2221
      %v2224 = vmul.f32 %v2068, %v2221
      %v2225 = vmul.f32 %v2073, %v2221
      %v2226 = vmul.f32 %v2078, %v2221
      %v2227 = vmul.f32 %v2083, %v2221
      %v2228 = vmul.f32 %v2088, %v2221
      %v2229 = vmul.f32 %v2093, %v2221
      %v2230 = vmul.f32 %v2098, %v2221
      %v2231 = vmul.f32 %v2103, %v2221
      %v2232 = vmul.f32 %v2108, %v2221
      %v2233 = vmul.f32 %v2113, %v2221
      %v2234 = vmul.f32 %v2118, %v2221
      %v2235 = vmul.f32 %v2123, %v2221
      %v2236 = vmul.f32 %v2128, %v2221
      %v2237 = vmul.f32 %v2133, %v2221
      %v2238 = vmul.f32 %v2138, %v2221
      %v2239 = vmul.f32 %v2143, %v2221
      %v2240 = vmul.f32 %v2148, %v2221
      %v2241 = vmul.f32 %v2153, %v2221
      %v2242 = vmul.f32 %v2158, %v2221
      %v2243 = vmul.f32 %v2163, %v2221
      %v2244 = vmul.f32 %v2168, %v2221
      %v2245 = vmul.f32 %v2173, %v2221
      %v2246 = vmul.f32 %v2178, %v2221
      %v2247 = vmul.f32 %v2183, %v2221
      %v2248 = vmul.f32 %v2188, %v2221
      %v2249 = vmul.f32 %v2193, %v2221
      %v2250 = vmul.f32 %v2198, %v2221
      %v2251 = vmul.f32 %v2203, %v2221
      %v2252 = vmul.f32 %v2208, %v2221
      %v2253 = vmul.f32 %v2213, %v2221
      %v2254 = vmul.f32 %v2218, %v2221
      %v2255 = vadd.f32 %v1994, %v2223
      %v2256 = vadd.f32 %v1995, %v2224
      %v2257 = vadd.f32 %v1996, %v2225
      %v2258 = vadd.f32 %v1997, %v2226
      %v2259 = vadd.f32 %v1998, %v2227
      %v2260 = vadd.f32 %v1999, %v2228
      %v2261 = vadd.f32 %v2000, %v2229
      %v2262 = vadd.f32 %v2001, %v2230
      %v2263 = vadd.f32 %v2002, %v2231
      %v2264 = vadd.f32 %v2003, %v2232
      %v2265 = vadd.f32 %v2004, %v2233
      %v2266 = vadd.f32 %v2005, %v2234
      %v2267 = vadd.f32 %v2006, %v2235
      %v2268 = vadd.f32 %v2007, %v2236
      %v2269 = vadd.f32 %v2008, %v2237
      %v2270 = vadd.f32 %v2009, %v2238
      %v2271 = vadd.f32 %v2010, %v2239
      %v2272 = vadd.f32 %v2011, %v2240
      %v2273 = vadd.f32 %v2012, %v2241
      %v2274 = vadd.f32 %v2013, %v2242
      %v2275 = vadd.f32 %v2014, %v2243
      %v2276 = vadd.f32 %v2015, %v2244
      %v2277 = vadd.f32 %v2016, %v2245
      %v2278 = vadd.f32 %v2017, %v2246
      %v2279 = vadd.f32 %v2018, %v2247
      %v2280 = vadd.f32 %v2019, %v2248
      %v2281 = vadd.f32 %v2020, %v2249
      %v2282 = vadd.f32 %v2021, %v2250
      %v2283 = vadd.f32 %v2022, %v2251
      %v2284 = vadd.f32 %v2023, %v2252
      %v2285 = vadd.f32 %v2024, %v2253
      %v2286 = vadd.f32 %v2025, %v2254
      %v2287 = vld [vmem:[%s1764 + $0x2] sm:$0xff]
      %v2288 = vld [vmem:[%s1764 + $0xa] sm:$0xff]
      %v2289 = vld [vmem:[%s1764 + $0x1a] sm:$0xff]
      %v2290 = vld [vmem:[%s1764 + $0x22] sm:$0xff]
      %v2291 = vld [vmem:[%s1764 + $0x32] sm:$0xff]
      %v2292 = vld [vmem:[%s1764 + $0x3a] sm:$0xff]
      %v2293 = vld [vmem:[%s1764 + $0x4a] sm:$0xff]
      %v2294 = vld [vmem:[%s1764 + $0x52] sm:$0xff]
      %v2295 = vld [vmem:[%s1764 + $0x62] sm:$0xff]
      %v2296 = vld [vmem:[%s1764 + $0x6a] sm:$0xff]
      %v2297 = vld [vmem:[%s1764 + $0x7a] sm:$0xff]
      %v2298 = vld [vmem:[%s1764 + $0x82] sm:$0xff]
      %v2299 = vld [vmem:[%s1764 + $0x92] sm:$0xff]
      %v2300 = vld [vmem:[%s1764 + $0x9a] sm:$0xff]
      %v2301 = vld [vmem:[%s1764 + $0xaa] sm:$0xff]
      %v2302 = vld [vmem:[%s1764 + $0xb2] sm:$0xff]
      %v2303 = vld [vmem:[%s1764 + $0xc2] sm:$0xff]
      %v2304 = vld [vmem:[%s1764 + $0xca] sm:$0xff]
      %v2305 = vld [vmem:[%s1764 + $0xda] sm:$0xff]
      %v2306 = vld [vmem:[%s1764 + $0xe2] sm:$0xff]
      %v2307 = vld [vmem:[%s1764 + $0xf2] sm:$0xff]
      %v2308 = vld [vmem:[%s1764 + $0xfa] sm:$0xff]
      %v2309 = vld [vmem:[%s1764 + $0x10a] sm:$0xff]
      %v2310 = vld [vmem:[%s1764 + $0x112] sm:$0xff]
      %v2311 = vld [vmem:[%s1764 + $0x122] sm:$0xff]
      %v2312 = vld [vmem:[%s1764 + $0x12a] sm:$0xff]
      %v2313 = vld [vmem:[%s1764 + $0x13a] sm:$0xff]
      %v2314 = vld [vmem:[%s1764 + $0x142] sm:$0xff]
      %v2315 = vld [vmem:[%s1764 + $0x152] sm:$0xff]
      %v2316 = vld [vmem:[%s1764 + $0x15a] sm:$0xff]
      %v2317 = vld [vmem:[%s1764 + $0x16a] sm:$0xff]
      %v2318 = vld [vmem:[%s1764 + $0x172] sm:$0xff]
      %s2319 = scalar_lea.vmem %s1, 8
      %v2320 = vld [vmem:[%s2319] sm:$0x1]
      %2322 = vset.pattern.permute.xlu0 0
      %2323 = vperm.xlu0 %2322, %v2287
      %v2324 = vpop.permute.xlu0 %2323
      %2327 = vset.pattern.permute.xlu0 0
      %2328 = vperm.xlu0 %2327, %v2288
      %v2329 = vpop.permute.xlu0 %2328
      %2332 = vset.pattern.permute.xlu0 0
      %2333 = vperm.xlu0 %2332, %v2289
      %v2334 = vpop.permute.xlu0 %2333
      %2337 = vset.pattern.permute.xlu0 0
      %2338 = vperm.xlu0 %2337, %v2290
      %v2339 = vpop.permute.xlu0 %2338
      %2342 = vset.pattern.permute.xlu0 0
      %2343 = vperm.xlu0 %2342, %v2291
      %v2344 = vpop.permute.xlu0 %2343
      %2347 = vset.pattern.permute.xlu0 0
      %2348 = vperm.xlu0 %2347, %v2292
      %v2349 = vpop.permute.xlu0 %2348
      %2352 = vset.pattern.permute.xlu0 0
      %2353 = vperm.xlu0 %2352, %v2293
      %v2354 = vpop.permute.xlu0 %2353
      %2357 = vset.pattern.permute.xlu0 0
      %2358 = vperm.xlu0 %2357, %v2294
      %v2359 = vpop.permute.xlu0 %2358
      %2362 = vset.pattern.permute.xlu0 0
      %2363 = vperm.xlu0 %2362, %v2295
      %v2364 = vpop.permute.xlu0 %2363
      %2367 = vset.pattern.permute.xlu0 0
      %2368 = vperm.xlu0 %2367, %v2296
      %v2369 = vpop.permute.xlu0 %2368
      %2372 = vset.pattern.permute.xlu0 0
      %2373 = vperm.xlu0 %2372, %v2297
      %v2374 = vpop.permute.xlu0 %2373
      %2377 = vset.pattern.permute.xlu0 0
      %2378 = vperm.xlu0 %2377, %v2298
      %v2379 = vpop.permute.xlu0 %2378
      %2382 = vset.pattern.permute.xlu0 0
      %2383 = vperm.xlu0 %2382, %v2299
      %v2384 = vpop.permute.xlu0 %2383
      %2387 = vset.pattern.permute.xlu0 0
      %2388 = vperm.xlu0 %2387, %v2300
      %v2389 = vpop.permute.xlu0 %2388
      %2392 = vset.pattern.permute.xlu0 0
      %2393 = vperm.xlu0 %2392, %v2301
      %v2394 = vpop.permute.xlu0 %2393
      %2397 = vset.pattern.permute.xlu0 0
      %2398 = vperm.xlu0 %2397, %v2302
      %v2399 = vpop.permute.xlu0 %2398
      %2402 = vset.pattern.permute.xlu0 0
      %2403 = vperm.xlu0 %2402, %v2303
      %v2404 = vpop.permute.xlu0 %2403
      %2407 = vset.pattern.permute.xlu0 0
      %2408 = vperm.xlu0 %2407, %v2304
      %v2409 = vpop.permute.xlu0 %2408
      %2412 = vset.pattern.permute.xlu0 0
      %2413 = vperm.xlu0 %2412, %v2305
      %v2414 = vpop.permute.xlu0 %2413
      %2417 = vset.pattern.permute.xlu0 0
      %2418 = vperm.xlu0 %2417, %v2306
      %v2419 = vpop.permute.xlu0 %2418
      %2422 = vset.pattern.permute.xlu0 0
      %2423 = vperm.xlu0 %2422, %v2307
      %v2424 = vpop.permute.xlu0 %2423
      %2427 = vset.pattern.permute.xlu0 0
      %2428 = vperm.xlu0 %2427, %v2308
      %v2429 = vpop.permute.xlu0 %2428
      %2432 = vset.pattern.permute.xlu0 0
      %2433 = vperm.xlu0 %2432, %v2309
      %v2434 = vpop.permute.xlu0 %2433
      %2437 = vset.pattern.permute.xlu0 0
      %2438 = vperm.xlu0 %2437, %v2310
      %v2439 = vpop.permute.xlu0 %2438
      %2442 = vset.pattern.permute.xlu0 0
      %2443 = vperm.xlu0 %2442, %v2311
      %v2444 = vpop.permute.xlu0 %2443
      %2447 = vset.pattern.permute.xlu0 0
      %2448 = vperm.xlu0 %2447, %v2312
      %v2449 = vpop.permute.xlu0 %2448
      %2452 = vset.pattern.permute.xlu0 0
      %2453 = vperm.xlu0 %2452, %v2313
      %v2454 = vpop.permute.xlu0 %2453
      %2457 = vset.pattern.permute.xlu0 0
      %2458 = vperm.xlu0 %2457, %v2314
      %v2459 = vpop.permute.xlu0 %2458
      %2462 = vset.pattern.permute.xlu0 0
      %2463 = vperm.xlu0 %2462, %v2315
      %v2464 = vpop.permute.xlu0 %2463
      %2467 = vset.pattern.permute.xlu0 0
      %2468 = vperm.xlu0 %2467, %v2316
      %v2469 = vpop.permute.xlu0 %2468
      %2472 = vset.pattern.permute.xlu0 0
      %2473 = vperm.xlu0 %2472, %v2317
      %v2474 = vpop.permute.xlu0 %2473
      %2477 = vset.pattern.permute.xlu0 0
      %2478 = vperm.xlu0 %2477, %v2318
      %v2479 = vpop.permute.xlu0 %2478
      %v2482 = vperm.slane %v2320, 0
      %v2484 = vmul.f32 %v2324, %v2482
      %v2485 = vmul.f32 %v2329, %v2482
      %v2486 = vmul.f32 %v2334, %v2482
      %v2487 = vmul.f32 %v2339, %v2482
      %v2488 = vmul.f32 %v2344, %v2482
      %v2489 = vmul.f32 %v2349, %v2482
      %v2490 = vmul.f32 %v2354, %v2482
      %v2491 = vmul.f32 %v2359, %v2482
      %v2492 = vmul.f32 %v2364, %v2482
      %v2493 = vmul.f32 %v2369, %v2482
      %v2494 = vmul.f32 %v2374, %v2482
      %v2495 = vmul.f32 %v2379, %v2482
      %v2496 = vmul.f32 %v2384, %v2482
      %v2497 = vmul.f32 %v2389, %v2482
      %v2498 = vmul.f32 %v2394, %v2482
      %v2499 = vmul.f32 %v2399, %v2482
      %v2500 = vmul.f32 %v2404, %v2482
      %v2501 = vmul.f32 %v2409, %v2482
      %v2502 = vmul.f32 %v2414, %v2482
      %v2503 = vmul.f32 %v2419, %v2482
      %v2504 = vmul.f32 %v2424, %v2482
      %v2505 = vmul.f32 %v2429, %v2482
      %v2506 = vmul.f32 %v2434, %v2482
      %v2507 = vmul.f32 %v2439, %v2482
      %v2508 = vmul.f32 %v2444, %v2482
      %v2509 = vmul.f32 %v2449, %v2482
      %v2510 = vmul.f32 %v2454, %v2482
      %v2511 = vmul.f32 %v2459, %v2482
      %v2512 = vmul.f32 %v2464, %v2482
      %v2513 = vmul.f32 %v2469, %v2482
      %v2514 = vmul.f32 %v2474, %v2482
      %v2515 = vmul.f32 %v2479, %v2482
      %v2516 = vadd.f32 %v2255, %v2484
      %v2517 = vadd.f32 %v2256, %v2485
      %v2518 = vadd.f32 %v2257, %v2486
      %v2519 = vadd.f32 %v2258, %v2487
      %v2520 = vadd.f32 %v2259, %v2488
      %v2521 = vadd.f32 %v2260, %v2489
      %v2522 = vadd.f32 %v2261, %v2490
      %v2523 = vadd.f32 %v2262, %v2491
      %v2524 = vadd.f32 %v2263, %v2492
      %v2525 = vadd.f32 %v2264, %v2493
      %v2526 = vadd.f32 %v2265, %v2494
      %v2527 = vadd.f32 %v2266, %v2495
      %v2528 = vadd.f32 %v2267, %v2496
      %v2529 = vadd.f32 %v2268, %v2497
      %v2530 = vadd.f32 %v2269, %v2498
      %v2531 = vadd.f32 %v2270, %v2499
      %v2532 = vadd.f32 %v2271, %v2500
      %v2533 = vadd.f32 %v2272, %v2501
      %v2534 = vadd.f32 %v2273, %v2502
      %v2535 = vadd.f32 %v2274, %v2503
      %v2536 = vadd.f32 %v2275, %v2504
      %v2537 = vadd.f32 %v2276, %v2505
      %v2538 = vadd.f32 %v2277, %v2506
      %v2539 = vadd.f32 %v2278, %v2507
      %v2540 = vadd.f32 %v2279, %v2508
      %v2541 = vadd.f32 %v2280, %v2509
      %v2542 = vadd.f32 %v2281, %v2510
      %v2543 = vadd.f32 %v2282, %v2511
      %v2544 = vadd.f32 %v2283, %v2512
      %v2545 = vadd.f32 %v2284, %v2513
      %v2546 = vadd.f32 %v2285, %v2514
      %v2547 = vadd.f32 %v2286, %v2515
      %v2548 = vld [vmem:[%s2] sm:$0xff]
      %v2549 = vld [vmem:[%s2 + $0x8] sm:$0xff]
      %v2550 = vld [vmem:[%s2 + $0x10] sm:$0xff]
      %v2551 = vld [vmem:[%s2 + $0x18] sm:$0xff]
      %v2552 = vld [vmem:[%s2 + $0x20] sm:$0xff]
      %v2553 = vld [vmem:[%s2 + $0x28] sm:$0xff]
      %v2554 = vld [vmem:[%s2 + $0x30] sm:$0xff]
      %v2555 = vld [vmem:[%s2 + $0x38] sm:$0xff]
      %v2556 = vld [vmem:[%s2 + $0x40] sm:$0xff]
      %v2557 = vld [vmem:[%s2 + $0x48] sm:$0xff]
      %v2558 = vld [vmem:[%s2 + $0x50] sm:$0xff]
      %v2559 = vld [vmem:[%s2 + $0x58] sm:$0xff]
      %v2560 = vld [vmem:[%s2 + $0x60] sm:$0xff]
      %v2561 = vld [vmem:[%s2 + $0x68] sm:$0xff]
      %v2562 = vld [vmem:[%s2 + $0x70] sm:$0xff]
      %v2563 = vld [vmem:[%s2 + $0x78] sm:$0xff]
      %v2564 = vld [vmem:[%s2 + $0x80] sm:$0xff]
      %v2565 = vld [vmem:[%s2 + $0x88] sm:$0xff]
      %v2566 = vld [vmem:[%s2 + $0x90] sm:$0xff]
      %v2567 = vld [vmem:[%s2 + $0x98] sm:$0xff]
      %v2568 = vld [vmem:[%s2 + $0xa0] sm:$0xff]
      %v2569 = vld [vmem:[%s2 + $0xa8] sm:$0xff]
      %v2570 = vld [vmem:[%s2 + $0xb0] sm:$0xff]
      %v2571 = vld [vmem:[%s2 + $0xb8] sm:$0xff]
      %v2572 = vld [vmem:[%s2 + $0xc0] sm:$0xff]
      %v2573 = vld [vmem:[%s2 + $0xc8] sm:$0xff]
      %v2574 = vld [vmem:[%s2 + $0xd0] sm:$0xff]
      %v2575 = vld [vmem:[%s2 + $0xd8] sm:$0xff]
      %v2576 = vld [vmem:[%s2 + $0xe0] sm:$0xff]
      %v2577 = vld [vmem:[%s2 + $0xe8] sm:$0xff]
      %v2578 = vld [vmem:[%s2 + $0xf0] sm:$0xff]
      %v2579 = vld [vmem:[%s2 + $0xf8] sm:$0xff]
      %v2580 = vld [vmem:[%s2 + $0x100] sm:$0xff]
      %v2581 = vld [vmem:[%s2 + $0x108] sm:$0xff]
      %v2582 = vld [vmem:[%s2 + $0x110] sm:$0xff]
      %v2583 = vld [vmem:[%s2 + $0x118] sm:$0xff]
      %v2584 = vld [vmem:[%s2 + $0x120] sm:$0xff]
      %v2585 = vld [vmem:[%s2 + $0x128] sm:$0xff]
      %v2586 = vld [vmem:[%s2 + $0x130] sm:$0xff]
      %v2587 = vld [vmem:[%s2 + $0x138] sm:$0xff]
      %v2588 = vld [vmem:[%s2 + $0x140] sm:$0xff]
      %v2589 = vld [vmem:[%s2 + $0x148] sm:$0xff]
      %v2590 = vld [vmem:[%s2 + $0x150] sm:$0xff]
      %v2591 = vld [vmem:[%s2 + $0x158] sm:$0xff]
      %v2592 = vld [vmem:[%s2 + $0x160] sm:$0xff]
      %v2593 = vld [vmem:[%s2 + $0x168] sm:$0xff]
      %v2594 = vld [vmem:[%s2 + $0x170] sm:$0xff]
      %v2595 = vld [vmem:[%s2 + $0x178] sm:$0xff]
      %v2596 = vld [vmem:[%s2 + $0x180] sm:$0xff]
      %v2597 = vld [vmem:[%s2 + $0x188] sm:$0xff]
      %v2598 = vld [vmem:[%s2 + $0x190] sm:$0xff]
      %v2599 = vld [vmem:[%s2 + $0x198] sm:$0xff]
      %v2600 = vld [vmem:[%s2 + $0x1a0] sm:$0xff]
      %v2601 = vld [vmem:[%s2 + $0x1a8] sm:$0xff]
      %v2602 = vld [vmem:[%s2 + $0x1b0] sm:$0xff]
      %v2603 = vld [vmem:[%s2 + $0x1b8] sm:$0xff]
      %v2604 = vld [vmem:[%s2 + $0x1c0] sm:$0xff]
      %v2605 = vld [vmem:[%s2 + $0x1c8] sm:$0xff]
      %v2606 = vld [vmem:[%s2 + $0x1d0] sm:$0xff]
      %v2607 = vld [vmem:[%s2 + $0x1d8] sm:$0xff]
      %v2608 = vld [vmem:[%s2 + $0x1e0] sm:$0xff]
      %v2609 = vld [vmem:[%s2 + $0x1e8] sm:$0xff]
      %v2610 = vld [vmem:[%s2 + $0x1f0] sm:$0xff]
      %v2611 = vld [vmem:[%s2 + $0x1f8] sm:$0xff]
      %2612 = vmatpush.msra.mxu0 %v2531
      %2613 = vmatpush.msra.mxu0 %v2530
      %2614 = vmatpush.msra.mxu0 %v2529
      %2615 = vmatpush.msra.mxu0 %v2528
      %2616 = vmatpush.msra.mxu0 %v2527
      %2617 = vmatpush.msra.mxu0 %v2526
      %2618 = vmatpush.msra.mxu0 %v2525
      %2619 = vmatpush.msra.mxu0 %v2524
      %2620 = vmatpush.msra.mxu0 %v2523
      %2621 = vmatpush.msra.mxu0 %v2522
      %2622 = vmatpush.msra.mxu0 %v2521
      %2623 = vmatpush.msra.mxu0 %v2520
      %2624 = vmatpush.msra.mxu0 %v2519
      %2625 = vmatpush.msra.mxu0 %v2518
      %2626 = vmatpush.msra.mxu0 %v2517
      %2627 = vmatpush.msra.mxu0 %v2516
      %2628 = vmatmul.f32.gmra.mxu0 %v2548
      %v2629 = vpop.f32.mrf.mxu0
      %v2630 = vadd.f32 0.0, %v2629
      %2631 = vmatmul.f32.gmra.mxu0 %v2550
      %v2632 = vpop.f32.mrf.mxu0
      %v2633 = vadd.f32 0.0, %v2632
      %2634 = vmatmul.f32.gmra.mxu0 %v2552
      %v2635 = vpop.f32.mrf.mxu0
      %v2636 = vadd.f32 0.0, %v2635
      %2637 = vmatmul.f32.gmra.mxu0 %v2554
      %v2638 = vpop.f32.mrf.mxu0
      %v2639 = vadd.f32 0.0, %v2638
      %2640 = vmatmul.f32.gmra.mxu0 %v2556
      %v2641 = vpop.f32.mrf.mxu0
      %v2642 = vadd.f32 0.0, %v2641
      %2643 = vmatmul.f32.gmra.mxu0 %v2558
      %v2644 = vpop.f32.mrf.mxu0
      %v2645 = vadd.f32 0.0, %v2644
      %2646 = vmatmul.f32.gmra.mxu0 %v2560
      %v2647 = vpop.f32.mrf.mxu0
      %v2648 = vadd.f32 0.0, %v2647
      %2649 = vmatmul.f32.gmra.mxu0 %v2562
      %v2650 = vpop.f32.mrf.mxu0
      %v2651 = vadd.f32 0.0, %v2650
      %2652 = vmatmul.f32.gmra.mxu0 %v2564
      %v2653 = vpop.f32.mrf.mxu0
      %v2654 = vadd.f32 0.0, %v2653
      %2655 = vmatmul.f32.gmra.mxu0 %v2566
      %v2656 = vpop.f32.mrf.mxu0
      %v2657 = vadd.f32 0.0, %v2656
      %2658 = vmatmul.f32.gmra.mxu0 %v2568
      %v2659 = vpop.f32.mrf.mxu0
      %v2660 = vadd.f32 0.0, %v2659
      %2661 = vmatmul.f32.gmra.mxu0 %v2570
      %v2662 = vpop.f32.mrf.mxu0
      %v2663 = vadd.f32 0.0, %v2662
      %2664 = vmatmul.f32.gmra.mxu0 %v2572
      %v2665 = vpop.f32.mrf.mxu0
      %v2666 = vadd.f32 0.0, %v2665
      %2667 = vmatmul.f32.gmra.mxu0 %v2574
      %v2668 = vpop.f32.mrf.mxu0
      %v2669 = vadd.f32 0.0, %v2668
      %2670 = vmatmul.f32.gmra.mxu0 %v2576
      %v2671 = vpop.f32.mrf.mxu0
      %v2672 = vadd.f32 0.0, %v2671
      %2673 = vmatmul.f32.gmra.mxu0 %v2578
      %v2674 = vpop.f32.mrf.mxu0
      %v2675 = vadd.f32 0.0, %v2674
      %2676 = vmatmul.f32.gmra.mxu0 %v2580
      %v2677 = vpop.f32.mrf.mxu0
      %v2678 = vadd.f32 0.0, %v2677
      %2679 = vmatmul.f32.gmra.mxu0 %v2582
      %v2680 = vpop.f32.mrf.mxu0
      %v2681 = vadd.f32 0.0, %v2680
      %2682 = vmatmul.f32.gmra.mxu0 %v2584
      %v2683 = vpop.f32.mrf.mxu0
      %v2684 = vadd.f32 0.0, %v2683
      %2685 = vmatmul.f32.gmra.mxu0 %v2586
      %v2686 = vpop.f32.mrf.mxu0
      %v2687 = vadd.f32 0.0, %v2686
      %2688 = vmatmul.f32.gmra.mxu0 %v2588
      %v2689 = vpop.f32.mrf.mxu0
      %v2690 = vadd.f32 0.0, %v2689
      %2691 = vmatmul.f32.gmra.mxu0 %v2590
      %v2692 = vpop.f32.mrf.mxu0
      %v2693 = vadd.f32 0.0, %v2692
      %2694 = vmatmul.f32.gmra.mxu0 %v2592
      %v2695 = vpop.f32.mrf.mxu0
      %v2696 = vadd.f32 0.0, %v2695
      %2697 = vmatmul.f32.gmra.mxu0 %v2594
      %v2698 = vpop.f32.mrf.mxu0
      %v2699 = vadd.f32 0.0, %v2698
      %2700 = vmatmul.f32.gmra.mxu0 %v2596
      %v2701 = vpop.f32.mrf.mxu0
      %v2702 = vadd.f32 0.0, %v2701
      %2703 = vmatmul.f32.gmra.mxu0 %v2598
      %v2704 = vpop.f32.mrf.mxu0
      %v2705 = vadd.f32 0.0, %v2704
      %2706 = vmatmul.f32.gmra.mxu0 %v2600
      %v2707 = vpop.f32.mrf.mxu0
      %v2708 = vadd.f32 0.0, %v2707
      %2709 = vmatmul.f32.gmra.mxu0 %v2602
      %v2710 = vpop.f32.mrf.mxu0
      %v2711 = vadd.f32 0.0, %v2710
      %2712 = vmatmul.f32.gmra.mxu0 %v2604
      %v2713 = vpop.f32.mrf.mxu0
      %v2714 = vadd.f32 0.0, %v2713
      %2715 = vmatmul.f32.gmra.mxu0 %v2606
      %v2716 = vpop.f32.mrf.mxu0
      %v2717 = vadd.f32 0.0, %v2716
      %2718 = vmatmul.f32.gmra.mxu0 %v2608
      %v2719 = vpop.f32.mrf.mxu0
      %v2720 = vadd.f32 0.0, %v2719
      %2721 = vmatmul.f32.gmra.mxu0 %v2610
      %v2722 = vpop.f32.mrf.mxu0
      %v2723 = vadd.f32 0.0, %v2722
      %2724 = vdwg.mxu0
      %2725 = vmatpush.msra.mxu0 %v2547
      %2726 = vmatpush.msra.mxu0 %v2546
      %2727 = vmatpush.msra.mxu0 %v2545
      %2728 = vmatpush.msra.mxu0 %v2544
      %2729 = vmatpush.msra.mxu0 %v2543
      %2730 = vmatpush.msra.mxu0 %v2542
      %2731 = vmatpush.msra.mxu0 %v2541
      %2732 = vmatpush.msra.mxu0 %v2540
      %2733 = vmatpush.msra.mxu0 %v2539
      %2734 = vmatpush.msra.mxu0 %v2538
      %2735 = vmatpush.msra.mxu0 %v2537
      %2736 = vmatpush.msra.mxu0 %v2536
      %2737 = vmatpush.msra.mxu0 %v2535
      %2738 = vmatpush.msra.mxu0 %v2534
      %2739 = vmatpush.msra.mxu0 %v2533
      %2740 = vmatpush.msra.mxu0 %v2532
      %2741 = vmatmul.f32.gmra.mxu0 %v2549
      %v2742 = vpop.f32.mrf.mxu0
      %v2743 = vadd.f32 %v2630, %v2742
      %2744 = vmatmul.f32.gmra.mxu0 %v2551
      %v2745 = vpop.f32.mrf.mxu0
      %v2746 = vadd.f32 %v2633, %v2745
      %2747 = vmatmul.f32.gmra.mxu0 %v2553
      %v2748 = vpop.f32.mrf.mxu0
      %v2749 = vadd.f32 %v2636, %v2748
      %2750 = vmatmul.f32.gmra.mxu0 %v2555
      %v2751 = vpop.f32.mrf.mxu0
      %v2752 = vadd.f32 %v2639, %v2751
      %2753 = vmatmul.f32.gmra.mxu0 %v2557
      %v2754 = vpop.f32.mrf.mxu0
      %v2755 = vadd.f32 %v2642, %v2754
      %2756 = vmatmul.f32.gmra.mxu0 %v2559
      %v2757 = vpop.f32.mrf.mxu0
      %v2758 = vadd.f32 %v2645, %v2757
      %2759 = vmatmul.f32.gmra.mxu0 %v2561
      %v2760 = vpop.f32.mrf.mxu0
      %v2761 = vadd.f32 %v2648, %v2760
      %2762 = vmatmul.f32.gmra.mxu0 %v2563
      %v2763 = vpop.f32.mrf.mxu0
      %v2764 = vadd.f32 %v2651, %v2763
      %2765 = vmatmul.f32.gmra.mxu0 %v2565
      %v2766 = vpop.f32.mrf.mxu0
      %v2767 = vadd.f32 %v2654, %v2766
      %2768 = vmatmul.f32.gmra.mxu0 %v2567
      %v2769 = vpop.f32.mrf.mxu0
      %v2770 = vadd.f32 %v2657, %v2769
      %2771 = vmatmul.f32.gmra.mxu0 %v2569
      %v2772 = vpop.f32.mrf.mxu0
      %v2773 = vadd.f32 %v2660, %v2772
      %2774 = vmatmul.f32.gmra.mxu0 %v2571
      %v2775 = vpop.f32.mrf.mxu0
      %v2776 = vadd.f32 %v2663, %v2775
      %2777 = vmatmul.f32.gmra.mxu0 %v2573
      %v2778 = vpop.f32.mrf.mxu0
      %v2779 = vadd.f32 %v2666, %v2778
      %2780 = vmatmul.f32.gmra.mxu0 %v2575
      %v2781 = vpop.f32.mrf.mxu0
      %v2782 = vadd.f32 %v2669, %v2781
      %2783 = vmatmul.f32.gmra.mxu0 %v2577
      %v2784 = vpop.f32.mrf.mxu0
      %v2785 = vadd.f32 %v2672, %v2784
      %2786 = vmatmul.f32.gmra.mxu0 %v2579
      %v2787 = vpop.f32.mrf.mxu0
      %v2788 = vadd.f32 %v2675, %v2787
      %2789 = vmatmul.f32.gmra.mxu0 %v2581
      %v2790 = vpop.f32.mrf.mxu0
      %v2791 = vadd.f32 %v2678, %v2790
      %2792 = vmatmul.f32.gmra.mxu0 %v2583
      %v2793 = vpop.f32.mrf.mxu0
      %v2794 = vadd.f32 %v2681, %v2793
      %2795 = vmatmul.f32.gmra.mxu0 %v2585
      %v2796 = vpop.f32.mrf.mxu0
      %v2797 = vadd.f32 %v2684, %v2796
      %2798 = vmatmul.f32.gmra.mxu0 %v2587
      %v2799 = vpop.f32.mrf.mxu0
      %v2800 = vadd.f32 %v2687, %v2799
      %2801 = vmatmul.f32.gmra.mxu0 %v2589
      %v2802 = vpop.f32.mrf.mxu0
      %v2803 = vadd.f32 %v2690, %v2802
      %2804 = vmatmul.f32.gmra.mxu0 %v2591
      %v2805 = vpop.f32.mrf.mxu0
      %v2806 = vadd.f32 %v2693, %v2805
      %2807 = vmatmul.f32.gmra.mxu0 %v2593
      %v2808 = vpop.f32.mrf.mxu0
      %v2809 = vadd.f32 %v2696, %v2808
      %2810 = vmatmul.f32.gmra.mxu0 %v2595
      %v2811 = vpop.f32.mrf.mxu0
      %v2812 = vadd.f32 %v2699, %v2811
      %2813 = vmatmul.f32.gmra.mxu0 %v2597
      %v2814 = vpop.f32.mrf.mxu0
      %v2815 = vadd.f32 %v2702, %v2814
      %2816 = vmatmul.f32.gmra.mxu0 %v2599
      %v2817 = vpop.f32.mrf.mxu0
      %v2818 = vadd.f32 %v2705, %v2817
      %2819 = vmatmul.f32.gmra.mxu0 %v2601
      %v2820 = vpop.f32.mrf.mxu0
      %v2821 = vadd.f32 %v2708, %v2820
      %2822 = vmatmul.f32.gmra.mxu0 %v2603
      %v2823 = vpop.f32.mrf.mxu0
      %v2824 = vadd.f32 %v2711, %v2823
      %2825 = vmatmul.f32.gmra.mxu0 %v2605
      %v2826 = vpop.f32.mrf.mxu0
      %v2827 = vadd.f32 %v2714, %v2826
      %2828 = vmatmul.f32.gmra.mxu0 %v2607
      %v2829 = vpop.f32.mrf.mxu0
      %v2830 = vadd.f32 %v2717, %v2829
      %2831 = vmatmul.f32.gmra.mxu0 %v2609
      %v2832 = vpop.f32.mrf.mxu0
      %v2833 = vadd.f32 %v2720, %v2832
      %2834 = vmatmul.f32.gmra.mxu0 %v2611
      %v2835 = vpop.f32.mrf.mxu0
      %v2836 = vadd.f32 %v2723, %v2835
      %2837 = vdwg.mxu0
      %v2838 = vmax.f32 %v2743, %v2767
      %v2839 = vmax.f32 %v2746, %v2770
      %v2840 = vmax.f32 %v2749, %v2773
      %v2841 = vmax.f32 %v2752, %v2776
      %v2842 = vmax.f32 %v2755, %v2779
      %v2843 = vmax.f32 %v2758, %v2782
      %v2844 = vmax.f32 %v2761, %v2785
      %v2845 = vmax.f32 %v2764, %v2788
      %v2846 = vmax.f32 %v2791, %v2815
      %v2847 = vmax.f32 %v2794, %v2818
      %v2848 = vmax.f32 %v2797, %v2821
      %v2849 = vmax.f32 %v2800, %v2824
      %v2850 = vmax.f32 %v2803, %v2827
      %v2851 = vmax.f32 %v2806, %v2830
      %v2852 = vmax.f32 %v2809, %v2833
      %v2853 = vmax.f32 %v2812, %v2836
      %v2854 = vmax.f32 %v2838, %v2846
      %v2855 = vmax.f32 %v2839, %v2847
      %v2856 = vmax.f32 %v2840, %v2848
      %v2857 = vmax.f32 %v2841, %v2849
      %v2858 = vmax.f32 %v2842, %v2850
      %v2859 = vmax.f32 %v2843, %v2851
      %v2860 = vmax.f32 %v2844, %v2852
      %v2861 = vmax.f32 %v2845, %v2853
      %v2862 = vld [vmem:[%s3] sm:$0x1]
      %v2864 = vperm.slane %v2862, 0
      %v2866 = vadd.f32 %v2854, %v2864
      %v2867 = vadd.f32 %v2855, %v2864
      %v2868 = vadd.f32 %v2856, %v2864
      %v2869 = vadd.f32 %v2857, %v2864
      %v2870 = vadd.f32 %v2858, %v2864
      %v2871 = vadd.f32 %v2859, %v2864
      %v2872 = vadd.f32 %v2860, %v2864
      %v2873 = vadd.f32 %v2861, %v2864
      %v2874 = vmax.f32 %v2866, 0.0
      %v2875 = vmax.f32 %v2867, 0.0
      %v2876 = vmax.f32 %v2868, 0.0
      %v2877 = vmax.f32 %v2869, 0.0
      %v2878 = vmax.f32 %v2870, 0.0
      %v2879 = vmax.f32 %v2871, 0.0
      %v2880 = vmax.f32 %v2872, 0.0
      %v2881 = vmax.f32 %v2873, 0.0
      %2882 = vst [vmem:[%s197] sm:$0xff] %v2874
      %2883 = vst [vmem:[%s197 + $0x8] sm:$0xff] %v2875
      %2884 = vst [vmem:[%s197 + $0x10] sm:$0xff] %v2876
      %2885 = vst [vmem:[%s197 + $0x18] sm:$0xff] %v2877
      %2886 = vst [vmem:[%s197 + $0x20] sm:$0xff] %v2878
      %2887 = vst [vmem:[%s197 + $0x28] sm:$0xff] %v2879
      %2888 = vst [vmem:[%s197 + $0x30] sm:$0xff] %v2880
      %2889 = vst [vmem:[%s197 + $0x38] sm:$0xff] %v2881
      %p2890 = scmp.lt.s32.totalorder %s15, 1
      %s2891 = scalar_select %p2890, %s15, 1
      %s2892 = smul.addr %s2891, 8
      %s2893 = smul.addr %s2892, 8
      %s2894 = scalar_lea.vmem %s4, %s2893
      // Predicated region
      $region37: #{asl_forward.3} parent=35 // pred_check
        %p2895 = pneg %p122
      $region38: #{asl_forward.3} parent=35 // pred_check_branch
        %2897 = sbr.rel (%p2895) target = $region40
      $region39: #{asl_forward.3} parent=35 // pred_region
        _
      $region40: #{asl_forward.3} parent=35 // pred_fallthru
        _
    $region36: #{asl_forward.3} parent=5 // pred_fallthru
      _
    %p2898 = scmp.le.s32.totalorder 2, %s10
    // Predicated region
    $region41: #{asl_forward.3} parent=5 // pred_check
      %p2899 = pneg %p2898
    $region42: #{asl_forward.3} parent=5 // pred_check_branch
      %2901 = sbr.rel (%p2899) target = $region44
    $region43: #{asl_forward.3} parent=5 // pred_region
      %s2902 = ssub.s32 %s10, 2
      // Predicated region
      $region45: #{asl_forward.3} parent=43 // pred_check
        %p2903 = pneg %p128
      $region46: #{asl_forward.3} parent=43 // pred_check_branch
        %2905 = sbr.rel (%p2903) target = $region48
      $region47: #{asl_forward.3} parent=43 // pred_region
        %p2906 = scmp.lt.s32.totalorder %s16, 1
        %s2907 = scalar_select %p2906, %s16, 1
        %s2908 = smul.addr %s2907, 8
        %s2909 = smul.addr %s2908, 8
        %s2910 = scalar_lea.vmem %s4, %s2909
      $region48: #{asl_forward.3} parent=43 // pred_fallthru
        _
    $region44: #{asl_forward.3} parent=5 // pred_fallthru
      _
  $region6: #{asl_forward.3} parent=0 // loop_footer
    %s14 = sadd.s32 1, %s10
  $region7: #{asl_forward.3} parent=0 // loop_footer_branch
    %9 = sbr.rel target = $region3
  $region8: #{asl_forward.3} parent=0 // loop_exit
    _

</llo_original>
